<compile_context>
chip_gen: v7x
topology: tpu7x:2x2x1
jax: 0.10.0
libtpu: 0.0.40
codegen_flags: <defaults>
</compile_context>

<pallas_src>
import functools

import jax
import jax.numpy as jnp
from jax import lax
from jax.experimental import pallas as pl
from jax.experimental.pallas import tpu as pltpu


def _encoder_block_kernel(x_ref, mask_ref,
                          wqkv_ref, wo_ref,
                          g1_ref, b1_ref, g2_ref, b2_ref,
                          fc1w_ref, fc1b_ref, fc2w_ref, fc2b_ref,
                          out_ref,
                          qkv_scr, ctx_scr,
                          *, n_splits, eps=1e-5):
    # One grid step == `block_b` batch elements; everything lives in VMEM.
    Bt, S, H = x_ref.shape
    dh = H // n_splits
    rows = Bt * S
    cdt = x_ref.dtype                       # MXU operand dtype (bf16 stays bf16)

    x = x_ref[...]                          # (Bt, S, H)
    # NOTE: (Bt*S) <-> (Bt, S) reshapes below assume S is a multiple of 8
    # (sublane granularity) or Bt == 1.
    x_f32 = x.reshape(rows, H).astype(jnp.float32)

    # Additive key-padding bias, hoisted out of the head loop. Finite large
    # negative instead of -inf: fully masked rows stay NaN/Inf free.
    bias = jnp.where(mask_ref[...] > 0, -1e30, 0.0).astype(jnp.float32)  # (Bt,1,S)

    def layer_norm(v_f32, g_ref, b_ref):
        # biased variance, matching PyTorch LayerNorm; stats in f32
        mu = jnp.mean(v_f32, axis=-1, keepdims=True)
        var = jnp.mean((v_f32 - mu) ** 2, axis=-1, keepdims=True)
        return ((v_f32 - mu) * lax.rsqrt(var + eps)
                * g_ref[0].astype(jnp.float32) + b_ref[0].astype(jnp.float32))

    # ---- multi-head self-attention sub-block (pre-norm, residual) ----
    zn = layer_norm(x_f32, g1_ref, b1_ref).astype(cdt)                    # (rows, H)
    # fused QKV projection; 1/sqrt(dk) already folded into the Q columns
    # host-side; cast the whole slab to the compute dtype once.
    qkv = jnp.dot(zn, wqkv_ref[...],
                  preferred_element_type=jnp.float32).astype(cdt)         # (rows, 3H)

    # Stage per-head q/k/v slices into a head-major scratch (static slices,
    # cheap vst work) so the head loop can index heads dynamically.
    for j in range(3 * n_splits):
        qkv_scr[j] = qkv[:, j * dh:(j + 1) * dh]

    def head_body(h, carry):
        qh = qkv_scr[h].reshape(Bt, S, dh)
        kh = qkv_scr[n_splits + h].reshape(Bt, S, dh)
        vh = qkv_scr[2 * n_splits + h].reshape(Bt, S, dh)
        # batched q @ k^T, contracting last dims (no per-head transpose)
        s = lax.dot_general(qh, kh, (((2,), (2,)), ((0,), (0,))),
                            preferred_element_type=jnp.float32)           # (Bt,S,S)
        s = s + bias
        s = s - jnp.max(s, axis=-1, keepdims=True)
        e = jnp.exp(s)
        p = e * pl.reciprocal(jnp.sum(e, axis=-1, keepdims=True), approx=True)
        ch = lax.dot_general(p.astype(cdt), vh, (((2,), (1,)), ((0,), (0,))),
                             preferred_element_type=jnp.float32)          # (Bt,S,dh)
        ctx_scr[h] = ch.reshape(rows, dh).astype(cdt)
        return carry

    lax.fori_loop(0, n_splits, head_body, 0)

    # Single full-K output projection (replaces n_splits small-K matmuls).
    ctx = jnp.concatenate([ctx_scr[j] for j in range(n_splits)], axis=-1)  # (rows,H)
    attn = jnp.dot(ctx, wo_ref[...], preferred_element_type=jnp.float32)
    z1 = x_f32 + attn                       # attn_dropout -> identity (eval)

    # ---- feed-forward sub-block (pre-norm, residual) ----
    zn2 = layer_norm(z1, g2_ref, b2_ref).astype(cdt)
    h1 = jnp.dot(zn2, fc1w_ref[...], preferred_element_type=jnp.float32)
    h1 = jnp.maximum(h1 + fc1b_ref[0].astype(jnp.float32), 0.0)           # ReLU
    h2 = jnp.dot(h1.astype(cdt), fc2w_ref[...], preferred_element_type=jnp.float32)
    h2 = h2 + fc2b_ref[0].astype(jnp.float32)
    out_ref[...] = (z1 + h2).reshape(Bt, S, H).astype(out_ref.dtype)      # fc_dropout -> identity


def _vmem_budget_bytes():
    """~78% of physical VMEM: ~100 MiB on v5e/v6e (128 MiB), ~50 MiB on v7x (64)."""
    try:
        cap = int(pltpu.get_tpu_info().vmem_capacity_bytes)
    except Exception:
        cap = 64 * 1024 * 1024
    return (cap * 25) // 32


def _vmem_block_estimate(block_b, S, H, itm_x, itm_w, weight_buffers):
    """Rough per-grid-step VMEM footprint, *including* in-kernel intermediates."""
    rows = block_b * S
    io = 2 * (2 * rows * H * itm_x) + 2 * block_b * S * 4        # x/out dbl-buffered, mask
    weights = weight_buffers * (12 * H * H + 10 * H) * itm_w     # wqkv+wo+fc1+fc2 (+biases)
    inter = (4 * (3 * rows * H)                                  # x_f32 / z1 / attn (f32)
             + 4 * (3 * rows * H)                                # qkv f32 slab
             + 4 * (4 * rows * H)                                # h1 f32 slab
             + itm_x * (3 * rows * H + rows * H)                 # qkv_scr + ctx_scr
             + 2 * 4 * block_b * S * S)                          # one head's scores + exp
    return io + weights + inter


def _pick_block_b(B, S, H, itm_x, itm_w, budget, weight_buffers, target_rows=512):
    """Largest divisor of B that fits the VMEM budget and ~fills the MXU M dim,
    then reduced (if possible) so the grid has >= 2 steps for v7x's 2 TCs."""
    divisors = [d for d in range(1, B + 1) if B % d == 0]
    fit = [d for d in divisors
           if _vmem_block_estimate(d, S, H, itm_x, itm_w, weight_buffers)
           <= budget - (2 << 20)]                                # Mosaic scratch headroom
    if not fit:
        fit = [1]
    capped = [d for d in fit if d * S <= max(S, target_rows)] or [min(fit)]
    bb = max(capped)
    while B // bb < 2 and bb > 1:
        smaller = [d for d in divisors if d < bb]
        if not smaller:
            break
        bb = max(smaller)
    return bb


def encoder_block_pallas(x, key_pad_mask, params, n_splits, block_b=None):
    """x: (B, S, H); key_pad_mask: (B, S), nonzero -> key position is masked."""
    B, S, H = x.shape
    assert H % n_splits == 0
    dh = H // n_splits
    cdt = x.dtype
    itm = x.dtype.itemsize

    # Fuse Q/K/V into a single (H, 3H) weight; fold the 1/sqrt(dk) softmax scale
    # into the Q columns (additive mask bias is unaffected by the scaling).
    # Cast every matmul weight to the activation compute dtype (review item #1).
    scale = float(dh) ** -0.5
    wqkv = jnp.concatenate([params["wq"] * scale, params["wk"], params["wv"]],
                           axis=1).astype(cdt)
    wo = params["wo"].astype(cdt)
    fc1w = params["fc1w"].astype(cdt)
    fc2w = params["fc2w"].astype(cdt)
    g1 = params["g1"].astype(jnp.float32)
    b1 = params["b1"].astype(jnp.float32)
    g2 = params["g2"].astype(jnp.float32)
    b2 = params["b2"].astype(jnp.float32)
    fc1b = params["fc1b"].astype(jnp.float32)
    fc2b = params["fc2b"].astype(jnp.float32)

    # Key-padding mask as a rank-1 (B, 1, S) row; broadcast over queries in-kernel.
    mask3 = key_pad_mask.reshape(B, 1, S).astype(jnp.int32)

    budget = _vmem_budget_bytes()
    if block_b is None:
        block_b = _pick_block_b(B, S, H, itm, itm, budget, weight_buffers=1)
    assert B % block_b == 0

    kernel = functools.partial(_encoder_block_kernel, n_splits=n_splits)

    # Advisory cost estimate so XLA can schedule around the custom call.
    flops = int(2 * B * S * (12 * H * H + 2 * S * H))
    transcendentals = int(B * S * S * n_splits + B * S * (n_splits + 2))
    weight_bytes = sum(int(w.size) * w.dtype.itemsize for w in
                       (wqkv, wo, fc1w, fc2w, g1, b1, g2, b2, fc1b, fc2b))
    act_bytes = 2 * int(x.size) * itm + int(mask3.size) * 4
    cost = pl.CostEstimate(flops=flops, transcendentals=transcendentals,
                           bytes_accessed=weight_bytes + act_bytes)

    def build_and_call(single_buffered_weights):
        def wspec(shape):
            nd = len(shape)
            idx = lambda b, _n=nd: (0,) * _n
            if single_buffered_weights:
                # constant index map -> double buffering is pure VMEM waste
                return pl.BlockSpec(shape, idx, pipeline_mode=pl.Buffered(1))
            return pl.BlockSpec(shape, idx)

        in_specs = [
            pl.BlockSpec((block_b, S, H), lambda b: (b, 0, 0)),   # x
            pl.BlockSpec((block_b, 1, S), lambda b: (b, 0, 0)),   # key-pad mask row
            wspec((H, 3 * H)),                                    # fused wqkv
            wspec((H, H)),                                        # wo
            wspec((1, H)), wspec((1, H)),                         # ln1 gamma, beta
            wspec((1, H)), wspec((1, H)),                         # ln2 gamma, beta
            wspec((H, 4 * H)), wspec((1, 4 * H)),                 # fc1 w, b
            wspec((4 * H, H)), wspec((1, H)),                     # fc2 w, b
        ]
        grid_spec = pltpu.PrefetchScalarGridSpec(
            num_scalar_prefetch=0,
            grid=(B // block_b,),
            in_specs=in_specs,
            out_specs=pl.BlockSpec((block_b, S, H), lambda b: (b, 0, 0)),
            scratch_shapes=[
                pltpu.VMEM((3 * n_splits, block_b * S, dh), cdt),  # head-major q/k/v
                pltpu.VMEM((n_splits, block_b * S, dh), cdt),      # head-major context
            ])
        return pl.pallas_call(
            kernel,
            out_shape=jax.ShapeDtypeStruct((B, S, H), x.dtype),
            grid_spec=grid_spec,
            compiler_params=pltpu.CompilerParams(
                dimension_semantics=("parallel",),
                vmem_limit_bytes=int(budget)),
            cost_estimate=cost,
        )(x, mask3, wqkv, wo, g1, b1, g2, b2, fc1w, fc1b, fc2w, fc2b)

    try:
        # Preferred path: single-buffered (grid-invariant) weights.
        return jax.block_until_ready(build_and_call(True))
    except Exception:
        # Fallback if this jax build rejects pipeline_mode / Buffered(1).
        return build_and_call(False)


def encoder_block_ref(x, mask, params, n_splits):
    """Pure-JAX reference (mirrors the PyTorch forward; mask is (B, S, S))."""
    B, S, H = x.shape
    dh = H // n_splits

    def ln(v, g, b, eps=1e-5):
        mu = jnp.mean(v, axis=-1, keepdims=True)
        var = jnp.mean((v - mu) ** 2, axis=-1, keepdims=True)
        return (v - mu) / jnp.sqrt(var + eps) * g + b

    zn = ln(x, params["g1"], params["b1"])
    q = zn @ params["wq"]
    k = zn @ params["wk"]
    v = zn @ params["wv"]
    heads = []
    for h in range(n_splits):
        qh = q[..., h * dh:(h + 1) * dh]
        kh = k[..., h * dh:(h + 1) * dh]
        vh = v[..., h * dh:(h + 1) * dh]
        w = jnp.einsum("bqd,bkd->bqk", qh, kh)
        w = jnp.where(mask > 0, -jnp.inf, w)
        w = jax.nn.softmax(w / (dh ** 0.5), axis=-1)
        heads.append(jnp.einsum("bqk,bkd->bqd", w, vh))
    c = jnp.concatenate(heads, axis=-1)
    z1 = x + c @ params["wo"]
    zn2 = ln(z1, params["g2"], params["b2"])
    h1 = jax.nn.relu(zn2 @ params["fc1w"] + params["fc1b"])
    return z1 + (h1 @ params["fc2w"] + params["fc2b"])


if __name__ == "__main__":
    B, S, H, n_splits = 2, 8, 32, 4

    key = jax.random.PRNGKey(0)
    ks = jax.random.split(key, 8)
    x = jax.random.normal(ks[0], (B, S, H), jnp.float32)

    # Key-padding mask: nonzero -> masked. Batch 0: nothing masked,
    # batch 1: last 2 key positions masked (broadcast over query dim).
    valid_len = jnp.array([S, S - 2])
    key_pad = (jnp.arange(S)[None, :] >= valid_len[:, None]).astype(jnp.int32)  # (B, S)
    mask_full = jnp.broadcast_to(key_pad[:, None, :], (B, S, S)).astype(jnp.int32)

    scale = 0.05
    params = {
        "wq": scale * jax.random.normal(ks[1], (H, H), jnp.float32),
        "wk": scale * jax.random.normal(ks[2], (H, H), jnp.float32),
        "wv": scale * jax.random.normal(ks[3], (H, H), jnp.float32),
        "wo": scale * jax.random.normal(ks[4], (H, H), jnp.float32),
        "g1": jnp.ones((1, H), jnp.float32),
        "b1": jnp.zeros((1, H), jnp.float32),
        "g2": jnp.ones((1, H), jnp.float32),
        "b2": jnp.zeros((1, H), jnp.float32),
        "fc1w": scale * jax.random.normal(ks[5], (H, 4 * H), jnp.float32),
        "fc1b": 0.01 * jnp.ones((1, 4 * H), jnp.float32),
        "fc2w": scale * jax.random.normal(ks[6], (4 * H, H), jnp.float32),
        "fc2b": 0.01 * jnp.ones((1, H), jnp.float32),
    }

    out = encoder_block_pallas(x, key_pad, params, n_splits)
    out = jax.block_until_ready(out)

    ref = encoder_block_ref(x, mask_full, params, n_splits)
    assert out.shape == (B, S, H)
    # tolerance accounts for the approx (EUP) reciprocal in the softmax denominator
    assert jnp.allclose(out, ref, atol=2e-3, rtol=2e-3), (
        "mismatch vs reference: max abs err "
        f"{jnp.max(jnp.abs(out - ref))}"
    )
    print("KERNEL_OK")
</pallas_src>

<mosaic_0001>
module attributes {stable_mosaic.version = 11 : i64} {
  func.func @_encoder_block_kernel(%arg0: i32, %arg1: memref<1x8x32xf32, #tpu.memory_space<vmem>>, %arg2: memref<1x1x8xi32, #tpu.memory_space<vmem>>, %arg3: memref<32x96xf32, #tpu.memory_space<vmem>>, %arg4: memref<32x32xf32, #tpu.memory_space<vmem>>, %arg5: memref<1x32xf32, #tpu.memory_space<vmem>>, %arg6: memref<1x32xf32, #tpu.memory_space<vmem>>, %arg7: memref<1x32xf32, #tpu.memory_space<vmem>>, %arg8: memref<1x32xf32, #tpu.memory_space<vmem>>, %arg9: memref<32x128xf32, #tpu.memory_space<vmem>>, %arg10: memref<1x128xf32, #tpu.memory_space<vmem>>, %arg11: memref<128x32xf32, #tpu.memory_space<vmem>>, %arg12: memref<1x32xf32, #tpu.memory_space<vmem>>, %arg13: memref<1x8x32xf32, #tpu.memory_space<vmem>>, %arg14: memref<12x8x8xf32, #tpu.memory_space<vmem>>, %arg15: memref<4x8x8xf32, #tpu.memory_space<vmem>>) attributes {dimension_semantics = [#tpu.dimension_semantics<parallel>], iteration_bounds = array<i64: 2>, scalar_prefetch = 0 : i64, scratch_operands = 2 : i64, tpu.core_type = #tpu.core_type<tc>, window_params = [{transform_indices = @transform_0, window_bounds = array<i64: 1, 8, 32>}, {transform_indices = @transform_1, window_bounds = array<i64: 1, 1, 8>}, {pipeline_mode = #tpu.pipeline_mode<synchronous>, transform_indices = @transform_2, window_bounds = array<i64: 32, 96>}, {pipeline_mode = #tpu.pipeline_mode<synchronous>, transform_indices = @transform_3, window_bounds = array<i64: 32, 32>}, {pipeline_mode = #tpu.pipeline_mode<synchronous>, transform_indices = @transform_4, window_bounds = array<i64: 1, 32>}, {pipeline_mode = #tpu.pipeline_mode<synchronous>, transform_indices = @transform_5, window_bounds = array<i64: 1, 32>}, {pipeline_mode = #tpu.pipeline_mode<synchronous>, transform_indices = @transform_6, window_bounds = array<i64: 1, 32>}, {pipeline_mode = #tpu.pipeline_mode<synchronous>, transform_indices = @transform_7, window_bounds = array<i64: 1, 32>}, {pipeline_mode = #tpu.pipeline_mode<synchronous>, transform_indices = @transform_8, window_bounds = array<i64: 32, 128>}, {pipeline_mode = #tpu.pipeline_mode<synchronous>, transform_indices = @transform_9, window_bounds = array<i64: 1, 128>}, {pipeline_mode = #tpu.pipeline_mode<synchronous>, transform_indices = @transform_10, window_bounds = array<i64: 128, 32>}, {pipeline_mode = #tpu.pipeline_mode<synchronous>, transform_indices = @transform_11, window_bounds = array<i64: 1, 32>}, {transform_indices = @transform_12, window_bounds = array<i64: 1, 8, 32>}]} {
    %c0 = arith.constant 0 : index
    %c0_0 = arith.constant 0 : index
    %c0_1 = arith.constant 0 : index
    %0 = vector.load %arg1[%c0, %c0_0, %c0_1] : memref<1x8x32xf32, #tpu.memory_space<vmem>>, vector<1x8x32xf32>
    %1 = vector.shape_cast %0 : vector<1x8x32xf32> to vector<8x32xf32>
    %c0_2 = arith.constant 0 : index
    %c0_3 = arith.constant 0 : index
    %c0_4 = arith.constant 0 : index
    %2 = vector.load %arg2[%c0_2, %c0_3, %c0_4] : memref<1x1x8xi32, #tpu.memory_space<vmem>>, vector<1x1x8xi32>
    %c0_i32 = arith.constant 0 : i32
    %3 = vector.broadcast %c0_i32 : i32 to vector<1x1x8xi32>
    %4 = arith.cmpi sgt, %2, %3 : vector<1x1x8xi32>
    %cst = arith.constant -1.000000e+30 : f32
    %cst_5 = arith.constant 0.000000e+00 : f32
    %5 = vector.broadcast %cst : f32 to vector<1x1x8xf32>
    %6 = vector.broadcast %cst_5 : f32 to vector<1x1x8xf32>
    %7 = arith.select %4, %5, %6 : vector<1x1x8xi1>, vector<1x1x8xf32>
    %cst_6 = arith.constant dense<0.000000e+00> : vector<8xf32>
    %8 = vector.multi_reduction <add>, %1, %cst_6 [1] : vector<8x32xf32> to vector<8xf32>
    %9 = vector.shape_cast %8 : vector<8xf32> to vector<8x1xf32>
    %cst_7 = arith.constant 3.200000e+01 : f32
    %10 = vector.broadcast %cst_7 : f32 to vector<8x1xf32>
    %11 = arith.divf %9, %10 : vector<8x1xf32>
    %12 = vector.broadcast %11 : vector<8x1xf32> to vector<8x32xf32>
    %13 = arith.subf %1, %12 : vector<8x32xf32>
    %14 = arith.mulf %13, %13 : vector<8x32xf32>
    %cst_8 = arith.constant dense<0.000000e+00> : vector<8xf32>
    %15 = vector.multi_reduction <add>, %14, %cst_8 [1] : vector<8x32xf32> to vector<8xf32>
    %16 = vector.shape_cast %15 : vector<8xf32> to vector<8x1xf32>
    %cst_9 = arith.constant 3.200000e+01 : f32
    %17 = vector.broadcast %cst_9 : f32 to vector<8x1xf32>
    %18 = arith.divf %16, %17 : vector<8x1xf32>
    %19 = vector.broadcast %11 : vector<8x1xf32> to vector<8x32xf32>
    %20 = arith.subf %1, %19 : vector<8x32xf32>
    %cst_10 = arith.constant 9.99999974E-6 : f32
    %21 = vector.broadcast %cst_10 : f32 to vector<8x1xf32>
    %22 = arith.addf %18, %21 : vector<8x1xf32>
    %23 = math.rsqrt %22 : vector<8x1xf32>
    %24 = vector.broadcast %23 : vector<8x1xf32> to vector<8x32xf32>
    %25 = arith.mulf %20, %24 : vector<8x32xf32>
    %c0_11 = arith.constant 0 : index
    %c0_12 = arith.constant 0 : index
    %26 = vector.load %arg5[%c0_11, %c0_12] : memref<1x32xf32, #tpu.memory_space<vmem>>, vector<1x32xf32>
    %27 = vector.shape_cast %26 : vector<1x32xf32> to vector<32xf32>
    %28 = vector.shape_cast %27 : vector<32xf32> to vector<1x32xf32>
    %29 = vector.broadcast %28 : vector<1x32xf32> to vector<8x32xf32>
    %30 = arith.mulf %25, %29 : vector<8x32xf32>
    %c0_13 = arith.constant 0 : index
    %c0_14 = arith.constant 0 : index
    %31 = vector.load %arg6[%c0_13, %c0_14] : memref<1x32xf32, #tpu.memory_space<vmem>>, vector<1x32xf32>
    %32 = vector.shape_cast %31 : vector<1x32xf32> to vector<32xf32>
    %33 = vector.shape_cast %32 : vector<32xf32> to vector<1x32xf32>
    %34 = vector.broadcast %33 : vector<1x32xf32> to vector<8x32xf32>
    %35 = arith.addf %30, %34 : vector<8x32xf32>
    %c0_15 = arith.constant 0 : index
    %c0_16 = arith.constant 0 : index
    %36 = vector.load %arg3[%c0_15, %c0_16] : memref<32x96xf32, #tpu.memory_space<vmem>>, vector<32x96xf32>
    %cst_17 = arith.constant dense<0.000000e+00> : vector<8x96xf32>
    %37 = tpu.matmul %35, %36, %cst_17 {dimension_numbers = #tpu.dot_dimension_numbers<[1], [0], [0], [1], [0, 0, 1, 1], [], []>} : vector<8x32xf32>, vector<32x96xf32>, vector<8x96xf32> -> vector<8x96xf32>
    %38 = vector.extract_strided_slice %37 {offsets = [0, 0], sizes = [8, 8], strides = [1, 1]} : vector<8x96xf32> to vector<8x8xf32>
    %c0_18 = arith.constant 0 : index
    %c0_19 = arith.constant 0 : index
    %c0_20 = arith.constant 0 : index
    %39 = vector.load %arg14[%c0_18, %c0_19, %c0_20] : memref<12x8x8xf32, #tpu.memory_space<vmem>>, vector<1x8x8xf32>
    %40 = vector.shape_cast %39 : vector<1x8x8xf32> to vector<8x8xf32>
    %41 = vector.shape_cast %38 : vector<8x8xf32> to vector<1x8x8xf32>
    tpu.vector_store %arg14[%c0_18, %c0_19, %c0_20], %41 {strides = array<i32>} : memref<12x8x8xf32, #tpu.memory_space<vmem>>, vector<1x8x8xf32>,
    %42 = vector.extract_strided_slice %37 {offsets = [0, 8], sizes = [8, 8], strides = [1, 1]} : vector<8x96xf32> to vector<8x8xf32>
    %c1 = arith.constant 1 : index
    %c0_21 = arith.constant 0 : index
    %c0_22 = arith.constant 0 : index
    %43 = vector.load %arg14[%c1, %c0_21, %c0_22] : memref<12x8x8xf32, #tpu.memory_space<vmem>>, vector<1x8x8xf32>
    %44 = vector.shape_cast %43 : vector<1x8x8xf32> to vector<8x8xf32>
    %45 = vector.shape_cast %42 : vector<8x8xf32> to vector<1x8x8xf32>
    tpu.vector_store %arg14[%c1, %c0_21, %c0_22], %45 {strides = array<i32>} : memref<12x8x8xf32, #tpu.memory_space<vmem>>, vector<1x8x8xf32>,
    %46 = vector.extract_strided_slice %37 {offsets = [0, 16], sizes = [8, 8], strides = [1, 1]} : vector<8x96xf32> to vector<8x8xf32>
    %c2 = arith.constant 2 : index
    %c0_23 = arith.constant 0 : index
    %c0_24 = arith.constant 0 : index
    %47 = vector.load %arg14[%c2, %c0_23, %c0_24] : memref<12x8x8xf32, #tpu.memory_space<vmem>>, vector<1x8x8xf32>
    %48 = vector.shape_cast %47 : vector<1x8x8xf32> to vector<8x8xf32>
    %49 = vector.shape_cast %46 : vector<8x8xf32> to vector<1x8x8xf32>
    tpu.vector_store %arg14[%c2, %c0_23, %c0_24], %49 {strides = array<i32>} : memref<12x8x8xf32, #tpu.memory_space<vmem>>, vector<1x8x8xf32>,
    %50 = vector.extract_strided_slice %37 {offsets = [0, 24], sizes = [8, 8], strides = [1, 1]} : vector<8x96xf32> to vector<8x8xf32>
    %c3 = arith.constant 3 : index
    %c0_25 = arith.constant 0 : index
    %c0_26 = arith.constant 0 : index
    %51 = vector.load %arg14[%c3, %c0_25, %c0_26] : memref<12x8x8xf32, #tpu.memory_space<vmem>>, vector<1x8x8xf32>
    %52 = vector.shape_cast %51 : vector<1x8x8xf32> to vector<8x8xf32>
    %53 = vector.shape_cast %50 : vector<8x8xf32> to vector<1x8x8xf32>
    tpu.vector_store %arg14[%c3, %c0_25, %c0_26], %53 {strides = array<i32>} : memref<12x8x8xf32, #tpu.memory_space<vmem>>, vector<1x8x8xf32>,
    %54 = vector.extract_strided_slice %37 {offsets = [0, 32], sizes = [8, 8], strides = [1, 1]} : vector<8x96xf32> to vector<8x8xf32>
    %c4 = arith.constant 4 : index
    %c0_27 = arith.constant 0 : index
    %c0_28 = arith.constant 0 : index
    %55 = vector.load %arg14[%c4, %c0_27, %c0_28] : memref<12x8x8xf32, #tpu.memory_space<vmem>>, vector<1x8x8xf32>
    %56 = vector.shape_cast %55 : vector<1x8x8xf32> to vector<8x8xf32>
    %57 = vector.shape_cast %54 : vector<8x8xf32> to vector<1x8x8xf32>
    tpu.vector_store %arg14[%c4, %c0_27, %c0_28], %57 {strides = array<i32>} : memref<12x8x8xf32, #tpu.memory_space<vmem>>, vector<1x8x8xf32>,
    %58 = vector.extract_strided_slice %37 {offsets = [0, 40], sizes = [8, 8], strides = [1, 1]} : vector<8x96xf32> to vector<8x8xf32>
    %c5 = arith.constant 5 : index
    %c0_29 = arith.constant 0 : index
    %c0_30 = arith.constant 0 : index
    %59 = vector.load %arg14[%c5, %c0_29, %c0_30] : memref<12x8x8xf32, #tpu.memory_space<vmem>>, vector<1x8x8xf32>
    %60 = vector.shape_cast %59 : vector<1x8x8xf32> to vector<8x8xf32>
    %61 = vector.shape_cast %58 : vector<8x8xf32> to vector<1x8x8xf32>
    tpu.vector_store %arg14[%c5, %c0_29, %c0_30], %61 {strides = array<i32>} : memref<12x8x8xf32, #tpu.memory_space<vmem>>, vector<1x8x8xf32>,
    %62 = vector.extract_strided_slice %37 {offsets = [0, 48], sizes = [8, 8], strides = [1, 1]} : vector<8x96xf32> to vector<8x8xf32>
    %c6 = arith.constant 6 : index
    %c0_31 = arith.constant 0 : index
    %c0_32 = arith.constant 0 : index
    %63 = vector.load %arg14[%c6, %c0_31, %c0_32] : memref<12x8x8xf32, #tpu.memory_space<vmem>>, vector<1x8x8xf32>
    %64 = vector.shape_cast %63 : vector<1x8x8xf32> to vector<8x8xf32>
    %65 = vector.shape_cast %62 : vector<8x8xf32> to vector<1x8x8xf32>
    tpu.vector_store %arg14[%c6, %c0_31, %c0_32], %65 {strides = array<i32>} : memref<12x8x8xf32, #tpu.memory_space<vmem>>, vector<1x8x8xf32>,
    %66 = vector.extract_strided_slice %37 {offsets = [0, 56], sizes = [8, 8], strides = [1, 1]} : vector<8x96xf32> to vector<8x8xf32>
    %c7 = arith.constant 7 : index
    %c0_33 = arith.constant 0 : index
    %c0_34 = arith.constant 0 : index
    %67 = vector.load %arg14[%c7, %c0_33, %c0_34] : memref<12x8x8xf32, #tpu.memory_space<vmem>>, vector<1x8x8xf32>
    %68 = vector.shape_cast %67 : vector<1x8x8xf32> to vector<8x8xf32>
    %69 = vector.shape_cast %66 : vector<8x8xf32> to vector<1x8x8xf32>
    tpu.vector_store %arg14[%c7, %c0_33, %c0_34], %69 {strides = array<i32>} : memref<12x8x8xf32, #tpu.memory_space<vmem>>, vector<1x8x8xf32>,
    %70 = vector.extract_strided_slice %37 {offsets = [0, 64], sizes = [8, 8], strides = [1, 1]} : vector<8x96xf32> to vector<8x8xf32>
    %c8 = arith.constant 8 : index
    %c0_35 = arith.constant 0 : index
    %c0_36 = arith.constant 0 : index
    %71 = vector.load %arg14[%c8, %c0_35, %c0_36] : memref<12x8x8xf32, #tpu.memory_space<vmem>>, vector<1x8x8xf32>
    %72 = vector.shape_cast %71 : vector<1x8x8xf32> to vector<8x8xf32>
    %73 = vector.shape_cast %70 : vector<8x8xf32> to vector<1x8x8xf32>
    tpu.vector_store %arg14[%c8, %c0_35, %c0_36], %73 {strides = array<i32>} : memref<12x8x8xf32, #tpu.memory_space<vmem>>, vector<1x8x8xf32>,
    %74 = vector.extract_strided_slice %37 {offsets = [0, 72], sizes = [8, 8], strides = [1, 1]} : vector<8x96xf32> to vector<8x8xf32>
    %c9 = arith.constant 9 : index
    %c0_37 = arith.constant 0 : index
    %c0_38 = arith.constant 0 : index
    %75 = vector.load %arg14[%c9, %c0_37, %c0_38] : memref<12x8x8xf32, #tpu.memory_space<vmem>>, vector<1x8x8xf32>
    %76 = vector.shape_cast %75 : vector<1x8x8xf32> to vector<8x8xf32>
    %77 = vector.shape_cast %74 : vector<8x8xf32> to vector<1x8x8xf32>
    tpu.vector_store %arg14[%c9, %c0_37, %c0_38], %77 {strides = array<i32>} : memref<12x8x8xf32, #tpu.memory_space<vmem>>, vector<1x8x8xf32>,
    %78 = vector.extract_strided_slice %37 {offsets = [0, 80], sizes = [8, 8], strides = [1, 1]} : vector<8x96xf32> to vector<8x8xf32>
    %c10 = arith.constant 10 : index
    %c0_39 = arith.constant 0 : index
    %c0_40 = arith.constant 0 : index
    %79 = vector.load %arg14[%c10, %c0_39, %c0_40] : memref<12x8x8xf32, #tpu.memory_space<vmem>>, vector<1x8x8xf32>
    %80 = vector.shape_cast %79 : vector<1x8x8xf32> to vector<8x8xf32>
    %81 = vector.shape_cast %78 : vector<8x8xf32> to vector<1x8x8xf32>
    tpu.vector_store %arg14[%c10, %c0_39, %c0_40], %81 {strides = array<i32>} : memref<12x8x8xf32, #tpu.memory_space<vmem>>, vector<1x8x8xf32>,
    %82 = vector.extract_strided_slice %37 {offsets = [0, 88], sizes = [8, 8], strides = [1, 1]} : vector<8x96xf32> to vector<8x8xf32>
    %c11 = arith.constant 11 : index
    %c0_41 = arith.constant 0 : index
    %c0_42 = arith.constant 0 : index
    %83 = vector.load %arg14[%c11, %c0_41, %c0_42] : memref<12x8x8xf32, #tpu.memory_space<vmem>>, vector<1x8x8xf32>
    %84 = vector.shape_cast %83 : vector<1x8x8xf32> to vector<8x8xf32>
    %85 = vector.shape_cast %82 : vector<8x8xf32> to vector<1x8x8xf32>
    tpu.vector_store %arg14[%c11, %c0_41, %c0_42], %85 {strides = array<i32>} : memref<12x8x8xf32, #tpu.memory_space<vmem>>, vector<1x8x8xf32>,
    %c0_i32_43 = arith.constant 0 : i32
    %c4_i32 = arith.constant 4 : i32
    %86 = arith.addi %c0_i32_43, %c4_i32 : i32
    %c1_i32 = arith.constant 1 : i32
    scf.for %arg16 = %c0_i32_43 to %86 step %c1_i32  : i32 {
      %146 = arith.index_cast %arg16 : i32 to index
      %c0_83 = arith.constant 0 : index
      %c0_84 = arith.constant 0 : index
      %147 = vector.load %arg14[%146, %c0_83, %c0_84] : memref<12x8x8xf32, #tpu.memory_space<vmem>>, vector<1x8x8xf32>
      %148 = vector.shape_cast %147 : vector<1x8x8xf32> to vector<8x8xf32>
      %149 = vector.shape_cast %148 : vector<8x8xf32> to vector<1x8x8xf32>
      %c4_i32_85 = arith.constant 4 : i32
      %150 = arith.addi %c4_i32_85, %arg16 : i32
      %151 = arith.index_cast %150 : i32 to index
      %c0_86 = arith.constant 0 : index
      %c0_87 = arith.constant 0 : index
      %152 = vector.load %arg14[%151, %c0_86, %c0_87] : memref<12x8x8xf32, #tpu.memory_space<vmem>>, vector<1x8x8xf32>
      %153 = vector.shape_cast %152 : vector<1x8x8xf32> to vector<8x8xf32>
      %154 = vector.shape_cast %153 : vector<8x8xf32> to vector<1x8x8xf32>
      %c8_i32 = arith.constant 8 : i32
      %155 = arith.addi %c8_i32, %arg16 : i32
      %156 = arith.index_cast %155 : i32 to index
      %c0_88 = arith.constant 0 : index
      %c0_89 = arith.constant 0 : index
      %157 = vector.load %arg14[%156, %c0_88, %c0_89] : memref<12x8x8xf32, #tpu.memory_space<vmem>>, vector<1x8x8xf32>
      %158 = vector.shape_cast %157 : vector<1x8x8xf32> to vector<8x8xf32>
      %159 = vector.shape_cast %158 : vector<8x8xf32> to vector<1x8x8xf32>
      %cst_90 = arith.constant dense<0.000000e+00> : vector<1x8x8xf32>
      %160 = tpu.matmul %149, %154, %cst_90 {dimension_numbers = #tpu.dot_dimension_numbers<[2], [2], [1], [1], [0, 0, 0, 1, 1, 1], [0], [0]>} : vector<1x8x8xf32>, vector<1x8x8xf32>, vector<1x8x8xf32> -> vector<1x8x8xf32>
      %161 = vector.broadcast %7 : vector<1x1x8xf32> to vector<1x8x8xf32>
      %162 = arith.addf %160, %161 : vector<1x8x8xf32>
      %cst_91 = arith.constant dense<0xFF800000> : vector<1x8xf32>
      %163 = vector.multi_reduction <maximumf>, %162, %cst_91 [2] : vector<1x8x8xf32> to vector<1x8xf32>
      %164 = vector.shape_cast %163 : vector<1x8xf32> to vector<1x8x1xf32>
      %165 = vector.broadcast %164 : vector<1x8x1xf32> to vector<1x8x8xf32>
      %166 = arith.subf %162, %165 : vector<1x8x8xf32>
      %167 = math.exp %166 : vector<1x8x8xf32>
      %cst_92 = arith.constant dense<0.000000e+00> : vector<1x8xf32>
      %168 = vector.multi_reduction <add>, %167, %cst_92 [2] : vector<1x8x8xf32> to vector<1x8xf32>
      %169 = vector.shape_cast %168 : vector<1x8xf32> to vector<1x8x1xf32>
      %170 = tpu.reciprocal %169 {approx = true} : vector<1x8x1xf32> -> vector<1x8x1xf32>
      %171 = vector.broadcast %170 : vector<1x8x1xf32> to vector<1x8x8xf32>
      %172 = arith.mulf %167, %171 : vector<1x8x8xf32>
      %cst_93 = arith.constant dense<0.000000e+00> : vector<1x8x8xf32>
      %173 = tpu.matmul %172, %159, %cst_93 {dimension_numbers = #tpu.dot_dimension_numbers<[2], [1], [1], [2], [0, 0, 0, 1, 1, 2], [0], [0]>} : vector<1x8x8xf32>, vector<1x8x8xf32>, vector<1x8x8xf32> -> vector<1x8x8xf32>
      %174 = vector.shape_cast %173 : vector<1x8x8xf32> to vector<8x8xf32>
      %175 = arith.index_cast %arg16 : i32 to index
      %c0_94 = arith.constant 0 : index
      %c0_95 = arith.constant 0 : index
      %176 = vector.load %arg15[%175, %c0_94, %c0_95] : memref<4x8x8xf32, #tpu.memory_space<vmem>>, vector<1x8x8xf32>
      %177 = vector.shape_cast %176 : vector<1x8x8xf32> to vector<8x8xf32>
      %178 = vector.shape_cast %174 : vector<8x8xf32> to vector<1x8x8xf32>
      tpu.vector_store %arg15[%175, %c0_94, %c0_95], %178 {strides = array<i32>} : memref<4x8x8xf32, #tpu.memory_space<vmem>>, vector<1x8x8xf32>,
    }
    %c4_i32_44 = arith.constant 4 : i32
    %c0_45 = arith.constant 0 : index
    %c0_46 = arith.constant 0 : index
    %c0_47 = arith.constant 0 : index
    %87 = vector.load %arg15[%c0_45, %c0_46, %c0_47] : memref<4x8x8xf32, #tpu.memory_space<vmem>>, vector<1x8x8xf32>
    %88 = vector.shape_cast %87 : vector<1x8x8xf32> to vector<8x8xf32>
    %c1_48 = arith.constant 1 : index
    %c0_49 = arith.constant 0 : index
    %c0_50 = arith.constant 0 : index
    %89 = vector.load %arg15[%c1_48, %c0_49, %c0_50] : memref<4x8x8xf32, #tpu.memory_space<vmem>>, vector<1x8x8xf32>
    %90 = vector.shape_cast %89 : vector<1x8x8xf32> to vector<8x8xf32>
    %c2_51 = arith.constant 2 : index
    %c0_52 = arith.constant 0 : index
    %c0_53 = arith.constant 0 : index
    %91 = vector.load %arg15[%c2_51, %c0_52, %c0_53] : memref<4x8x8xf32, #tpu.memory_space<vmem>>, vector<1x8x8xf32>
    %92 = vector.shape_cast %91 : vector<1x8x8xf32> to vector<8x8xf32>
    %c3_54 = arith.constant 3 : index
    %c0_55 = arith.constant 0 : index
    %c0_56 = arith.constant 0 : index
    %93 = vector.load %arg15[%c3_54, %c0_55, %c0_56] : memref<4x8x8xf32, #tpu.memory_space<vmem>>, vector<1x8x8xf32>
    %94 = vector.shape_cast %93 : vector<1x8x8xf32> to vector<8x8xf32>
    %95 = tpu.concatenate %88, %90, %92, %94 in 1 : vector<8x8xf32>, vector<8x8xf32>, vector<8x8xf32>, vector<8x8xf32> -> vector<8x32xf32>
    %c0_57 = arith.constant 0 : index
    %c0_58 = arith.constant 0 : index
    %96 = vector.load %arg4[%c0_57, %c0_58] : memref<32x32xf32, #tpu.memory_space<vmem>>, vector<32x32xf32>
    %cst_59 = arith.constant dense<0.000000e+00> : vector<8x32xf32>
    %97 = tpu.matmul %95, %96, %cst_59 {dimension_numbers = #tpu.dot_dimension_numbers<[1], [0], [0], [1], [0, 0, 1, 1], [], []>} : vector<8x32xf32>, vector<32x32xf32>, vector<8x32xf32> -> vector<8x32xf32>
    %98 = arith.addf %1, %97 : vector<8x32xf32>
    %cst_60 = arith.constant dense<0.000000e+00> : vector<8xf32>
    %99 = vector.multi_reduction <add>, %98, %cst_60 [1] : vector<8x32xf32> to vector<8xf32>
    %100 = vector.shape_cast %99 : vector<8xf32> to vector<8x1xf32>
    %cst_61 = arith.constant 3.200000e+01 : f32
    %101 = vector.broadcast %cst_61 : f32 to vector<8x1xf32>
    %102 = arith.divf %100, %101 : vector<8x1xf32>
    %103 = vector.broadcast %102 : vector<8x1xf32> to vector<8x32xf32>
    %104 = arith.subf %98, %103 : vector<8x32xf32>
    %105 = arith.mulf %104, %104 : vector<8x32xf32>
    %cst_62 = arith.constant dense<0.000000e+00> : vector<8xf32>
    %106 = vector.multi_reduction <add>, %105, %cst_62 [1] : vector<8x32xf32> to vector<8xf32>
    %107 = vector.shape_cast %106 : vector<8xf32> to vector<8x1xf32>
    %cst_63 = arith.constant 3.200000e+01 : f32
    %108 = vector.broadcast %cst_63 : f32 to vector<8x1xf32>
    %109 = arith.divf %107, %108 : vector<8x1xf32>
    %110 = vector.broadcast %102 : vector<8x1xf32> to vector<8x32xf32>
    %111 = arith.subf %98, %110 : vector<8x32xf32>
    %cst_64 = arith.constant 9.99999974E-6 : f32
    %112 = vector.broadcast %cst_64 : f32 to vector<8x1xf32>
    %113 = arith.addf %109, %112 : vector<8x1xf32>
    %114 = math.rsqrt %113 : vector<8x1xf32>
    %115 = vector.broadcast %114 : vector<8x1xf32> to vector<8x32xf32>
    %116 = arith.mulf %111, %115 : vector<8x32xf32>
    %c0_65 = arith.constant 0 : index
    %c0_66 = arith.constant 0 : index
    %117 = vector.load %arg7[%c0_65, %c0_66] : memref<1x32xf32, #tpu.memory_space<vmem>>, vector<1x32xf32>
    %118 = vector.shape_cast %117 : vector<1x32xf32> to vector<32xf32>
    %119 = vector.shape_cast %118 : vector<32xf32> to vector<1x32xf32>
    %120 = vector.broadcast %119 : vector<1x32xf32> to vector<8x32xf32>
    %121 = arith.mulf %116, %120 : vector<8x32xf32>
    %c0_67 = arith.constant 0 : index
    %c0_68 = arith.constant 0 : index
    %122 = vector.load %arg8[%c0_67, %c0_68] : memref<1x32xf32, #tpu.memory_space<vmem>>, vector<1x32xf32>
    %123 = vector.shape_cast %122 : vector<1x32xf32> to vector<32xf32>
    %124 = vector.shape_cast %123 : vector<32xf32> to vector<1x32xf32>
    %125 = vector.broadcast %124 : vector<1x32xf32> to vector<8x32xf32>
    %126 = arith.addf %121, %125 : vector<8x32xf32>
    %c0_69 = arith.constant 0 : index
    %c0_70 = arith.constant 0 : index
    %127 = vector.load %arg9[%c0_69, %c0_70] : memref<32x128xf32, #tpu.memory_space<vmem>>, vector<32x128xf32>
    %cst_71 = arith.constant dense<0.000000e+00> : vector<8x128xf32>
    %128 = tpu.matmul %126, %127, %cst_71 {dimension_numbers = #tpu.dot_dimension_numbers<[1], [0], [0], [1], [0, 0, 1, 1], [], []>} : vector<8x32xf32>, vector<32x128xf32>, vector<8x128xf32> -> vector<8x128xf32>
    %c0_72 = arith.constant 0 : index
    %c0_73 = arith.constant 0 : index
    %129 = vector.load %arg10[%c0_72, %c0_73] : memref<1x128xf32, #tpu.memory_space<vmem>>, vector<1x128xf32>
    %130 = vector.shape_cast %129 : vector<1x128xf32> to vector<128xf32>
    %131 = vector.shape_cast %130 : vector<128xf32> to vector<1x128xf32>
    %132 = vector.broadcast %131 : vector<1x128xf32> to vector<8x128xf32>
    %133 = arith.addf %128, %132 : vector<8x128xf32>
    %cst_74 = arith.constant 0.000000e+00 : f32
    %134 = vector.broadcast %cst_74 : f32 to vector<8x128xf32>
    %135 = arith.maximumf %133, %134 : vector<8x128xf32>
    %c0_75 = arith.constant 0 : index
    %c0_76 = arith.constant 0 : index
    %136 = vector.load %arg11[%c0_75, %c0_76] : memref<128x32xf32, #tpu.memory_space<vmem>>, vector<128x32xf32>
    %cst_77 = arith.constant dense<0.000000e+00> : vector<8x32xf32>
    %137 = tpu.matmul %135, %136, %cst_77 {dimension_numbers = #tpu.dot_dimension_numbers<[1], [0], [0], [1], [0, 0, 1, 1], [], []>} : vector<8x128xf32>, vector<128x32xf32>, vector<8x32xf32> -> vector<8x32xf32>
    %c0_78 = arith.constant 0 : index
    %c0_79 = arith.constant 0 : index
    %138 = vector.load %arg12[%c0_78, %c0_79] : memref<1x32xf32, #tpu.memory_space<vmem>>, vector<1x32xf32>
    %139 = vector.shape_cast %138 : vector<1x32xf32> to vector<32xf32>
    %140 = vector.shape_cast %139 : vector<32xf32> to vector<1x32xf32>
    %141 = vector.broadcast %140 : vector<1x32xf32> to vector<8x32xf32>
    %142 = arith.addf %137, %141 : vector<8x32xf32>
    %143 = arith.addf %98, %142 : vector<8x32xf32>
    %144 = vector.shape_cast %143 : vector<8x32xf32> to vector<1x8x32xf32>
    %c0_80 = arith.constant 0 : index
    %c0_81 = arith.constant 0 : index
    %c0_82 = arith.constant 0 : index
    %145 = vector.load %arg13[%c0_80, %c0_81, %c0_82] : memref<1x8x32xf32, #tpu.memory_space<vmem>>, vector<1x8x32xf32>
    tpu.vector_store %arg13[%c0_80, %c0_81, %c0_82], %144 {strides = array<i32>} : memref<1x8x32xf32, #tpu.memory_space<vmem>>, vector<1x8x32xf32>,
    return
  }
  func.func @transform_0(%arg0: i32) -> (i32, i32, i32) {
    %c0_i32 = arith.constant 0 : i32
    %c0_i32_0 = arith.constant 0 : i32
    %c0_i32_1 = arith.constant 0 : i32
    return %arg0, %c0_i32, %c0_i32_0 : i32, i32, i32
  }
  func.func @transform_1(%arg0: i32) -> (i32, i32, i32) {
    %c0_i32 = arith.constant 0 : i32
    %c0_i32_0 = arith.constant 0 : i32
    %c0_i32_1 = arith.constant 0 : i32
    return %arg0, %c0_i32, %c0_i32_0 : i32, i32, i32
  }
  func.func @transform_2(%arg0: i32) -> (i32, i32) {
    %c0_i32 = arith.constant 0 : i32
    %c0_i32_0 = arith.constant 0 : i32
    %c0_i32_1 = arith.constant 0 : i32
    return %c0_i32, %c0_i32_0 : i32, i32
  }
  func.func @transform_3(%arg0: i32) -> (i32, i32) {
    %c0_i32 = arith.constant 0 : i32
    %c0_i32_0 = arith.constant 0 : i32
    %c0_i32_1 = arith.constant 0 : i32
    return %c0_i32, %c0_i32_0 : i32, i32
  }
  func.func @transform_4(%arg0: i32) -> (i32, i32) {
    %c0_i32 = arith.constant 0 : i32
    %c0_i32_0 = arith.constant 0 : i32
    %c0_i32_1 = arith.constant 0 : i32
    return %c0_i32, %c0_i32_0 : i32, i32
  }
  func.func @transform_5(%arg0: i32) -> (i32, i32) {
    %c0_i32 = arith.constant 0 : i32
    %c0_i32_0 = arith.constant 0 : i32
    %c0_i32_1 = arith.constant 0 : i32
    return %c0_i32, %c0_i32_0 : i32, i32
  }
  func.func @transform_6(%arg0: i32) -> (i32, i32) {
    %c0_i32 = arith.constant 0 : i32
    %c0_i32_0 = arith.constant 0 : i32
    %c0_i32_1 = arith.constant 0 : i32
    return %c0_i32, %c0_i32_0 : i32, i32
  }
  func.func @transform_7(%arg0: i32) -> (i32, i32) {
    %c0_i32 = arith.constant 0 : i32
    %c0_i32_0 = arith.constant 0 : i32
    %c0_i32_1 = arith.constant 0 : i32
    return %c0_i32, %c0_i32_0 : i32, i32
  }
  func.func @transform_8(%arg0: i32) -> (i32, i32) {
    %c0_i32 = arith.constant 0 : i32
    %c0_i32_0 = arith.constant 0 : i32
    %c0_i32_1 = arith.constant 0 : i32
    return %c0_i32, %c0_i32_0 : i32, i32
  }
  func.func @transform_9(%arg0: i32) -> (i32, i32) {
    %c0_i32 = arith.constant 0 : i32
    %c0_i32_0 = arith.constant 0 : i32
    %c0_i32_1 = arith.constant 0 : i32
    return %c0_i32, %c0_i32_0 : i32, i32
  }
  func.func @transform_10(%arg0: i32) -> (i32, i32) {
    %c0_i32 = arith.constant 0 : i32
    %c0_i32_0 = arith.constant 0 : i32
    %c0_i32_1 = arith.constant 0 : i32
    return %c0_i32, %c0_i32_0 : i32, i32
  }
  func.func @transform_11(%arg0: i32) -> (i32, i32) {
    %c0_i32 = arith.constant 0 : i32
    %c0_i32_0 = arith.constant 0 : i32
    %c0_i32_1 = arith.constant 0 : i32
    return %c0_i32, %c0_i32_0 : i32, i32
  }
  func.func @transform_12(%arg0: i32) -> (i32, i32, i32) {
    %c0_i32 = arith.constant 0 : i32
    %c0_i32_0 = arith.constant 0 : i32
    %c0_i32_1 = arith.constant 0 : i32
    return %arg0, %c0_i32, %c0_i32_0 : i32, i32, i32
  }
}

module attributes {stable_mosaic.version = 11 : i64} {
  func.func @_encoder_block_kernel(%arg0: i32, %arg1: memref<1x8x32xf32, #tpu.memory_space<vmem>>, %arg2: memref<1x1x8xi32, #tpu.memory_space<vmem>>, %arg3: memref<32x96xf32, #tpu.memory_space<vmem>>, %arg4: memref<32x32xf32, #tpu.memory_space<vmem>>, %arg5: memref<1x32xf32, #tpu.memory_space<vmem>>, %arg6: memref<1x32xf32, #tpu.memory_space<vmem>>, %arg7: memref<1x32xf32, #tpu.memory_space<vmem>>, %arg8: memref<1x32xf32, #tpu.memory_space<vmem>>, %arg9: memref<32x128xf32, #tpu.memory_space<vmem>>, %arg10: memref<1x128xf32, #tpu.memory_space<vmem>>, %arg11: memref<128x32xf32, #tpu.memory_space<vmem>>, %arg12: memref<1x32xf32, #tpu.memory_space<vmem>>, %arg13: memref<1x8x32xf32, #tpu.memory_space<vmem>>, %arg14: memref<12x8x8xf32, #tpu.memory_space<vmem>>, %arg15: memref<4x8x8xf32, #tpu.memory_space<vmem>>) attributes {dimension_semantics = [#tpu.dimension_semantics<parallel>], iteration_bounds = array<i64: 2>, scalar_prefetch = 0 : i64, scratch_operands = 2 : i64, tpu.core_type = #tpu.core_type<tc>, window_params = [{transform_indices = @transform_0, window_bounds = array<i64: 1, 8, 32>}, {transform_indices = @transform_1, window_bounds = array<i64: 1, 1, 8>}, {pipeline_mode = #tpu.pipeline_mode<synchronous>, transform_indices = @transform_2, window_bounds = array<i64: 32, 96>}, {pipeline_mode = #tpu.pipeline_mode<synchronous>, transform_indices = @transform_3, window_bounds = array<i64: 32, 32>}, {pipeline_mode = #tpu.pipeline_mode<synchronous>, transform_indices = @transform_4, window_bounds = array<i64: 1, 32>}, {pipeline_mode = #tpu.pipeline_mode<synchronous>, transform_indices = @transform_5, window_bounds = array<i64: 1, 32>}, {pipeline_mode = #tpu.pipeline_mode<synchronous>, transform_indices = @transform_6, window_bounds = array<i64: 1, 32>}, {pipeline_mode = #tpu.pipeline_mode<synchronous>, transform_indices = @transform_7, window_bounds = array<i64: 1, 32>}, {pipeline_mode = #tpu.pipeline_mode<synchronous>, transform_indices = @transform_8, window_bounds = array<i64: 32, 128>}, {pipeline_mode = #tpu.pipeline_mode<synchronous>, transform_indices = @transform_9, window_bounds = array<i64: 1, 128>}, {pipeline_mode = #tpu.pipeline_mode<synchronous>, transform_indices = @transform_10, window_bounds = array<i64: 128, 32>}, {pipeline_mode = #tpu.pipeline_mode<synchronous>, transform_indices = @transform_11, window_bounds = array<i64: 1, 32>}, {transform_indices = @transform_12, window_bounds = array<i64: 1, 8, 32>}]} {
    %c0 = arith.constant 0 : index
    %c0_0 = arith.constant 0 : index
    %c0_1 = arith.constant 0 : index
    %0 = vector.load %arg1[%c0, %c0_0, %c0_1] : memref<1x8x32xf32, #tpu.memory_space<vmem>>, vector<1x8x32xf32>
    %1 = vector.shape_cast %0 : vector<1x8x32xf32> to vector<8x32xf32>
    %c0_2 = arith.constant 0 : index
    %c0_3 = arith.constant 0 : index
    %c0_4 = arith.constant 0 : index
    %2 = vector.load %arg2[%c0_2, %c0_3, %c0_4] : memref<1x1x8xi32, #tpu.memory_space<vmem>>, vector<1x1x8xi32>
    %c0_i32 = arith.constant 0 : i32
    %3 = vector.broadcast %c0_i32 : i32 to vector<1x1x8xi32>
    %4 = arith.cmpi sgt, %2, %3 : vector<1x1x8xi32>
    %cst = arith.constant -1.000000e+30 : f32
    %cst_5 = arith.constant 0.000000e+00 : f32
    %5 = vector.broadcast %cst : f32 to vector<1x1x8xf32>
    %6 = vector.broadcast %cst_5 : f32 to vector<1x1x8xf32>
    %7 = arith.select %4, %5, %6 : vector<1x1x8xi1>, vector<1x1x8xf32>
    %cst_6 = arith.constant dense<0.000000e+00> : vector<8xf32>
    %8 = vector.multi_reduction <add>, %1, %cst_6 [1] : vector<8x32xf32> to vector<8xf32>
    %9 = vector.shape_cast %8 : vector<8xf32> to vector<8x1xf32>
    %cst_7 = arith.constant 3.200000e+01 : f32
    %10 = vector.broadcast %cst_7 : f32 to vector<8x1xf32>
    %11 = arith.divf %9, %10 : vector<8x1xf32>
    %12 = vector.broadcast %11 : vector<8x1xf32> to vector<8x32xf32>
    %13 = arith.subf %1, %12 : vector<8x32xf32>
    %14 = arith.mulf %13, %13 : vector<8x32xf32>
    %cst_8 = arith.constant dense<0.000000e+00> : vector<8xf32>
    %15 = vector.multi_reduction <add>, %14, %cst_8 [1] : vector<8x32xf32> to vector<8xf32>
    %16 = vector.shape_cast %15 : vector<8xf32> to vector<8x1xf32>
    %cst_9 = arith.constant 3.200000e+01 : f32
    %17 = vector.broadcast %cst_9 : f32 to vector<8x1xf32>
    %18 = arith.divf %16, %17 : vector<8x1xf32>
    %19 = vector.broadcast %11 : vector<8x1xf32> to vector<8x32xf32>
    %20 = arith.subf %1, %19 : vector<8x32xf32>
    %cst_10 = arith.constant 9.99999974E-6 : f32
    %21 = vector.broadcast %cst_10 : f32 to vector<8x1xf32>
    %22 = arith.addf %18, %21 : vector<8x1xf32>
    %23 = math.rsqrt %22 : vector<8x1xf32>
    %24 = vector.broadcast %23 : vector<8x1xf32> to vector<8x32xf32>
    %25 = arith.mulf %20, %24 : vector<8x32xf32>
    %c0_11 = arith.constant 0 : index
    %c0_12 = arith.constant 0 : index
    %26 = vector.load %arg5[%c0_11, %c0_12] : memref<1x32xf32, #tpu.memory_space<vmem>>, vector<1x32xf32>
    %27 = vector.shape_cast %26 : vector<1x32xf32> to vector<32xf32>
    %28 = vector.shape_cast %27 : vector<32xf32> to vector<1x32xf32>
    %29 = vector.broadcast %28 : vector<1x32xf32> to vector<8x32xf32>
    %30 = arith.mulf %25, %29 : vector<8x32xf32>
    %c0_13 = arith.constant 0 : index
    %c0_14 = arith.constant 0 : index
    %31 = vector.load %arg6[%c0_13, %c0_14] : memref<1x32xf32, #tpu.memory_space<vmem>>, vector<1x32xf32>
    %32 = vector.shape_cast %31 : vector<1x32xf32> to vector<32xf32>
    %33 = vector.shape_cast %32 : vector<32xf32> to vector<1x32xf32>
    %34 = vector.broadcast %33 : vector<1x32xf32> to vector<8x32xf32>
    %35 = arith.addf %30, %34 : vector<8x32xf32>
    %c0_15 = arith.constant 0 : index
    %c0_16 = arith.constant 0 : index
    %36 = vector.load %arg3[%c0_15, %c0_16] : memref<32x96xf32, #tpu.memory_space<vmem>>, vector<32x96xf32>
    %cst_17 = arith.constant dense<0.000000e+00> : vector<8x96xf32>
    %37 = tpu.matmul %35, %36, %cst_17 {dimension_numbers = #tpu.dot_dimension_numbers<[1], [0], [0], [1], [0, 0, 1, 1], [], []>} : vector<8x32xf32>, vector<32x96xf32>, vector<8x96xf32> -> vector<8x96xf32>
    %38 = vector.extract_strided_slice %37 {offsets = [0, 0], sizes = [8, 8], strides = [1, 1]} : vector<8x96xf32> to vector<8x8xf32>
    %c0_18 = arith.constant 0 : index
    %c0_19 = arith.constant 0 : index
    %c0_20 = arith.constant 0 : index
    %39 = vector.load %arg14[%c0_18, %c0_19, %c0_20] : memref<12x8x8xf32, #tpu.memory_space<vmem>>, vector<1x8x8xf32>
    %40 = vector.shape_cast %39 : vector<1x8x8xf32> to vector<8x8xf32>
    %41 = vector.shape_cast %38 : vector<8x8xf32> to vector<1x8x8xf32>
    tpu.vector_store %arg14[%c0_18, %c0_19, %c0_20], %41 {strides = array<i32>} : memref<12x8x8xf32, #tpu.memory_space<vmem>>, vector<1x8x8xf32>,
    %42 = vector.extract_strided_slice %37 {offsets = [0, 8], sizes = [8, 8], strides = [1, 1]} : vector<8x96xf32> to vector<8x8xf32>
    %c1 = arith.constant 1 : index
    %c0_21 = arith.constant 0 : index
    %c0_22 = arith.constant 0 : index
    %43 = vector.load %arg14[%c1, %c0_21, %c0_22] : memref<12x8x8xf32, #tpu.memory_space<vmem>>, vector<1x8x8xf32>
    %44 = vector.shape_cast %43 : vector<1x8x8xf32> to vector<8x8xf32>
    %45 = vector.shape_cast %42 : vector<8x8xf32> to vector<1x8x8xf32>
    tpu.vector_store %arg14[%c1, %c0_21, %c0_22], %45 {strides = array<i32>} : memref<12x8x8xf32, #tpu.memory_space<vmem>>, vector<1x8x8xf32>,
    %46 = vector.extract_strided_slice %37 {offsets = [0, 16], sizes = [8, 8], strides = [1, 1]} : vector<8x96xf32> to vector<8x8xf32>
    %c2 = arith.constant 2 : index
    %c0_23 = arith.constant 0 : index
    %c0_24 = arith.constant 0 : index
    %47 = vector.load %arg14[%c2, %c0_23, %c0_24] : memref<12x8x8xf32, #tpu.memory_space<vmem>>, vector<1x8x8xf32>
    %48 = vector.shape_cast %47 : vector<1x8x8xf32> to vector<8x8xf32>
    %49 = vector.shape_cast %46 : vector<8x8xf32> to vector<1x8x8xf32>
    tpu.vector_store %arg14[%c2, %c0_23, %c0_24], %49 {strides = array<i32>} : memref<12x8x8xf32, #tpu.memory_space<vmem>>, vector<1x8x8xf32>,
    %50 = vector.extract_strided_slice %37 {offsets = [0, 24], sizes = [8, 8], strides = [1, 1]} : vector<8x96xf32> to vector<8x8xf32>
    %c3 = arith.constant 3 : index
    %c0_25 = arith.constant 0 : index
    %c0_26 = arith.constant 0 : index
    %51 = vector.load %arg14[%c3, %c0_25, %c0_26] : memref<12x8x8xf32, #tpu.memory_space<vmem>>, vector<1x8x8xf32>
    %52 = vector.shape_cast %51 : vector<1x8x8xf32> to vector<8x8xf32>
    %53 = vector.shape_cast %50 : vector<8x8xf32> to vector<1x8x8xf32>
    tpu.vector_store %arg14[%c3, %c0_25, %c0_26], %53 {strides = array<i32>} : memref<12x8x8xf32, #tpu.memory_space<vmem>>, vector<1x8x8xf32>,
    %54 = vector.extract_strided_slice %37 {offsets = [0, 32], sizes = [8, 8], strides = [1, 1]} : vector<8x96xf32> to vector<8x8xf32>
    %c4 = arith.constant 4 : index
    %c0_27 = arith.constant 0 : index
    %c0_28 = arith.constant 0 : index
    %55 = vector.load %arg14[%c4, %c0_27, %c0_28] : memref<12x8x8xf32, #tpu.memory_space<vmem>>, vector<1x8x8xf32>
    %56 = vector.shape_cast %55 : vector<1x8x8xf32> to vector<8x8xf32>
    %57 = vector.shape_cast %54 : vector<8x8xf32> to vector<1x8x8xf32>
    tpu.vector_store %arg14[%c4, %c0_27, %c0_28], %57 {strides = array<i32>} : memref<12x8x8xf32, #tpu.memory_space<vmem>>, vector<1x8x8xf32>,
    %58 = vector.extract_strided_slice %37 {offsets = [0, 40], sizes = [8, 8], strides = [1, 1]} : vector<8x96xf32> to vector<8x8xf32>
    %c5 = arith.constant 5 : index
    %c0_29 = arith.constant 0 : index
    %c0_30 = arith.constant 0 : index
    %59 = vector.load %arg14[%c5, %c0_29, %c0_30] : memref<12x8x8xf32, #tpu.memory_space<vmem>>, vector<1x8x8xf32>
    %60 = vector.shape_cast %59 : vector<1x8x8xf32> to vector<8x8xf32>
    %61 = vector.shape_cast %58 : vector<8x8xf32> to vector<1x8x8xf32>
    tpu.vector_store %arg14[%c5, %c0_29, %c0_30], %61 {strides = array<i32>} : memref<12x8x8xf32, #tpu.memory_space<vmem>>, vector<1x8x8xf32>,
    %62 = vector.extract_strided_slice %37 {offsets = [0, 48], sizes = [8, 8], strides = [1, 1]} : vector<8x96xf32> to vector<8x8xf32>
    %c6 = arith.constant 6 : index
    %c0_31 = arith.constant 0 : index
    %c0_32 = arith.constant 0 : index
    %63 = vector.load %arg14[%c6, %c0_31, %c0_32] : memref<12x8x8xf32, #tpu.memory_space<vmem>>, vector<1x8x8xf32>
    %64 = vector.shape_cast %63 : vector<1x8x8xf32> to vector<8x8xf32>
    %65 = vector.shape_cast %62 : vector<8x8xf32> to vector<1x8x8xf32>
    tpu.vector_store %arg14[%c6, %c0_31, %c0_32], %65 {strides = array<i32>} : memref<12x8x8xf32, #tpu.memory_space<vmem>>, vector<1x8x8xf32>,
    %66 = vector.extract_strided_slice %37 {offsets = [0, 56], sizes = [8, 8], strides = [1, 1]} : vector<8x96xf32> to vector<8x8xf32>
    %c7 = arith.constant 7 : index
    %c0_33 = arith.constant 0 : index
    %c0_34 = arith.constant 0 : index
    %67 = vector.load %arg14[%c7, %c0_33, %c0_34] : memref<12x8x8xf32, #tpu.memory_space<vmem>>, vector<1x8x8xf32>
    %68 = vector.shape_cast %67 : vector<1x8x8xf32> to vector<8x8xf32>
    %69 = vector.shape_cast %66 : vector<8x8xf32> to vector<1x8x8xf32>
    tpu.vector_store %arg14[%c7, %c0_33, %c0_34], %69 {strides = array<i32>} : memref<12x8x8xf32, #tpu.memory_space<vmem>>, vector<1x8x8xf32>,
    %70 = vector.extract_strided_slice %37 {offsets = [0, 64], sizes = [8, 8], strides = [1, 1]} : vector<8x96xf32> to vector<8x8xf32>
    %c8 = arith.constant 8 : index
    %c0_35 = arith.constant 0 : index
    %c0_36 = arith.constant 0 : index
    %71 = vector.load %arg14[%c8, %c0_35, %c0_36] : memref<12x8x8xf32, #tpu.memory_space<vmem>>, vector<1x8x8xf32>
    %72 = vector.shape_cast %71 : vector<1x8x8xf32> to vector<8x8xf32>
    %73 = vector.shape_cast %70 : vector<8x8xf32> to vector<1x8x8xf32>
    tpu.vector_store %arg14[%c8, %c0_35, %c0_36], %73 {strides = array<i32>} : memref<12x8x8xf32, #tpu.memory_space<vmem>>, vector<1x8x8xf32>,
    %74 = vector.extract_strided_slice %37 {offsets = [0, 72], sizes = [8, 8], strides = [1, 1]} : vector<8x96xf32> to vector<8x8xf32>
    %c9 = arith.constant 9 : index
    %c0_37 = arith.constant 0 : index
    %c0_38 = arith.constant 0 : index
    %75 = vector.load %arg14[%c9, %c0_37, %c0_38] : memref<12x8x8xf32, #tpu.memory_space<vmem>>, vector<1x8x8xf32>
    %76 = vector.shape_cast %75 : vector<1x8x8xf32> to vector<8x8xf32>
    %77 = vector.shape_cast %74 : vector<8x8xf32> to vector<1x8x8xf32>
    tpu.vector_store %arg14[%c9, %c0_37, %c0_38], %77 {strides = array<i32>} : memref<12x8x8xf32, #tpu.memory_space<vmem>>, vector<1x8x8xf32>,
    %78 = vector.extract_strided_slice %37 {offsets = [0, 80], sizes = [8, 8], strides = [1, 1]} : vector<8x96xf32> to vector<8x8xf32>
    %c10 = arith.constant 10 : index
    %c0_39 = arith.constant 0 : index
    %c0_40 = arith.constant 0 : index
    %79 = vector.load %arg14[%c10, %c0_39, %c0_40] : memref<12x8x8xf32, #tpu.memory_space<vmem>>, vector<1x8x8xf32>
    %80 = vector.shape_cast %79 : vector<1x8x8xf32> to vector<8x8xf32>
    %81 = vector.shape_cast %78 : vector<8x8xf32> to vector<1x8x8xf32>
    tpu.vector_store %arg14[%c10, %c0_39, %c0_40], %81 {strides = array<i32>} : memref<12x8x8xf32, #tpu.memory_space<vmem>>, vector<1x8x8xf32>,
    %82 = vector.extract_strided_slice %37 {offsets = [0, 88], sizes = [8, 8], strides = [1, 1]} : vector<8x96xf32> to vector<8x8xf32>
    %c11 = arith.constant 11 : index
    %c0_41 = arith.constant 0 : index
    %c0_42 = arith.constant 0 : index
    %83 = vector.load %arg14[%c11, %c0_41, %c0_42] : memref<12x8x8xf32, #tpu.memory_space<vmem>>, vector<1x8x8xf32>
    %84 = vector.shape_cast %83 : vector<1x8x8xf32> to vector<8x8xf32>
    %85 = vector.shape_cast %82 : vector<8x8xf32> to vector<1x8x8xf32>
    tpu.vector_store %arg14[%c11, %c0_41, %c0_42], %85 {strides = array<i32>} : memref<12x8x8xf32, #tpu.memory_space<vmem>>, vector<1x8x8xf32>,
    %c0_i32_43 = arith.constant 0 : i32
    %c4_i32 = arith.constant 4 : i32
    %86 = arith.addi %c0_i32_43, %c4_i32 : i32
    %c1_i32 = arith.constant 1 : i32
    scf.for %arg16 = %c0_i32_43 to %86 step %c1_i32  : i32 {
      %146 = arith.index_cast %arg16 : i32 to index
      %c0_83 = arith.constant 0 : index
      %c0_84 = arith.constant 0 : index
      %147 = vector.load %arg14[%146, %c0_83, %c0_84] : memref<12x8x8xf32, #tpu.memory_space<vmem>>, vector<1x8x8xf32>
      %148 = vector.shape_cast %147 : vector<1x8x8xf32> to vector<8x8xf32>
      %149 = vector.shape_cast %148 : vector<8x8xf32> to vector<1x8x8xf32>
      %c4_i32_85 = arith.constant 4 : i32
      %150 = arith.addi %c4_i32_85, %arg16 : i32
      %151 = arith.index_cast %150 : i32 to index
      %c0_86 = arith.constant 0 : index
      %c0_87 = arith.constant 0 : index
      %152 = vector.load %arg14[%151, %c0_86, %c0_87] : memref<12x8x8xf32, #tpu.memory_space<vmem>>, vector<1x8x8xf32>
      %153 = vector.shape_cast %152 : vector<1x8x8xf32> to vector<8x8xf32>
      %154 = vector.shape_cast %153 : vector<8x8xf32> to vector<1x8x8xf32>
      %c8_i32 = arith.constant 8 : i32
      %155 = arith.addi %c8_i32, %arg16 : i32
      %156 = arith.index_cast %155 : i32 to index
      %c0_88 = arith.constant 0 : index
      %c0_89 = arith.constant 0 : index
      %157 = vector.load %arg14[%156, %c0_88, %c0_89] : memref<12x8x8xf32, #tpu.memory_space<vmem>>, vector<1x8x8xf32>
      %158 = vector.shape_cast %157 : vector<1x8x8xf32> to vector<8x8xf32>
      %159 = vector.shape_cast %158 : vector<8x8xf32> to vector<1x8x8xf32>
      %cst_90 = arith.constant dense<0.000000e+00> : vector<1x8x8xf32>
      %160 = tpu.matmul %149, %154, %cst_90 {dimension_numbers = #tpu.dot_dimension_numbers<[2], [2], [1], [1], [0, 0, 0, 1, 1, 1], [0], [0]>} : vector<1x8x8xf32>, vector<1x8x8xf32>, vector<1x8x8xf32> -> vector<1x8x8xf32>
      %161 = vector.broadcast %7 : vector<1x1x8xf32> to vector<1x8x8xf32>
      %162 = arith.addf %160, %161 : vector<1x8x8xf32>
      %cst_91 = arith.constant dense<0xFF800000> : vector<1x8xf32>
      %163 = vector.multi_reduction <maximumf>, %162, %cst_91 [2] : vector<1x8x8xf32> to vector<1x8xf32>
      %164 = vector.shape_cast %163 : vector<1x8xf32> to vector<1x8x1xf32>
      %165 = vector.broadcast %164 : vector<1x8x1xf32> to vector<1x8x8xf32>
      %166 = arith.subf %162, %165 : vector<1x8x8xf32>
      %167 = math.exp %166 : vector<1x8x8xf32>
      %cst_92 = arith.constant dense<0.000000e+00> : vector<1x8xf32>
      %168 = vector.multi_reduction <add>, %167, %cst_92 [2] : vector<1x8x8xf32> to vector<1x8xf32>
      %169 = vector.shape_cast %168 : vector<1x8xf32> to vector<1x8x1xf32>
      %170 = tpu.reciprocal %169 {approx = true} : vector<1x8x1xf32> -> vector<1x8x1xf32>
      %171 = vector.broadcast %170 : vector<1x8x1xf32> to vector<1x8x8xf32>
      %172 = arith.mulf %167, %171 : vector<1x8x8xf32>
      %cst_93 = arith.constant dense<0.000000e+00> : vector<1x8x8xf32>
      %173 = tpu.matmul %172, %159, %cst_93 {dimension_numbers = #tpu.dot_dimension_numbers<[2], [1], [1], [2], [0, 0, 0, 1, 1, 2], [0], [0]>} : vector<1x8x8xf32>, vector<1x8x8xf32>, vector<1x8x8xf32> -> vector<1x8x8xf32>
      %174 = vector.shape_cast %173 : vector<1x8x8xf32> to vector<8x8xf32>
      %175 = arith.index_cast %arg16 : i32 to index
      %c0_94 = arith.constant 0 : index
      %c0_95 = arith.constant 0 : index
      %176 = vector.load %arg15[%175, %c0_94, %c0_95] : memref<4x8x8xf32, #tpu.memory_space<vmem>>, vector<1x8x8xf32>
      %177 = vector.shape_cast %176 : vector<1x8x8xf32> to vector<8x8xf32>
      %178 = vector.shape_cast %174 : vector<8x8xf32> to vector<1x8x8xf32>
      tpu.vector_store %arg15[%175, %c0_94, %c0_95], %178 {strides = array<i32>} : memref<4x8x8xf32, #tpu.memory_space<vmem>>, vector<1x8x8xf32>,
    }
    %c4_i32_44 = arith.constant 4 : i32
    %c0_45 = arith.constant 0 : index
    %c0_46 = arith.constant 0 : index
    %c0_47 = arith.constant 0 : index
    %87 = vector.load %arg15[%c0_45, %c0_46, %c0_47] : memref<4x8x8xf32, #tpu.memory_space<vmem>>, vector<1x8x8xf32>
    %88 = vector.shape_cast %87 : vector<1x8x8xf32> to vector<8x8xf32>
    %c1_48 = arith.constant 1 : index
    %c0_49 = arith.constant 0 : index
    %c0_50 = arith.constant 0 : index
    %89 = vector.load %arg15[%c1_48, %c0_49, %c0_50] : memref<4x8x8xf32, #tpu.memory_space<vmem>>, vector<1x8x8xf32>
    %90 = vector.shape_cast %89 : vector<1x8x8xf32> to vector<8x8xf32>
    %c2_51 = arith.constant 2 : index
    %c0_52 = arith.constant 0 : index
    %c0_53 = arith.constant 0 : index
    %91 = vector.load %arg15[%c2_51, %c0_52, %c0_53] : memref<4x8x8xf32, #tpu.memory_space<vmem>>, vector<1x8x8xf32>
    %92 = vector.shape_cast %91 : vector<1x8x8xf32> to vector<8x8xf32>
    %c3_54 = arith.constant 3 : index
    %c0_55 = arith.constant 0 : index
    %c0_56 = arith.constant 0 : index
    %93 = vector.load %arg15[%c3_54, %c0_55, %c0_56] : memref<4x8x8xf32, #tpu.memory_space<vmem>>, vector<1x8x8xf32>
    %94 = vector.shape_cast %93 : vector<1x8x8xf32> to vector<8x8xf32>
    %95 = tpu.concatenate %88, %90, %92, %94 in 1 : vector<8x8xf32>, vector<8x8xf32>, vector<8x8xf32>, vector<8x8xf32> -> vector<8x32xf32>
    %c0_57 = arith.constant 0 : index
    %c0_58 = arith.constant 0 : index
    %96 = vector.load %arg4[%c0_57, %c0_58] : memref<32x32xf32, #tpu.memory_space<vmem>>, vector<32x32xf32>
    %cst_59 = arith.constant dense<0.000000e+00> : vector<8x32xf32>
    %97 = tpu.matmul %95, %96, %cst_59 {dimension_numbers = #tpu.dot_dimension_numbers<[1], [0], [0], [1], [0, 0, 1, 1], [], []>} : vector<8x32xf32>, vector<32x32xf32>, vector<8x32xf32> -> vector<8x32xf32>
    %98 = arith.addf %1, %97 : vector<8x32xf32>
    %cst_60 = arith.constant dense<0.000000e+00> : vector<8xf32>
    %99 = vector.multi_reduction <add>, %98, %cst_60 [1] : vector<8x32xf32> to vector<8xf32>
    %100 = vector.shape_cast %99 : vector<8xf32> to vector<8x1xf32>
    %cst_61 = arith.constant 3.200000e+01 : f32
    %101 = vector.broadcast %cst_61 : f32 to vector<8x1xf32>
    %102 = arith.divf %100, %101 : vector<8x1xf32>
    %103 = vector.broadcast %102 : vector<8x1xf32> to vector<8x32xf32>
    %104 = arith.subf %98, %103 : vector<8x32xf32>
    %105 = arith.mulf %104, %104 : vector<8x32xf32>
    %cst_62 = arith.constant dense<0.000000e+00> : vector<8xf32>
    %106 = vector.multi_reduction <add>, %105, %cst_62 [1] : vector<8x32xf32> to vector<8xf32>
    %107 = vector.shape_cast %106 : vector<8xf32> to vector<8x1xf32>
    %cst_63 = arith.constant 3.200000e+01 : f32
    %108 = vector.broadcast %cst_63 : f32 to vector<8x1xf32>
    %109 = arith.divf %107, %108 : vector<8x1xf32>
    %110 = vector.broadcast %102 : vector<8x1xf32> to vector<8x32xf32>
    %111 = arith.subf %98, %110 : vector<8x32xf32>
    %cst_64 = arith.constant 9.99999974E-6 : f32
    %112 = vector.broadcast %cst_64 : f32 to vector<8x1xf32>
    %113 = arith.addf %109, %112 : vector<8x1xf32>
    %114 = math.rsqrt %113 : vector<8x1xf32>
    %115 = vector.broadcast %114 : vector<8x1xf32> to vector<8x32xf32>
    %116 = arith.mulf %111, %115 : vector<8x32xf32>
    %c0_65 = arith.constant 0 : index
    %c0_66 = arith.constant 0 : index
    %117 = vector.load %arg7[%c0_65, %c0_66] : memref<1x32xf32, #tpu.memory_space<vmem>>, vector<1x32xf32>
    %118 = vector.shape_cast %117 : vector<1x32xf32> to vector<32xf32>
    %119 = vector.shape_cast %118 : vector<32xf32> to vector<1x32xf32>
    %120 = vector.broadcast %119 : vector<1x32xf32> to vector<8x32xf32>
    %121 = arith.mulf %116, %120 : vector<8x32xf32>
    %c0_67 = arith.constant 0 : index
    %c0_68 = arith.constant 0 : index
    %122 = vector.load %arg8[%c0_67, %c0_68] : memref<1x32xf32, #tpu.memory_space<vmem>>, vector<1x32xf32>
    %123 = vector.shape_cast %122 : vector<1x32xf32> to vector<32xf32>
    %124 = vector.shape_cast %123 : vector<32xf32> to vector<1x32xf32>
    %125 = vector.broadcast %124 : vector<1x32xf32> to vector<8x32xf32>
    %126 = arith.addf %121, %125 : vector<8x32xf32>
    %c0_69 = arith.constant 0 : index
    %c0_70 = arith.constant 0 : index
    %127 = vector.load %arg9[%c0_69, %c0_70] : memref<32x128xf32, #tpu.memory_space<vmem>>, vector<32x128xf32>
    %cst_71 = arith.constant dense<0.000000e+00> : vector<8x128xf32>
    %128 = tpu.matmul %126, %127, %cst_71 {dimension_numbers = #tpu.dot_dimension_numbers<[1], [0], [0], [1], [0, 0, 1, 1], [], []>} : vector<8x32xf32>, vector<32x128xf32>, vector<8x128xf32> -> vector<8x128xf32>
    %c0_72 = arith.constant 0 : index
    %c0_73 = arith.constant 0 : index
    %129 = vector.load %arg10[%c0_72, %c0_73] : memref<1x128xf32, #tpu.memory_space<vmem>>, vector<1x128xf32>
    %130 = vector.shape_cast %129 : vector<1x128xf32> to vector<128xf32>
    %131 = vector.shape_cast %130 : vector<128xf32> to vector<1x128xf32>
    %132 = vector.broadcast %131 : vector<1x128xf32> to vector<8x128xf32>
    %133 = arith.addf %128, %132 : vector<8x128xf32>
    %cst_74 = arith.constant 0.000000e+00 : f32
    %134 = vector.broadcast %cst_74 : f32 to vector<8x128xf32>
    %135 = arith.maximumf %133, %134 : vector<8x128xf32>
    %c0_75 = arith.constant 0 : index
    %c0_76 = arith.constant 0 : index
    %136 = vector.load %arg11[%c0_75, %c0_76] : memref<128x32xf32, #tpu.memory_space<vmem>>, vector<128x32xf32>
    %cst_77 = arith.constant dense<0.000000e+00> : vector<8x32xf32>
    %137 = tpu.matmul %135, %136, %cst_77 {dimension_numbers = #tpu.dot_dimension_numbers<[1], [0], [0], [1], [0, 0, 1, 1], [], []>} : vector<8x128xf32>, vector<128x32xf32>, vector<8x32xf32> -> vector<8x32xf32>
    %c0_78 = arith.constant 0 : index
    %c0_79 = arith.constant 0 : index
    %138 = vector.load %arg12[%c0_78, %c0_79] : memref<1x32xf32, #tpu.memory_space<vmem>>, vector<1x32xf32>
    %139 = vector.shape_cast %138 : vector<1x32xf32> to vector<32xf32>
    %140 = vector.shape_cast %139 : vector<32xf32> to vector<1x32xf32>
    %141 = vector.broadcast %140 : vector<1x32xf32> to vector<8x32xf32>
    %142 = arith.addf %137, %141 : vector<8x32xf32>
    %143 = arith.addf %98, %142 : vector<8x32xf32>
    %144 = vector.shape_cast %143 : vector<8x32xf32> to vector<1x8x32xf32>
    %c0_80 = arith.constant 0 : index
    %c0_81 = arith.constant 0 : index
    %c0_82 = arith.constant 0 : index
    %145 = vector.load %arg13[%c0_80, %c0_81, %c0_82] : memref<1x8x32xf32, #tpu.memory_space<vmem>>, vector<1x8x32xf32>
    tpu.vector_store %arg13[%c0_80, %c0_81, %c0_82], %144 {strides = array<i32>} : memref<1x8x32xf32, #tpu.memory_space<vmem>>, vector<1x8x32xf32>,
    return
  }
  func.func @transform_0(%arg0: i32) -> (i32, i32, i32) {
    %c0_i32 = arith.constant 0 : i32
    %c0_i32_0 = arith.constant 0 : i32
    %c0_i32_1 = arith.constant 0 : i32
    return %arg0, %c0_i32, %c0_i32_0 : i32, i32, i32
  }
  func.func @transform_1(%arg0: i32) -> (i32, i32, i32) {
    %c0_i32 = arith.constant 0 : i32
    %c0_i32_0 = arith.constant 0 : i32
    %c0_i32_1 = arith.constant 0 : i32
    return %arg0, %c0_i32, %c0_i32_0 : i32, i32, i32
  }
  func.func @transform_2(%arg0: i32) -> (i32, i32) {
    %c0_i32 = arith.constant 0 : i32
    %c0_i32_0 = arith.constant 0 : i32
    %c0_i32_1 = arith.constant 0 : i32
    return %c0_i32, %c0_i32_0 : i32, i32
  }
  func.func @transform_3(%arg0: i32) -> (i32, i32) {
    %c0_i32 = arith.constant 0 : i32
    %c0_i32_0 = arith.constant 0 : i32
    %c0_i32_1 = arith.constant 0 : i32
    return %c0_i32, %c0_i32_0 : i32, i32
  }
  func.func @transform_4(%arg0: i32) -> (i32, i32) {
    %c0_i32 = arith.constant 0 : i32
    %c0_i32_0 = arith.constant 0 : i32
    %c0_i32_1 = arith.constant 0 : i32
    return %c0_i32, %c0_i32_0 : i32, i32
  }
  func.func @transform_5(%arg0: i32) -> (i32, i32) {
    %c0_i32 = arith.constant 0 : i32
    %c0_i32_0 = arith.constant 0 : i32
    %c0_i32_1 = arith.constant 0 : i32
    return %c0_i32, %c0_i32_0 : i32, i32
  }
  func.func @transform_6(%arg0: i32) -> (i32, i32) {
    %c0_i32 = arith.constant 0 : i32
    %c0_i32_0 = arith.constant 0 : i32
    %c0_i32_1 = arith.constant 0 : i32
    return %c0_i32, %c0_i32_0 : i32, i32
  }
  func.func @transform_7(%arg0: i32) -> (i32, i32) {
    %c0_i32 = arith.constant 0 : i32
    %c0_i32_0 = arith.constant 0 : i32
    %c0_i32_1 = arith.constant 0 : i32
    return %c0_i32, %c0_i32_0 : i32, i32
  }
  func.func @transform_8(%arg0: i32) -> (i32, i32) {
    %c0_i32 = arith.constant 0 : i32
    %c0_i32_0 = arith.constant 0 : i32
    %c0_i32_1 = arith.constant 0 : i32
    return %c0_i32, %c0_i32_0 : i32, i32
  }
  func.func @transform_9(%arg0: i32) -> (i32, i32) {
    %c0_i32 = arith.constant 0 : i32
    %c0_i32_0 = arith.constant 0 : i32
    %c0_i32_1 = arith.constant 0 : i32
    return %c0_i32, %c0_i32_0 : i32, i32
  }
  func.func @transform_10(%arg0: i32) -> (i32, i32) {
    %c0_i32 = arith.constant 0 : i32
    %c0_i32_0 = arith.constant 0 : i32
    %c0_i32_1 = arith.constant 0 : i32
    return %c0_i32, %c0_i32_0 : i32, i32
  }
  func.func @transform_11(%arg0: i32) -> (i32, i32) {
    %c0_i32 = arith.constant 0 : i32
    %c0_i32_0 = arith.constant 0 : i32
    %c0_i32_1 = arith.constant 0 : i32
    return %c0_i32, %c0_i32_0 : i32, i32
  }
  func.func @transform_12(%arg0: i32) -> (i32, i32, i32) {
    %c0_i32 = arith.constant 0 : i32
    %c0_i32_0 = arith.constant 0 : i32
    %c0_i32_1 = arith.constant 0 : i32
    return %arg0, %c0_i32, %c0_i32_0 : i32, i32, i32
  }
}

</mosaic_0001>

<llo_original>
// kernel: tpu_custom_call.1
$region0: #{tpu_custom_call.1}
  #allocation0 [shape = 'u32[]', space=smem, size = 0x4, offset = 0x4, fixed_abs, tag = 'smem constant byte address 0x4 - core index']
  #allocation1 [shape = 'u32[144,128]{1,0:T(1,128)}', space=vmem, size = 0x12000, scoped, tag = 'internal scratch']
  #allocation2 [shape = 'f32[12,8,8]{2,1,0:T(8,128)}', space=vmem, size = 0xc000, scoped, tag = 'scratch operand']
  #allocation3 [shape = 'f32[4,8,8]{2,1,0:T(8,128)}', space=vmem, size = 0x4000, scoped, tag = 'scratch operand']
  %s0 = inlined_call_operand.vmem [shape: f32[2,8,32], index: 0, kind: input, shape index: {}]
  %s1 = inlined_call_operand.vmem [shape: s32[2,1,8], index: 1, kind: input, shape index: {}]
  %s2 = inlined_call_operand.vmem [shape: f32[32,96], index: 2, kind: input, shape index: {}]
  %s3 = inlined_call_operand.vmem [shape: f32[32,32], index: 3, kind: input, shape index: {}]
  %s4 = inlined_call_operand.vmem [shape: f32[1,32], index: 4, kind: input, shape index: {}]
  %s5 = inlined_call_operand.vmem [shape: f32[1,32], index: 5, kind: input, shape index: {}]
  %s6 = inlined_call_operand.vmem [shape: f32[1,32], index: 6, kind: input, shape index: {}]
  %s7 = inlined_call_operand.vmem [shape: f32[1,32], index: 7, kind: input, shape index: {}]
  %s8 = inlined_call_operand.vmem [shape: f32[32,128], index: 8, kind: input, shape index: {}]
  %s9 = inlined_call_operand.vmem [shape: f32[1,128], index: 9, kind: input, shape index: {}]
  %s10 = inlined_call_operand.vmem [shape: f32[128,32], index: 10, kind: input, shape index: {}]
  %s11 = inlined_call_operand.vmem [shape: f32[1,32], index: 11, kind: input, shape index: {}]
  %s12 = inlined_call_operand.hbm [shape: f32[2,8,32], index: 12, kind: output, shape index: {}]
  %s13 = sld [smem:[#allocation0]]
  $region88: #{tpu_custom_call.1} parent=0
    _
  %s15 = ssub.s32 1, %s13
  %s16 = scalar_select 0, %s15, %s13
  $region1: #{tpu_custom_call.1} parent=0
    #allocation4 [shape = 'u8[8192]{0}', space=vmem, size = 0x2000, scoped, tag = 'output window, operand 0']
    #allocation5 [shape = 's32[2]{0}', space=sflag, size = 0x8, scoped, tag = 'scoped memory for tpu_custom_call.1']
    %17 = vsyncpa [#allocation5], 0
    %s18 = scalar_lea.sflag [#allocation5], 1
    %19 = vsyncpa %s18, 0
    loop: start=0, step=1, limit=4
    $region2: #{tpu_custom_call.1} parent=1 // loop_pre_header
      _
    $region3: #{tpu_custom_call.1} parent=1 // loop_header
      %s21 = sphi 0, %s25
      %p22 = scmp.ge.s32.totalorder %s21, 4
      %s31 = sphi 0, %s33
      %s34 = sphi 0, %s31
      %s35 = sphi 0, %s34
      %s51 = sphi 0, %s35
      %s57 = sphi 0, %s59
      %s60 = sphi 0, %s57
      %s61 = sphi 0, %s60
      %s77 = sphi 0, %s61
      %s81 = sphi 0, %s81
      %s83 = sphi 0, %s81
      %s84 = sphi 0, %s83
      %s98 = sphi 0, %s84
      %s102 = sphi 0, %s102
      %s104 = sphi 0, %s102
      %s105 = sphi 0, %s104
      %s119 = sphi 0, %s105
      %s123 = sphi 0, %s123
      %s125 = sphi 0, %s123
      %s126 = sphi 0, %s125
      %s140 = sphi 0, %s126
      %s144 = sphi 0, %s144
      %s146 = sphi 0, %s144
      %s147 = sphi 0, %s146
      %s161 = sphi 0, %s147
      %s165 = sphi 0, %s165
      %s167 = sphi 0, %s165
      %s168 = sphi 0, %s167
      %s182 = sphi 0, %s168
      %s186 = sphi 0, %s186
      %s188 = sphi 0, %s186
      %s189 = sphi 0, %s188
      %s203 = sphi 0, %s189
      %s207 = sphi 0, %s207
      %s209 = sphi 0, %s207
      %s210 = sphi 0, %s209
      %s224 = sphi 0, %s210
      %s228 = sphi 0, %s228
      %s230 = sphi 0, %s228
      %s231 = sphi 0, %s230
      %s245 = sphi 0, %s231
      %s249 = sphi 0, %s249
      %s251 = sphi 0, %s249
      %s252 = sphi 0, %s251
      %s266 = sphi 0, %s252
      %s270 = sphi 0, %s270
      %s272 = sphi 0, %s270
      %s273 = sphi 0, %s272
      %s287 = sphi 0, %s273
      %s293 = sphi 0, %s295
      %s296 = sphi 0, %s293
      %s297 = sphi 0, %s296
      %s313 = sphi 0, %s297
    $region4: #{tpu_custom_call.1} parent=1 // loop_header_branch
      %24 = sbr.rel (%p22) target = $region8
    $region5: #{tpu_custom_call.1} parent=1 // loop_body
      %s26 = ssub.s32 %s21, 1
      %s27 = ssub.s32 %s21, 2
      %s28 = sadd.s32 %s21, 1
      %s29 = ssub.s32 %s21, %s28
      %p30 = scmp.eq.s32.totalorder %s29, 0
      %s32 = sadd.s32 %s31, 1
      %s33 = scalar_select %p30, %s31, %s32
      %p36 = pneg %p30
      %p37 = scmp.eq.s32.totalorder %s21, 1
      %p38 = por %p36, %p37
      %p39 = scmp.ne.s32.totalorder %s31, %s34
      %p40 = scmp.eq.s32.totalorder %s21, 0
      %p41 = por %p39, %p40
      %p42 = scmp.ne.s32.totalorder %s31, %s34
      %p43 = scmp.eq.s32.totalorder %s26, 1
      %p44 = por %p42, %p43
      %p45 = scmp.ne.s32.totalorder %s34, %s35
      %p46 = scmp.eq.s32.totalorder %s26, 0
      %p47 = por %p45, %p46
      %p48 = scmp.ne.s32.totalorder %s34, %s35
      %p49 = scmp.eq.s32.totalorder %s27, 1
      %p50 = por %p48, %p49
      %p52 = scmp.ne.s32.totalorder %s35, %s51
      %p53 = scmp.eq.s32.totalorder %s27, 0
      %p54 = por %p52, %p53
      %s55 = ssub.s32 %s21, %s28
      %p56 = scmp.eq.s32.totalorder %s55, 0
      %s58 = sadd.s32 %s57, 1
      %s59 = scalar_select %p56, %s57, %s58
      %p62 = pneg %p56
      %p63 = scmp.eq.s32.totalorder %s21, 1
      %p64 = por %p62, %p63
      %p65 = scmp.ne.s32.totalorder %s57, %s60
      %p66 = scmp.eq.s32.totalorder %s21, 0
      %p67 = por %p65, %p66
      %p68 = scmp.ne.s32.totalorder %s57, %s60
      %p69 = scmp.eq.s32.totalorder %s26, 1
      %p70 = por %p68, %p69
      %p71 = scmp.ne.s32.totalorder %s60, %s61
      %p72 = scmp.eq.s32.totalorder %s26, 0
      %p73 = por %p71, %p72
      %p74 = scmp.ne.s32.totalorder %s60, %s61
      %p75 = scmp.eq.s32.totalorder %s27, 1
      %p76 = por %p74, %p75
      %p78 = scmp.ne.s32.totalorder %s61, %s77
      %p79 = scmp.eq.s32.totalorder %s27, 0
      %p80 = por %p78, %p79
      %s82 = sadd.s32 %s81, 1
      %p85 = scmp.eq.s32.totalorder %s21, 1
      %p86 = scmp.ne.s32.totalorder %s81, %s83
      %p87 = scmp.eq.s32.totalorder %s21, 0
      %p88 = por %p86, %p87
      %p89 = scmp.ne.s32.totalorder %s81, %s83
      %p90 = scmp.eq.s32.totalorder %s26, 1
      %p91 = por %p89, %p90
      %p92 = scmp.ne.s32.totalorder %s83, %s84
      %p93 = scmp.eq.s32.totalorder %s26, 0
      %p94 = por %p92, %p93
      %p95 = scmp.ne.s32.totalorder %s83, %s84
      %p96 = scmp.eq.s32.totalorder %s27, 1
      %p97 = por %p95, %p96
      %p99 = scmp.ne.s32.totalorder %s84, %s98
      %p100 = scmp.eq.s32.totalorder %s27, 0
      %p101 = por %p99, %p100
      %s103 = sadd.s32 %s102, 1
      %p106 = scmp.eq.s32.totalorder %s21, 1
      %p107 = scmp.ne.s32.totalorder %s102, %s104
      %p108 = scmp.eq.s32.totalorder %s21, 0
      %p109 = por %p107, %p108
      %p110 = scmp.ne.s32.totalorder %s102, %s104
      %p111 = scmp.eq.s32.totalorder %s26, 1
      %p112 = por %p110, %p111
      %p113 = scmp.ne.s32.totalorder %s104, %s105
      %p114 = scmp.eq.s32.totalorder %s26, 0
      %p115 = por %p113, %p114
      %p116 = scmp.ne.s32.totalorder %s104, %s105
      %p117 = scmp.eq.s32.totalorder %s27, 1
      %p118 = por %p116, %p117
      %p120 = scmp.ne.s32.totalorder %s105, %s119
      %p121 = scmp.eq.s32.totalorder %s27, 0
      %p122 = por %p120, %p121
      %s124 = sadd.s32 %s123, 1
      %p127 = scmp.eq.s32.totalorder %s21, 1
      %p128 = scmp.ne.s32.totalorder %s123, %s125
      %p129 = scmp.eq.s32.totalorder %s21, 0
      %p130 = por %p128, %p129
      %p131 = scmp.ne.s32.totalorder %s123, %s125
      %p132 = scmp.eq.s32.totalorder %s26, 1
      %p133 = por %p131, %p132
      %p134 = scmp.ne.s32.totalorder %s125, %s126
      %p135 = scmp.eq.s32.totalorder %s26, 0
      %p136 = por %p134, %p135
      %p137 = scmp.ne.s32.totalorder %s125, %s126
      %p138 = scmp.eq.s32.totalorder %s27, 1
      %p139 = por %p137, %p138
      %p141 = scmp.ne.s32.totalorder %s126, %s140
      %p142 = scmp.eq.s32.totalorder %s27, 0
      %p143 = por %p141, %p142
      %s145 = sadd.s32 %s144, 1
      %p148 = scmp.eq.s32.totalorder %s21, 1
      %p149 = scmp.ne.s32.totalorder %s144, %s146
      %p150 = scmp.eq.s32.totalorder %s21, 0
      %p151 = por %p149, %p150
      %p152 = scmp.ne.s32.totalorder %s144, %s146
      %p153 = scmp.eq.s32.totalorder %s26, 1
      %p154 = por %p152, %p153
      %p155 = scmp.ne.s32.totalorder %s146, %s147
      %p156 = scmp.eq.s32.totalorder %s26, 0
      %p157 = por %p155, %p156
      %p158 = scmp.ne.s32.totalorder %s146, %s147
      %p159 = scmp.eq.s32.totalorder %s27, 1
      %p160 = por %p158, %p159
      %p162 = scmp.ne.s32.totalorder %s147, %s161
      %p163 = scmp.eq.s32.totalorder %s27, 0
      %p164 = por %p162, %p163
      %s166 = sadd.s32 %s165, 1
      %p169 = scmp.eq.s32.totalorder %s21, 1
      %p170 = scmp.ne.s32.totalorder %s165, %s167
      %p171 = scmp.eq.s32.totalorder %s21, 0
      %p172 = por %p170, %p171
      %p173 = scmp.ne.s32.totalorder %s165, %s167
      %p174 = scmp.eq.s32.totalorder %s26, 1
      %p175 = por %p173, %p174
      %p176 = scmp.ne.s32.totalorder %s167, %s168
      %p177 = scmp.eq.s32.totalorder %s26, 0
      %p178 = por %p176, %p177
      %p179 = scmp.ne.s32.totalorder %s167, %s168
      %p180 = scmp.eq.s32.totalorder %s27, 1
      %p181 = por %p179, %p180
      %p183 = scmp.ne.s32.totalorder %s168, %s182
      %p184 = scmp.eq.s32.totalorder %s27, 0
      %p185 = por %p183, %p184
      %s187 = sadd.s32 %s186, 1
      %p190 = scmp.eq.s32.totalorder %s21, 1
      %p191 = scmp.ne.s32.totalorder %s186, %s188
      %p192 = scmp.eq.s32.totalorder %s21, 0
      %p193 = por %p191, %p192
      %p194 = scmp.ne.s32.totalorder %s186, %s188
      %p195 = scmp.eq.s32.totalorder %s26, 1
      %p196 = por %p194, %p195
      %p197 = scmp.ne.s32.totalorder %s188, %s189
      %p198 = scmp.eq.s32.totalorder %s26, 0
      %p199 = por %p197, %p198
      %p200 = scmp.ne.s32.totalorder %s188, %s189
      %p201 = scmp.eq.s32.totalorder %s27, 1
      %p202 = por %p200, %p201
      %p204 = scmp.ne.s32.totalorder %s189, %s203
      %p205 = scmp.eq.s32.totalorder %s27, 0
      %p206 = por %p204, %p205
      %s208 = sadd.s32 %s207, 1
      %p211 = scmp.eq.s32.totalorder %s21, 1
      %p212 = scmp.ne.s32.totalorder %s207, %s209
      %p213 = scmp.eq.s32.totalorder %s21, 0
      %p214 = por %p212, %p213
      %p215 = scmp.ne.s32.totalorder %s207, %s209
      %p216 = scmp.eq.s32.totalorder %s26, 1
      %p217 = por %p215, %p216
      %p218 = scmp.ne.s32.totalorder %s209, %s210
      %p219 = scmp.eq.s32.totalorder %s26, 0
      %p220 = por %p218, %p219
      %p221 = scmp.ne.s32.totalorder %s209, %s210
      %p222 = scmp.eq.s32.totalorder %s27, 1
      %p223 = por %p221, %p222
      %p225 = scmp.ne.s32.totalorder %s210, %s224
      %p226 = scmp.eq.s32.totalorder %s27, 0
      %p227 = por %p225, %p226
      %s229 = sadd.s32 %s228, 1
      %p232 = scmp.eq.s32.totalorder %s21, 1
      %p233 = scmp.ne.s32.totalorder %s228, %s230
      %p234 = scmp.eq.s32.totalorder %s21, 0
      %p235 = por %p233, %p234
      %p236 = scmp.ne.s32.totalorder %s228, %s230
      %p237 = scmp.eq.s32.totalorder %s26, 1
      %p238 = por %p236, %p237
      %p239 = scmp.ne.s32.totalorder %s230, %s231
      %p240 = scmp.eq.s32.totalorder %s26, 0
      %p241 = por %p239, %p240
      %p242 = scmp.ne.s32.totalorder %s230, %s231
      %p243 = scmp.eq.s32.totalorder %s27, 1
      %p244 = por %p242, %p243
      %p246 = scmp.ne.s32.totalorder %s231, %s245
      %p247 = scmp.eq.s32.totalorder %s27, 0
      %p248 = por %p246, %p247
      %s250 = sadd.s32 %s249, 1
      %p253 = scmp.eq.s32.totalorder %s21, 1
      %p254 = scmp.ne.s32.totalorder %s249, %s251
      %p255 = scmp.eq.s32.totalorder %s21, 0
      %p256 = por %p254, %p255
      %p257 = scmp.ne.s32.totalorder %s249, %s251
      %p258 = scmp.eq.s32.totalorder %s26, 1
      %p259 = por %p257, %p258
      %p260 = scmp.ne.s32.totalorder %s251, %s252
      %p261 = scmp.eq.s32.totalorder %s26, 0
      %p262 = por %p260, %p261
      %p263 = scmp.ne.s32.totalorder %s251, %s252
      %p264 = scmp.eq.s32.totalorder %s27, 1
      %p265 = por %p263, %p264
      %p267 = scmp.ne.s32.totalorder %s252, %s266
      %p268 = scmp.eq.s32.totalorder %s27, 0
      %p269 = por %p267, %p268
      %s271 = sadd.s32 %s270, 1
      %p274 = scmp.eq.s32.totalorder %s21, 1
      %p275 = scmp.ne.s32.totalorder %s270, %s272
      %p276 = scmp.eq.s32.totalorder %s21, 0
      %p277 = por %p275, %p276
      %p278 = scmp.ne.s32.totalorder %s270, %s272
      %p279 = scmp.eq.s32.totalorder %s26, 1
      %p280 = por %p278, %p279
      %p281 = scmp.ne.s32.totalorder %s272, %s273
      %p282 = scmp.eq.s32.totalorder %s26, 0
      %p283 = por %p281, %p282
      %p284 = scmp.ne.s32.totalorder %s272, %s273
      %p285 = scmp.eq.s32.totalorder %s27, 1
      %p286 = por %p284, %p285
      %p288 = scmp.ne.s32.totalorder %s273, %s287
      %p289 = scmp.eq.s32.totalorder %s27, 0
      %p290 = por %p288, %p289
      %s291 = ssub.s32 %s21, %s28
      %p292 = scmp.eq.s32.totalorder %s291, 0
      %s294 = sadd.s32 %s293, 1
      %s295 = scalar_select %p292, %s293, %s294
      %p298 = pneg %p292
      %p299 = scmp.eq.s32.totalorder %s21, 1
      %p300 = por %p298, %p299
      %p301 = scmp.ne.s32.totalorder %s293, %s296
      %p302 = scmp.eq.s32.totalorder %s21, 0
      %p303 = por %p301, %p302
      %p304 = scmp.ne.s32.totalorder %s293, %s296
      %p305 = scmp.eq.s32.totalorder %s26, 1
      %p306 = por %p304, %p305
      %p307 = scmp.ne.s32.totalorder %s296, %s297
      %p308 = scmp.eq.s32.totalorder %s26, 0
      %p309 = por %p307, %p308
      %p310 = scmp.ne.s32.totalorder %s296, %s297
      %p311 = scmp.eq.s32.totalorder %s27, 1
      %p312 = por %p310, %p311
      %p314 = scmp.ne.s32.totalorder %s297, %s313
      %p315 = scmp.eq.s32.totalorder %s27, 0
      %p316 = por %p314, %p315
      %p317 = scmp.le.s32.totalorder 1, %s21
      %p318 = scmp.lt.s32.totalorder %s21, 3
      %p319 = pnand %p317, %p318
      %p320 = pneg %p319
      // Predicated region
      $region9: #{tpu_custom_call.1} parent=5 // pred_check
        _
      $region10: #{tpu_custom_call.1} parent=5 // pred_check_branch
        %322 = sbr.rel (%p319) target = $region12
      $region11: #{tpu_custom_call.1} parent=5 // pred_region
        %s323 = ssub.s32 %s21, 1
        // Predicated region
        $region13: #{tpu_custom_call.1} parent=11 // pred_check
          %p324 = pneg %p94
        $region14: #{tpu_custom_call.1} parent=11 // pred_check_branch
          %326 = sbr.rel (%p324) target = $region16
        $region15: #{tpu_custom_call.1} parent=11 // pred_region
          _
        $region16: #{tpu_custom_call.1} parent=11 // pred_fallthru
          _
        // Predicated region
        $region17: #{tpu_custom_call.1} parent=11 // pred_check
          %p327 = pneg %p115
        $region18: #{tpu_custom_call.1} parent=11 // pred_check_branch
          %329 = sbr.rel (%p327) target = $region20
        $region19: #{tpu_custom_call.1} parent=11 // pred_region
          _
        $region20: #{tpu_custom_call.1} parent=11 // pred_fallthru
          _
        // Predicated region
        $region21: #{tpu_custom_call.1} parent=11 // pred_check
          %p330 = pneg %p136
        $region22: #{tpu_custom_call.1} parent=11 // pred_check_branch
          %332 = sbr.rel (%p330) target = $region24
        $region23: #{tpu_custom_call.1} parent=11 // pred_region
          _
        $region24: #{tpu_custom_call.1} parent=11 // pred_fallthru
          _
        // Predicated region
        $region25: #{tpu_custom_call.1} parent=11 // pred_check
          %p333 = pneg %p157
        $region26: #{tpu_custom_call.1} parent=11 // pred_check_branch
          %335 = sbr.rel (%p333) target = $region28
        $region27: #{tpu_custom_call.1} parent=11 // pred_region
          _
        $region28: #{tpu_custom_call.1} parent=11 // pred_fallthru
          _
        // Predicated region
        $region29: #{tpu_custom_call.1} parent=11 // pred_check
          %p336 = pneg %p178
        $region30: #{tpu_custom_call.1} parent=11 // pred_check_branch
          %338 = sbr.rel (%p336) target = $region32
        $region31: #{tpu_custom_call.1} parent=11 // pred_region
          _
        $region32: #{tpu_custom_call.1} parent=11 // pred_fallthru
          _
        // Predicated region
        $region33: #{tpu_custom_call.1} parent=11 // pred_check
          %p339 = pneg %p199
        $region34: #{tpu_custom_call.1} parent=11 // pred_check_branch
          %341 = sbr.rel (%p339) target = $region36
        $region35: #{tpu_custom_call.1} parent=11 // pred_region
          _
        $region36: #{tpu_custom_call.1} parent=11 // pred_fallthru
          _
        // Predicated region
        $region37: #{tpu_custom_call.1} parent=11 // pred_check
          %p342 = pneg %p220
        $region38: #{tpu_custom_call.1} parent=11 // pred_check_branch
          %344 = sbr.rel (%p342) target = $region40
        $region39: #{tpu_custom_call.1} parent=11 // pred_region
          _
        $region40: #{tpu_custom_call.1} parent=11 // pred_fallthru
          _
        // Predicated region
        $region41: #{tpu_custom_call.1} parent=11 // pred_check
          %p345 = pneg %p241
        $region42: #{tpu_custom_call.1} parent=11 // pred_check_branch
          %347 = sbr.rel (%p345) target = $region44
        $region43: #{tpu_custom_call.1} parent=11 // pred_region
          _
        $region44: #{tpu_custom_call.1} parent=11 // pred_fallthru
          _
        // Predicated region
        $region45: #{tpu_custom_call.1} parent=11 // pred_check
          %p348 = pneg %p262
        $region46: #{tpu_custom_call.1} parent=11 // pred_check_branch
          %350 = sbr.rel (%p348) target = $region48
        $region47: #{tpu_custom_call.1} parent=11 // pred_region
          _
        $region48: #{tpu_custom_call.1} parent=11 // pred_fallthru
          _
        // Predicated region
        $region49: #{tpu_custom_call.1} parent=11 // pred_check
          %p351 = pneg %p283
        $region50: #{tpu_custom_call.1} parent=11 // pred_check_branch
          %353 = sbr.rel (%p351) target = $region52
        $region51: #{tpu_custom_call.1} parent=11 // pred_region
          _
        $region52: #{tpu_custom_call.1} parent=11 // pred_fallthru
          _
      $region12: #{tpu_custom_call.1} parent=5 // pred_fallthru
        _
      %p354 = scmp.lt.s32.totalorder %s21, 2
      // Predicated region
      $region53: #{tpu_custom_call.1} parent=5 // pred_check
        %p355 = pneg %p354
      $region54: #{tpu_custom_call.1} parent=5 // pred_check_branch
        %357 = sbr.rel (%p355) target = $region56
      $region55: #{tpu_custom_call.1} parent=5 // pred_region
        // Predicated region
        $region57: #{tpu_custom_call.1} parent=55 // pred_check
          %p358 = pneg %p41
        $region58: #{tpu_custom_call.1} parent=55 // pred_check_branch
          %360 = sbr.rel (%p358) target = $region60
        $region59: #{tpu_custom_call.1} parent=55 // pred_region
          %p361 = scmp.lt.s32.totalorder %s21, 1
          %s362 = scalar_select %p361, %s21, 1
          %s363 = smul.addr %s362, 8
          %s364 = scalar_lea.vmem %s0, %s363
        $region60: #{tpu_custom_call.1} parent=55 // pred_fallthru
          _
        // Predicated region
        $region61: #{tpu_custom_call.1} parent=55 // pred_check
          %p365 = pneg %p67
        $region62: #{tpu_custom_call.1} parent=55 // pred_check_branch
          %367 = sbr.rel (%p365) target = $region64
        $region63: #{tpu_custom_call.1} parent=55 // pred_region
          %p368 = scmp.lt.s32.totalorder %s21, 1
          %s369 = scalar_select %p368, %s21, 1
          %s370 = scalar_lea.vmem %s1, %s369
        $region64: #{tpu_custom_call.1} parent=55 // pred_fallthru
          _
      $region56: #{tpu_custom_call.1} parent=5 // pred_fallthru
        _
      %p371 = scmp.le.s32.totalorder 1, %s21
      %p372 = scmp.lt.s32.totalorder %s21, 3
      %p373 = pnand %p371, %p372
      %p374 = pneg %p373
      // Predicated region
      $region65: #{tpu_custom_call.1} parent=5 // pred_check
        _
      $region66: #{tpu_custom_call.1} parent=5 // pred_check_branch
        %376 = sbr.rel (%p373) target = $region68
      $region67: #{tpu_custom_call.1} parent=5 // pred_region
        %s377 = ssub.s32 %s21, 1
        %p378 = scmp.lt.s32.totalorder %s26, 1
        %s379 = scalar_select %p378, %s26, 1
        %s380 = smul.addr %s379, 8
        %s381 = scalar_lea.vmem %s0, %s380
        %p382 = pneg %p47
        %p383 = pneg %p44
        %p384 = scmp.lt.s32.totalorder %s26, 1
        %s385 = scalar_select %p384, %s26, 1
        %s386 = scalar_lea.vmem %s1, %s385
        %p387 = pneg %p73
        %p388 = pneg %p70
        %p389 = pneg %p94
        %p390 = pneg %p91
        %p391 = pneg %p115
        %p392 = pneg %p112
        %p393 = pneg %p136
        %p394 = pneg %p133
        %p395 = pneg %p157
        %p396 = pneg %p154
        %p397 = pneg %p178
        %p398 = pneg %p175
        %p399 = pneg %p199
        %p400 = pneg %p196
        %p401 = pneg %p220
        %p402 = pneg %p217
        %p403 = pneg %p241
        %p404 = pneg %p238
        %p405 = pneg %p262
        %p406 = pneg %p259
        %p407 = pneg %p283
        %p408 = pneg %p280
        %p409 = pneg %p309
        %p410 = pneg %p306
        %s411 = sand.u32 %s296, 1
        %s412 = scalar_lea.sflag [#allocation5], %s411
        %s413 = sand.u32 %s296, 1
        %s414 = smul.addr %s413, 8
        %s415 = scalar_lea.vmem [#allocation4], %s414
        %p416 = scmp.lt.s32.totalorder %s26, 1
        %s417 = scalar_select %p416, %s26, 1
        %s418 = smul.addr %s417, 8
        %s419 = scalar_lea.vmem %s0, %s418
        %p420 = scmp.lt.s32.totalorder %s26, 1
        %s421 = scalar_select %p420, %s26, 1
        %s422 = scalar_lea.vmem %s1, %s421
        %v423 = vld [vmem:[%s419] sm:$0xff]
        %v424 = vld [vmem:[%s422] sm:$0x1]
        %vm425 = vcmp.gt.s32.totalorder %v424, 0
        %v426 = vsel %vm425, -1e+30, 0.0
        %vm427 = vcmask 261120
        %v428 = vsel %vm427, %v423, 0.0
        %429 = vadd.xlane.f32.xlu0 %v428
        %v430 = vpop.xlane.xlu0 %429
        %v431 = vrcp.pop 32.0
        %v432 = vmul.f32 %v430, %v431
        %v433 = vsub.f32 %v423, %v432
        %v434 = vmul.f32 %v433, %v433
        %v435 = vsel %vm427, %v434, 0.0
        %436 = vadd.xlane.f32.xlu0 %v435
        %v437 = vpop.xlane.xlu0 %436
        %v438 = vmul.f32 %v437, %v431
        %v439 = vadd.f32 %v438, 1e-05
        %v440 = vrsqrt.pop %v439
        %v441 = vmul.f32 %v433, %v440
        %v442 = vld [vmem:[%s4] sm:$0x1]
        %v444 = vlaneseq
        %v445 = vshrl.u32 %v444, 7
        %v446 = vsub.s32 0, %v445
        %v447 = vrot.slane %v442, %v446
        %v449 = vmul.f32 %v441, %v447
        %v450 = vld [vmem:[%s5] sm:$0x1]
        %v452 = vlaneseq
        %v453 = vshrl.u32 %v452, 7
        %v454 = vsub.s32 0, %v453
        %v455 = vrot.slane %v450, %v454
        %v457 = vadd.f32 %v449, %v455
        %v458 = vld [vmem:[%s2] sm:$0xff]
        %v459 = vld [vmem:[%s2 + $0x8] sm:$0xff]
        %v460 = vld [vmem:[%s2 + $0x10] sm:$0xff]
        %v461 = vld [vmem:[%s2 + $0x18] sm:$0xff]
        %v463 = vsel %vm427, %v457, 0
        %465 = vmatprep.subr.mxu0 0.0
        %466 = vmatpush1.msra.mxu0 %v458
        %467 = vmatprep.subr.mxu0 0.0
        %468 = vmatpush1.msra.mxu0 %v459
        %469 = vmatprep.subr.mxu0 0.0
        %470 = vmatpush1.msra.mxu0 %v460
        %471 = vmatprep.subr.mxu0 0.0
        %472 = vmatpush1.msra.mxu0 %v461
        %473 = vmatprep.subr.mxu0 0.0
        %474 = vmatpush1.msra.mxu0 0.0
        %475 = vmatprep.subr.mxu0 0.0
        %476 = vmatpush1.msra.mxu0 0.0
        %477 = vmatprep.subr.mxu0 0.0
        %478 = vmatpush1.msra.mxu0 0.0
        %479 = vmatprep.subr.mxu0 0.0
        %480 = vmatpush1.msra.mxu0 0.0
        %481 = vmatprep.subr.mxu0 0.0
        %482 = vmatpush1.msra.mxu0 0.0
        %483 = vmatprep.subr.mxu0 0.0
        %484 = vmatpush1.msra.mxu0 0.0
        %485 = vmatprep.subr.mxu0 0.0
        %486 = vmatpush1.msra.mxu0 0.0
        %487 = vmatprep.subr.mxu0 0.0
        %488 = vmatpush1.msra.mxu0 0.0
        %489 = vmatprep.subr.mxu0 0.0
        %490 = vmatpush1.msra.mxu0 0.0
        %491 = vmatprep.subr.mxu0 0.0
        %492 = vmatpush1.msra.mxu0 0.0
        %493 = vmatprep.subr.mxu0 0.0
        %494 = vmatpush1.msra.mxu0 0.0
        %495 = vmatprep.subr.mxu0 0.0
        %496 = vmatpush1.msra.mxu0 0.0
        %497 = vmatprep.subr.mxu0 0.0
        %498 = vmatpush1.msra.mxu0 0.0
        %499 = vmatprep.subr.mxu0 0.0
        %500 = vmatpush1.msra.mxu0 0.0
        %501 = vmatprep.subr.mxu0 0.0
        %502 = vmatpush1.msra.mxu0 0.0
        %503 = vmatprep.subr.mxu0 0.0
        %504 = vmatpush1.msra.mxu0 0.0
        %505 = vmatprep.subr.mxu0 0.0
        %506 = vmatpush1.msra.mxu0 0.0
        %507 = vmatprep.subr.mxu0 0.0
        %508 = vmatpush1.msra.mxu0 0.0
        %509 = vmatprep.subr.mxu0 0.0
        %510 = vmatpush1.msra.mxu0 0.0
        %511 = vmatprep.subr.mxu0 0.0
        %512 = vmatpush1.msra.mxu0 0.0
        %513 = vmatprep.subr.mxu0 0.0
        %514 = vmatpush1.msra.mxu0 0.0
        %515 = vmatprep.subr.mxu0 0.0
        %516 = vmatpush1.msra.mxu0 0.0
        %517 = vmatprep.subr.mxu0 0.0
        %518 = vmatpush1.msra.mxu0 0.0
        %519 = vmatprep.subr.mxu0 0.0
        %520 = vmatpush1.msra.mxu0 0.0
        %521 = vmatprep.subr.mxu0 0.0
        %522 = vmatpush1.msra.mxu0 0.0
        %523 = vmatprep.subr.mxu0 0.0
        %524 = vmatpush1.msra.mxu0 0.0
        %525 = vmatprep.subr.mxu0 0.0
        %526 = vmatpush1.msra.mxu0 0.0
        %527 = vmatprep.subr.mxu0 0.0
        %528 = vmatpush1.msra.mxu0 0.0
        %529 = vmatprep.mubr.f32.mxu0 0.0
        %530 = vmatmul.mubr.f32.gmra.mrb[0].mxu0 %v463
        %v531 = vpop.f32.mrb[0].mxu0
        %v532 = vadd.f32 0.0, %v531
        %v533 = vpop.f32.mrb[0].mxu0
        %534 = vdwg.mxu0
        %vm535 = vcmask 64512
        %536 = vst.msk [vmem:[#allocation2] sm:$0xff] %vm535, %v532
        %538 = vrot.lane.b32.xlu0 %v532, 120
        %v539 = vpop.permute.xlu0 %538
        %s541 = scalar_lea.vmem [#allocation2], 8
        %542 = vst.msk [vmem:[%s541] sm:$0xff] %vm535, %v539
        %543 = vrot.lane.b32.xlu0 %v532, 112
        %v544 = vpop.permute.xlu0 %543
        %s546 = scalar_lea.vmem [#allocation2], 16
        %547 = vst.msk [vmem:[%s546] sm:$0xff] %vm535, %v544
        %548 = vrot.lane.b32.xlu0 %v532, 104
        %v549 = vpop.permute.xlu0 %548
        %s551 = scalar_lea.vmem [#allocation2], 24
        %552 = vst.msk [vmem:[%s551] sm:$0xff] %vm535, %v549
        %553 = vrot.lane.b32.xlu0 %v532, 96
        %v554 = vpop.permute.xlu0 %553
        %s556 = scalar_lea.vmem [#allocation2], 32
        %557 = vst.msk [vmem:[%s556] sm:$0xff] %vm535, %v554
        %558 = vrot.lane.b32.xlu0 %v532, 88
        %v559 = vpop.permute.xlu0 %558
        %s561 = scalar_lea.vmem [#allocation2], 40
        %562 = vst.msk [vmem:[%s561] sm:$0xff] %vm535, %v559
        %563 = vrot.lane.b32.xlu0 %v532, 80
        %v564 = vpop.permute.xlu0 %563
        %s566 = scalar_lea.vmem [#allocation2], 48
        %567 = vst.msk [vmem:[%s566] sm:$0xff] %vm535, %v564
        %568 = vrot.lane.b32.xlu0 %v532, 72
        %v569 = vpop.permute.xlu0 %568
        %s571 = scalar_lea.vmem [#allocation2], 56
        %572 = vst.msk [vmem:[%s571] sm:$0xff] %vm535, %v569
        %573 = vrot.lane.b32.xlu0 %v532, 64
        %v574 = vpop.permute.xlu0 %573
        %s576 = scalar_lea.vmem [#allocation2], 64
        %577 = vst.msk [vmem:[%s576] sm:$0xff] %vm535, %v574
        %578 = vrot.lane.b32.xlu0 %v532, 56
        %v579 = vpop.permute.xlu0 %578
        %s581 = scalar_lea.vmem [#allocation2], 72
        %582 = vst.msk [vmem:[%s581] sm:$0xff] %vm535, %v579
        %583 = vrot.lane.b32.xlu0 %v532, 48
        %v584 = vpop.permute.xlu0 %583
        %s586 = scalar_lea.vmem [#allocation2], 80
        %587 = vst.msk [vmem:[%s586] sm:$0xff] %vm535, %v584
        %588 = vrot.lane.b32.xlu0 %v532, 40
        %v589 = vpop.permute.xlu0 %588
        %s591 = scalar_lea.vmem [#allocation2], 88
        %592 = vst.msk [vmem:[%s591] sm:$0xff] %vm535, %v589
        loop: start=0, step=1, limit=4
        $region69: #{tpu_custom_call.1} parent=67 // loop_pre_header
          _
        $region70: #{tpu_custom_call.1} parent=67 // loop_header
          %s594 = sphi 0, %s598
          %p595 = scmp.ge.s32.totalorder %s594, 4
        $region71: #{tpu_custom_call.1} parent=67 // loop_header_branch
          %597 = sbr.rel (%p595) target = $region75
        $region72: #{tpu_custom_call.1} parent=67 // loop_body
          %s599 = smul.u32 %s594, 8
          %s600 = scalar_lea.vmem [#allocation2], %s599
          %v601 = vld [vmem:[%s600] sm:$0xff]
          %s602 = sadd.s32 %s594, 4
          %s603 = smul.u32 %s602, 8
          %s604 = scalar_lea.vmem [#allocation2], %s603
          %v605 = vld [vmem:[%s604] sm:$0xff]
          %s606 = sadd.s32 %s594, 8
          %s607 = smul.u32 %s606, 8
          %s608 = scalar_lea.vmem [#allocation2], %s607
          %v609 = vld [vmem:[%s608] sm:$0xff]
          %v611 = vlaneseq
          %v612 = vshrl.u32 %v611, 7
          %v613 = vsub.s32 0, %v612
          %v614 = vrot.slane %v426, %v613
          %v617 = vsel %vm535, %v601, 0
          %v620 = vsel %vm535, %v605, 0
          %622 = vmatprep.subr.mxu0 0.0
          %623 = vmatpush1.xpose.msra.mxu0 %v620
          %624 = vmatprep.subr.mxu0 0.0
          %625 = vmatpush1.xpose.msra.mxu0 0.0
          %626 = vmatprep.subr.mxu0 0.0
          %627 = vmatpush1.xpose.msra.mxu0 0.0
          %628 = vmatprep.subr.mxu0 0.0
          %629 = vmatpush1.xpose.msra.mxu0 0.0
          %630 = vmatprep.subr.mxu0 0.0
          %631 = vmatpush1.xpose.msra.mxu0 0.0
          %632 = vmatprep.subr.mxu0 0.0
          %633 = vmatpush1.xpose.msra.mxu0 0.0
          %634 = vmatprep.subr.mxu0 0.0
          %635 = vmatpush1.xpose.msra.mxu0 0.0
          %636 = vmatprep.subr.mxu0 0.0
          %637 = vmatpush1.xpose.msra.mxu0 0.0
          %638 = vmatprep.subr.mxu0 0.0
          %639 = vmatpush1.xpose.msra.mxu0 0.0
          %640 = vmatprep.subr.mxu0 0.0
          %641 = vmatpush1.xpose.msra.mxu0 0.0
          %642 = vmatprep.subr.mxu0 0.0
          %643 = vmatpush1.xpose.msra.mxu0 0.0
          %644 = vmatprep.subr.mxu0 0.0
          %645 = vmatpush1.xpose.msra.mxu0 0.0
          %646 = vmatprep.subr.mxu0 0.0
          %647 = vmatpush1.xpose.msra.mxu0 0.0
          %648 = vmatprep.subr.mxu0 0.0
          %649 = vmatpush1.xpose.msra.mxu0 0.0
          %650 = vmatprep.subr.mxu0 0.0
          %651 = vmatpush1.xpose.msra.mxu0 0.0
          %652 = vmatprep.subr.mxu0 0.0
          %653 = vmatpush1.xpose.msra.mxu0 0.0
          %654 = vmatprep.subr.mxu0 0.0
          %655 = vmatpush1.xpose.msra.mxu0 0.0
          %656 = vmatprep.subr.mxu0 0.0
          %657 = vmatpush1.xpose.msra.mxu0 0.0
          %658 = vmatprep.subr.mxu0 0.0
          %659 = vmatpush1.xpose.msra.mxu0 0.0
          %660 = vmatprep.subr.mxu0 0.0
          %661 = vmatpush1.xpose.msra.mxu0 0.0
          %662 = vmatprep.subr.mxu0 0.0
          %663 = vmatpush1.xpose.msra.mxu0 0.0
          %664 = vmatprep.subr.mxu0 0.0
          %665 = vmatpush1.xpose.msra.mxu0 0.0
          %666 = vmatprep.subr.mxu0 0.0
          %667 = vmatpush1.xpose.msra.mxu0 0.0
          %668 = vmatprep.subr.mxu0 0.0
          %669 = vmatpush1.xpose.msra.mxu0 0.0
          %670 = vmatprep.subr.mxu0 0.0
          %671 = vmatpush1.xpose.msra.mxu0 0.0
          %672 = vmatprep.subr.mxu0 0.0
          %673 = vmatpush1.xpose.msra.mxu0 0.0
          %674 = vmatprep.subr.mxu0 0.0
          %675 = vmatpush1.xpose.msra.mxu0 0.0
          %676 = vmatprep.subr.mxu0 0.0
          %677 = vmatpush1.xpose.msra.mxu0 0.0
          %678 = vmatprep.subr.mxu0 0.0
          %679 = vmatpush1.xpose.msra.mxu0 0.0
          %680 = vmatprep.subr.mxu0 0.0
          %681 = vmatpush1.xpose.msra.mxu0 0.0
          %682 = vmatprep.subr.mxu0 0.0
          %683 = vmatpush1.xpose.msra.mxu0 0.0
          %684 = vmatprep.subr.mxu0 0.0
          %685 = vmatpush1.xpose.msra.mxu0 0.0
          %686 = vmatprep.mubr.f32.mxu0 0.0
          %687 = vmatmul.mubr.f32.gmra.mrb[0].mxu0 %v617
          %v688 = vpop.f32.mrb[0].mxu0
          %v689 = vadd.f32 %v614, %v688
          %v690 = vpop.f32.mrb[0].mxu0
          %691 = vdwg.mxu0
          %v692 = vsel %vm535, %v689, -inf
          %693 = vmax.xlane.f32.xlu0 %v692
          %v694 = vpop.xlane.xlu0 %693
          %v695 = vsub.f32 %v689, %v694
          %v696 = vmul.f32 %v695, 1.442695
          %v697 = vpow.pop %v696
          %v698 = vsel %vm535, %v697, 0.0
          %699 = vadd.xlane.f32.xlu0 %v698
          %v700 = vpop.xlane.xlu0 %699
          %v701 = vrcp.pop %v700
          %v702 = vmul.f32 %v697, %v701
          %v704 = vsel %vm535, %v702, 0
          %706 = vmatprep.subr.mxu0 0.0
          %707 = vmatpush1.msra.mxu0 %v609
          %708 = vmatprep.subr.mxu0 0.0
          %709 = vmatpush1.msra.mxu0 0.0
          %710 = vmatprep.subr.mxu0 0.0
          %711 = vmatpush1.msra.mxu0 0.0
          %712 = vmatprep.subr.mxu0 0.0
          %713 = vmatpush1.msra.mxu0 0.0
          %714 = vmatprep.subr.mxu0 0.0
          %715 = vmatpush1.msra.mxu0 0.0
          %716 = vmatprep.subr.mxu0 0.0
          %717 = vmatpush1.msra.mxu0 0.0
          %718 = vmatprep.subr.mxu0 0.0
          %719 = vmatpush1.msra.mxu0 0.0
          %720 = vmatprep.subr.mxu0 0.0
          %721 = vmatpush1.msra.mxu0 0.0
          %722 = vmatprep.subr.mxu0 0.0
          %723 = vmatpush1.msra.mxu0 0.0
          %724 = vmatprep.subr.mxu0 0.0
          %725 = vmatpush1.msra.mxu0 0.0
          %726 = vmatprep.subr.mxu0 0.0
          %727 = vmatpush1.msra.mxu0 0.0
          %728 = vmatprep.subr.mxu0 0.0
          %729 = vmatpush1.msra.mxu0 0.0
          %730 = vmatprep.subr.mxu0 0.0
          %731 = vmatpush1.msra.mxu0 0.0
          %732 = vmatprep.subr.mxu0 0.0
          %733 = vmatpush1.msra.mxu0 0.0
          %734 = vmatprep.subr.mxu0 0.0
          %735 = vmatpush1.msra.mxu0 0.0
          %736 = vmatprep.subr.mxu0 0.0
          %737 = vmatpush1.msra.mxu0 0.0
          %738 = vmatprep.subr.mxu0 0.0
          %739 = vmatpush1.msra.mxu0 0.0
          %740 = vmatprep.subr.mxu0 0.0
          %741 = vmatpush1.msra.mxu0 0.0
          %742 = vmatprep.subr.mxu0 0.0
          %743 = vmatpush1.msra.mxu0 0.0
          %744 = vmatprep.subr.mxu0 0.0
          %745 = vmatpush1.msra.mxu0 0.0
          %746 = vmatprep.subr.mxu0 0.0
          %747 = vmatpush1.msra.mxu0 0.0
          %748 = vmatprep.subr.mxu0 0.0
          %749 = vmatpush1.msra.mxu0 0.0
          %750 = vmatprep.subr.mxu0 0.0
          %751 = vmatpush1.msra.mxu0 0.0
          %752 = vmatprep.subr.mxu0 0.0
          %753 = vmatpush1.msra.mxu0 0.0
          %754 = vmatprep.subr.mxu0 0.0
          %755 = vmatpush1.msra.mxu0 0.0
          %756 = vmatprep.subr.mxu0 0.0
          %757 = vmatpush1.msra.mxu0 0.0
          %758 = vmatprep.subr.mxu0 0.0
          %759 = vmatpush1.msra.mxu0 0.0
          %760 = vmatprep.subr.mxu0 0.0
          %761 = vmatpush1.msra.mxu0 0.0
          %762 = vmatprep.subr.mxu0 0.0
          %763 = vmatpush1.msra.mxu0 0.0
          %764 = vmatprep.subr.mxu0 0.0
          %765 = vmatpush1.msra.mxu0 0.0
          %766 = vmatprep.subr.mxu0 0.0
          %767 = vmatpush1.msra.mxu0 0.0
          %768 = vmatprep.subr.mxu0 0.0
          %769 = vmatpush1.msra.mxu0 0.0
          %770 = vmatprep.mubr.f32.mxu0 0.0
          %771 = vmatmul.mubr.f32.gmra.mrb[0].mxu0 %v704
          %v772 = vpop.f32.mrb[0].mxu0
          %v773 = vadd.f32 0.0, %v772
          %v774 = vpop.f32.mrb[0].mxu0
          %775 = vdwg.mxu0
          %s776 = scalar_lea.vmem [#allocation3], %s599
          %777 = vst.msk [vmem:[%s776] sm:$0xff] %vm535, %v773
        $region73: #{tpu_custom_call.1} parent=67 // loop_footer
          %s598 = sadd.s32 1, %s594
        $region74: #{tpu_custom_call.1} parent=67 // loop_footer_branch
          %593 = sbr.rel target = $region70
        $region75: #{tpu_custom_call.1} parent=67 // loop_exit
          _
        %v778 = vld [vmem:[#allocation3] sm:$0xff]
        %s779 = scalar_lea.vmem [#allocation3], 8
        %v780 = vld [vmem:[%s779] sm:$0xff]
        %s781 = scalar_lea.vmem [#allocation3], 16
        %v782 = vld [vmem:[%s781] sm:$0xff]
        %s783 = scalar_lea.vmem [#allocation3], 24
        %v784 = vld [vmem:[%s783] sm:$0xff]
        %786 = vrot.lane.b32.xlu0 %v780, 8
        %v787 = vpop.permute.xlu0 %786
        %790 = vrot.lane.b32.xlu0 %v782, 16
        %v791 = vpop.permute.xlu0 %790
        %794 = vrot.lane.b32.xlu0 %v784, 24
        %v795 = vpop.permute.xlu0 %794
        %v797 = vsel %vm535, %v778, %v787
        %vm798 = vcmask 130048
        %v799 = vsel %vm798, %v797, %v791
        %vm800 = vcmask 195584
        %v801 = vsel %vm800, %v799, %v795
        %v802 = vld [vmem:[%s3] sm:$0xff]
        %v803 = vld [vmem:[%s3 + $0x8] sm:$0xff]
        %v804 = vld [vmem:[%s3 + $0x10] sm:$0xff]
        %v805 = vld [vmem:[%s3 + $0x18] sm:$0xff]
        %v807 = vsel %vm427, %v801, 0
        %809 = vmatprep.subr.mxu0 0.0
        %810 = vmatpush1.msra.mxu0 %v802
        %811 = vmatprep.subr.mxu0 0.0
        %812 = vmatpush1.msra.mxu0 %v803
        %813 = vmatprep.subr.mxu0 0.0
        %814 = vmatpush1.msra.mxu0 %v804
        %815 = vmatprep.subr.mxu0 0.0
        %816 = vmatpush1.msra.mxu0 %v805
        %817 = vmatprep.subr.mxu0 0.0
        %818 = vmatpush1.msra.mxu0 0.0
        %819 = vmatprep.subr.mxu0 0.0
        %820 = vmatpush1.msra.mxu0 0.0
        %821 = vmatprep.subr.mxu0 0.0
        %822 = vmatpush1.msra.mxu0 0.0
        %823 = vmatprep.subr.mxu0 0.0
        %824 = vmatpush1.msra.mxu0 0.0
        %825 = vmatprep.subr.mxu0 0.0
        %826 = vmatpush1.msra.mxu0 0.0
        %827 = vmatprep.subr.mxu0 0.0
        %828 = vmatpush1.msra.mxu0 0.0
        %829 = vmatprep.subr.mxu0 0.0
        %830 = vmatpush1.msra.mxu0 0.0
        %831 = vmatprep.subr.mxu0 0.0
        %832 = vmatpush1.msra.mxu0 0.0
        %833 = vmatprep.subr.mxu0 0.0
        %834 = vmatpush1.msra.mxu0 0.0
        %835 = vmatprep.subr.mxu0 0.0
        %836 = vmatpush1.msra.mxu0 0.0
        %837 = vmatprep.subr.mxu0 0.0
        %838 = vmatpush1.msra.mxu0 0.0
        %839 = vmatprep.subr.mxu0 0.0
        %840 = vmatpush1.msra.mxu0 0.0
        %841 = vmatprep.subr.mxu0 0.0
        %842 = vmatpush1.msra.mxu0 0.0
        %843 = vmatprep.subr.mxu0 0.0
        %844 = vmatpush1.msra.mxu0 0.0
        %845 = vmatprep.subr.mxu0 0.0
        %846 = vmatpush1.msra.mxu0 0.0
        %847 = vmatprep.subr.mxu0 0.0
        %848 = vmatpush1.msra.mxu0 0.0
        %849 = vmatprep.subr.mxu0 0.0
        %850 = vmatpush1.msra.mxu0 0.0
        %851 = vmatprep.subr.mxu0 0.0
        %852 = vmatpush1.msra.mxu0 0.0
        %853 = vmatprep.subr.mxu0 0.0
        %854 = vmatpush1.msra.mxu0 0.0
        %855 = vmatprep.subr.mxu0 0.0
        %856 = vmatpush1.msra.mxu0 0.0
        %857 = vmatprep.subr.mxu0 0.0
        %858 = vmatpush1.msra.mxu0 0.0
        %859 = vmatprep.subr.mxu0 0.0
        %860 = vmatpush1.msra.mxu0 0.0
        %861 = vmatprep.subr.mxu0 0.0
        %862 = vmatpush1.msra.mxu0 0.0
        %863 = vmatprep.subr.mxu0 0.0
        %864 = vmatpush1.msra.mxu0 0.0
        %865 = vmatprep.subr.mxu0 0.0
        %866 = vmatpush1.msra.mxu0 0.0
        %867 = vmatprep.subr.mxu0 0.0
        %868 = vmatpush1.msra.mxu0 0.0
        %869 = vmatprep.subr.mxu0 0.0
        %870 = vmatpush1.msra.mxu0 0.0
        %871 = vmatprep.subr.mxu0 0.0
        %872 = vmatpush1.msra.mxu0 0.0
        %873 = vmatprep.mubr.f32.mxu0 0.0
        %874 = vmatmul.mubr.f32.gmra.mrb[0].mxu0 %v807
        %v875 = vpop.f32.mrb[0].mxu0
        %v876 = vadd.f32 0.0, %v875
        %v877 = vpop.f32.mrb[0].mxu0
        %878 = vdwg.mxu0
        %v879 = vadd.f32 %v423, %v876
        %v880 = vsel %vm427, %v879, 0.0
        %881 = vadd.xlane.f32.xlu0 %v880
        %v882 = vpop.xlane.xlu0 %881
        %v883 = vmul.f32 %v882, %v431
        %v884 = vsub.f32 %v879, %v883
        %v885 = vmul.f32 %v884, %v884
        %v886 = vsel %vm427, %v885, 0.0
        %887 = vadd.xlane.f32.xlu0 %v886
        %v888 = vpop.xlane.xlu0 %887
        %v889 = vmul.f32 %v888, %v431
        %v890 = vadd.f32 %v889, 1e-05
        %v891 = vrsqrt.pop %v890
        %v892 = vmul.f32 %v884, %v891
        %v893 = vld [vmem:[%s6] sm:$0x1]
        %v895 = vlaneseq
        %v896 = vshrl.u32 %v895, 7
        %v897 = vsub.s32 0, %v896
        %v898 = vrot.slane %v893, %v897
        %v900 = vmul.f32 %v892, %v898
        %v901 = vld [vmem:[%s7] sm:$0x1]
        %v903 = vlaneseq
        %v904 = vshrl.u32 %v903, 7
        %v905 = vsub.s32 0, %v904
        %v906 = vrot.slane %v901, %v905
        %v908 = vadd.f32 %v900, %v906
        %v909 = vld [vmem:[%s8] sm:$0xff]
        %v910 = vld [vmem:[%s8 + $0x8] sm:$0xff]
        %v911 = vld [vmem:[%s8 + $0x10] sm:$0xff]
        %v912 = vld [vmem:[%s8 + $0x18] sm:$0xff]
        %v913 = vld [vmem:[%s9] sm:$0x1]
        %v915 = vlaneseq
        %v916 = vshrl.u32 %v915, 7
        %v917 = vsub.s32 0, %v916
        %v918 = vrot.slane %v913, %v917
        %v921 = vsel %vm427, %v908, 0
        %923 = vmatprep.subr.mxu0 0.0
        %924 = vmatpush1.msra.mxu0 %v909
        %925 = vmatprep.subr.mxu0 0.0
        %926 = vmatpush1.msra.mxu0 %v910
        %927 = vmatprep.subr.mxu0 0.0
        %928 = vmatpush1.msra.mxu0 %v911
        %929 = vmatprep.subr.mxu0 0.0
        %930 = vmatpush1.msra.mxu0 %v912
        %931 = vmatprep.subr.mxu0 0.0
        %932 = vmatpush1.msra.mxu0 0.0
        %933 = vmatprep.subr.mxu0 0.0
        %934 = vmatpush1.msra.mxu0 0.0
        %935 = vmatprep.subr.mxu0 0.0
        %936 = vmatpush1.msra.mxu0 0.0
        %937 = vmatprep.subr.mxu0 0.0
        %938 = vmatpush1.msra.mxu0 0.0
        %939 = vmatprep.subr.mxu0 0.0
        %940 = vmatpush1.msra.mxu0 0.0
        %941 = vmatprep.subr.mxu0 0.0
        %942 = vmatpush1.msra.mxu0 0.0
        %943 = vmatprep.subr.mxu0 0.0
        %944 = vmatpush1.msra.mxu0 0.0
        %945 = vmatprep.subr.mxu0 0.0
        %946 = vmatpush1.msra.mxu0 0.0
        %947 = vmatprep.subr.mxu0 0.0
        %948 = vmatpush1.msra.mxu0 0.0
        %949 = vmatprep.subr.mxu0 0.0
        %950 = vmatpush1.msra.mxu0 0.0
        %951 = vmatprep.subr.mxu0 0.0
        %952 = vmatpush1.msra.mxu0 0.0
        %953 = vmatprep.subr.mxu0 0.0
        %954 = vmatpush1.msra.mxu0 0.0
        %955 = vmatprep.subr.mxu0 0.0
        %956 = vmatpush1.msra.mxu0 0.0
        %957 = vmatprep.subr.mxu0 0.0
        %958 = vmatpush1.msra.mxu0 0.0
        %959 = vmatprep.subr.mxu0 0.0
        %960 = vmatpush1.msra.mxu0 0.0
        %961 = vmatprep.subr.mxu0 0.0
        %962 = vmatpush1.msra.mxu0 0.0
        %963 = vmatprep.subr.mxu0 0.0
        %964 = vmatpush1.msra.mxu0 0.0
        %965 = vmatprep.subr.mxu0 0.0
        %966 = vmatpush1.msra.mxu0 0.0
        %967 = vmatprep.subr.mxu0 0.0
        %968 = vmatpush1.msra.mxu0 0.0
        %969 = vmatprep.subr.mxu0 0.0
        %970 = vmatpush1.msra.mxu0 0.0
        %971 = vmatprep.subr.mxu0 0.0
        %972 = vmatpush1.msra.mxu0 0.0
        %973 = vmatprep.subr.mxu0 0.0
        %974 = vmatpush1.msra.mxu0 0.0
        %975 = vmatprep.subr.mxu0 0.0
        %976 = vmatpush1.msra.mxu0 0.0
        %977 = vmatprep.subr.mxu0 0.0
        %978 = vmatpush1.msra.mxu0 0.0
        %979 = vmatprep.subr.mxu0 0.0
        %980 = vmatpush1.msra.mxu0 0.0
        %981 = vmatprep.subr.mxu0 0.0
        %982 = vmatpush1.msra.mxu0 0.0
        %983 = vmatprep.subr.mxu0 0.0
        %984 = vmatpush1.msra.mxu0 0.0
        %985 = vmatprep.subr.mxu0 0.0
        %986 = vmatpush1.msra.mxu0 0.0
        %987 = vmatprep.mubr.f32.mxu0 0.0
        %988 = vmatmul.mubr.f32.gmra.mrb[0].mxu0 %v921
        %v989 = vpop.f32.mrb[0].mxu0
        %v990 = vadd.f32 %v918, %v989
        %v991 = vpop.f32.mrb[0].mxu0
        %992 = vdwg.mxu0
        %v993 = vmax.f32 %v990, 0.0
        %v994 = vld [vmem:[%s10] sm:$0xff]
        %v995 = vld [vmem:[%s10 + $0x8] sm:$0xff]
        %v996 = vld [vmem:[%s10 + $0x10] sm:$0xff]
        %v997 = vld [vmem:[%s10 + $0x18] sm:$0xff]
        %v998 = vld [vmem:[%s10 + $0x20] sm:$0xff]
        %v999 = vld [vmem:[%s10 + $0x28] sm:$0xff]
        %v1000 = vld [vmem:[%s10 + $0x30] sm:$0xff]
        %v1001 = vld [vmem:[%s10 + $0x38] sm:$0xff]
        %v1002 = vld [vmem:[%s10 + $0x40] sm:$0xff]
        %v1003 = vld [vmem:[%s10 + $0x48] sm:$0xff]
        %v1004 = vld [vmem:[%s10 + $0x50] sm:$0xff]
        %v1005 = vld [vmem:[%s10 + $0x58] sm:$0xff]
        %v1006 = vld [vmem:[%s10 + $0x60] sm:$0xff]
        %v1007 = vld [vmem:[%s10 + $0x68] sm:$0xff]
        %v1008 = vld [vmem:[%s10 + $0x70] sm:$0xff]
        %v1009 = vld [vmem:[%s10 + $0x78] sm:$0xff]
        %v1010 = vld [vmem:[%s11] sm:$0x1]
        %v1012 = vlaneseq
        %v1013 = vshrl.u32 %v1012, 7
        %v1014 = vsub.s32 0, %v1013
        %v1015 = vrot.slane %v1010, %v1014
        %1017 = vmatprep.subr.mxu0 0.0
        %1018 = vmatpush1.msra.mxu0 %v994
        %1019 = vmatprep.subr.mxu0 0.0
        %1020 = vmatpush1.msra.mxu0 %v995
        %1021 = vmatprep.subr.mxu0 0.0
        %1022 = vmatpush1.msra.mxu0 %v996
        %1023 = vmatprep.subr.mxu0 0.0
        %1024 = vmatpush1.msra.mxu0 %v997
        %1025 = vmatprep.subr.mxu0 0.0
        %1026 = vmatpush1.msra.mxu0 %v998
        %1027 = vmatprep.subr.mxu0 0.0
        %1028 = vmatpush1.msra.mxu0 %v999
        %1029 = vmatprep.subr.mxu0 0.0
        %1030 = vmatpush1.msra.mxu0 %v1000
        %1031 = vmatprep.subr.mxu0 0.0
        %1032 = vmatpush1.msra.mxu0 %v1001
        %1033 = vmatprep.subr.mxu0 0.0
        %1034 = vmatpush1.msra.mxu0 %v1002
        %1035 = vmatprep.subr.mxu0 0.0
        %1036 = vmatpush1.msra.mxu0 %v1003
        %1037 = vmatprep.subr.mxu0 0.0
        %1038 = vmatpush1.msra.mxu0 %v1004
        %1039 = vmatprep.subr.mxu0 0.0
        %1040 = vmatpush1.msra.mxu0 %v1005
        %1041 = vmatprep.subr.mxu0 0.0
        %1042 = vmatpush1.msra.mxu0 %v1006
        %1043 = vmatprep.subr.mxu0 0.0
        %1044 = vmatpush1.msra.mxu0 %v1007
        %1045 = vmatprep.subr.mxu0 0.0
        %1046 = vmatpush1.msra.mxu0 %v1008
        %1047 = vmatprep.subr.mxu0 0.0
        %1048 = vmatpush1.msra.mxu0 %v1009
        %1049 = vmatprep.subr.mxu0 0.0
        %1050 = vmatpush1.msra.mxu0 0.0
        %1051 = vmatprep.subr.mxu0 0.0
        %1052 = vmatpush1.msra.mxu0 0.0
        %1053 = vmatprep.subr.mxu0 0.0
        %1054 = vmatpush1.msra.mxu0 0.0
        %1055 = vmatprep.subr.mxu0 0.0
        %1056 = vmatpush1.msra.mxu0 0.0
        %1057 = vmatprep.subr.mxu0 0.0
        %1058 = vmatpush1.msra.mxu0 0.0
        %1059 = vmatprep.subr.mxu0 0.0
        %1060 = vmatpush1.msra.mxu0 0.0
        %1061 = vmatprep.subr.mxu0 0.0
        %1062 = vmatpush1.msra.mxu0 0.0
        %1063 = vmatprep.subr.mxu0 0.0
        %1064 = vmatpush1.msra.mxu0 0.0
        %1065 = vmatprep.subr.mxu0 0.0
        %1066 = vmatpush1.msra.mxu0 0.0
        %1067 = vmatprep.subr.mxu0 0.0
        %1068 = vmatpush1.msra.mxu0 0.0
        %1069 = vmatprep.subr.mxu0 0.0
        %1070 = vmatpush1.msra.mxu0 0.0
        %1071 = vmatprep.subr.mxu0 0.0
        %1072 = vmatpush1.msra.mxu0 0.0
        %1073 = vmatprep.subr.mxu0 0.0
        %1074 = vmatpush1.msra.mxu0 0.0
        %1075 = vmatprep.subr.mxu0 0.0
        %1076 = vmatpush1.msra.mxu0 0.0
        %1077 = vmatprep.subr.mxu0 0.0
        %1078 = vmatpush1.msra.mxu0 0.0
        %1079 = vmatprep.subr.mxu0 0.0
        %1080 = vmatpush1.msra.mxu0 0.0
        %1081 = vmatprep.mubr.f32.mxu0 0.0
        %1082 = vmatmul.mubr.f32.gmra.mrb[0].mxu0 %v993
        %v1083 = vpop.f32.mrb[0].mxu0
        %v1084 = vadd.f32 %v1015, %v1083
        %v1085 = vpop.f32.mrb[0].mxu0
        %1086 = vdwg.mxu0
        %v1087 = vadd.f32 %v879, %v1084
        %1088 = vst.msk [vmem:[%s415] sm:$0xff] %vm427, %v1087
        %s1089 = sand.u32 %s296, 1
        %s1090 = scalar_lea.sflag [#allocation5], %s1089
        %s1091 = sand.u32 %s296, 1
        %s1092 = smul.addr %s1091, 8
        %s1093 = scalar_lea.vmem [#allocation4], %s1092
        // Predicated region
        $region76: #{tpu_custom_call.1} parent=67 // pred_check
          %p1094 = pneg %p306
        $region77: #{tpu_custom_call.1} parent=67 // pred_check_branch
          %1096 = sbr.rel (%p1094) target = $region79
        $region78: #{tpu_custom_call.1} parent=67 // pred_region
          %s1098 = ssub.s32 128, 128
          %1099 = vsyncadd %s1090, %s1098
          %s1100 = smul.addr %s26, 128
          %s1101 = scalar_lea.hbm %s12, %s1100
          %s1103 = sshll.u32 %s1093, 4
          %s1104 = int_to_ptr.vmem [resolvable:$true] %s1103
          %1106 = dma.vmem_to_hbm [thread:$0]  %s1104, 128, %s1101, %s1090
        $region79: #{tpu_custom_call.1} parent=67 // pred_fallthru
          _
      $region68: #{tpu_custom_call.1} parent=5 // pred_fallthru
        _
      %p1107 = scmp.le.s32.totalorder 2, %s21
      // Predicated region
      $region80: #{tpu_custom_call.1} parent=5 // pred_check
        %p1108 = pneg %p1107
      $region81: #{tpu_custom_call.1} parent=5 // pred_check_branch
        %1110 = sbr.rel (%p1108) target = $region83
      $region82: #{tpu_custom_call.1} parent=5 // pred_region
        %s1111 = ssub.s32 %s21, 2
        // Predicated region
        $region84: #{tpu_custom_call.1} parent=82 // pred_check
          %p1112 = pneg %p312
        $region85: #{tpu_custom_call.1} parent=82 // pred_check_branch
          %1114 = sbr.rel (%p1112) target = $region87
        $region86: #{tpu_custom_call.1} parent=82 // pred_region
          %s1115 = sand.u32 %s297, 1
          %s1116 = scalar_lea.sflag [#allocation5], %s1115
          %s1117 = sand.u32 %s297, 1
          %s1118 = smul.addr %s1117, 8
          %s1119 = scalar_lea.vmem [#allocation4], %s1118
          %1120 = dma.done %s1116, 128
        $region87: #{tpu_custom_call.1} parent=82 // pred_fallthru
          _
      $region83: #{tpu_custom_call.1} parent=5 // pred_fallthru
        _
    $region6: #{tpu_custom_call.1} parent=1 // loop_footer
      %s25 = sadd.s32 1, %s21
    $region7: #{tpu_custom_call.1} parent=1 // loop_footer_branch
      %20 = sbr.rel target = $region3
    $region8: #{tpu_custom_call.1} parent=1 // loop_exit
      _
    %1121 = vsyncpa [#allocation5], 1
    %s1122 = scalar_lea.sflag [#allocation5], 1
    %1123 = vsyncpa %s1122, 1

// kernel: tpu_custom_call.1
$region0: #{tpu_custom_call.1}
  #allocation0 [shape = 'u32[]', space=smem, size = 0x4, offset = 0x4, fixed_abs, tag = 'smem constant byte address 0x4 - core index']
  #allocation1 [shape = 'u32[144,128]{1,0:T(1,128)}', space=vmem, size = 0x12000, scoped, tag = 'internal scratch']
  #allocation2 [shape = 'f32[12,8,8]{2,1,0:T(8,128)}', space=vmem, size = 0xc000, scoped, tag = 'scratch operand']
  #allocation3 [shape = 'f32[4,8,8]{2,1,0:T(8,128)}', space=vmem, size = 0x4000, scoped, tag = 'scratch operand']
  %s0 = inlined_call_operand.vmem [shape: f32[2,8,32], index: 0, kind: input, shape index: {}]
  %s1 = inlined_call_operand.vmem [shape: s32[2,1,8], index: 1, kind: input, shape index: {}]
  %s2 = inlined_call_operand.vmem [shape: f32[32,96], index: 2, kind: input, shape index: {}]
  %s3 = inlined_call_operand.vmem [shape: f32[32,32], index: 3, kind: input, shape index: {}]
  %s4 = inlined_call_operand.vmem [shape: f32[1,32], index: 4, kind: input, shape index: {}]
  %s5 = inlined_call_operand.vmem [shape: f32[1,32], index: 5, kind: input, shape index: {}]
  %s6 = inlined_call_operand.vmem [shape: f32[1,32], index: 6, kind: input, shape index: {}]
  %s7 = inlined_call_operand.vmem [shape: f32[1,32], index: 7, kind: input, shape index: {}]
  %s8 = inlined_call_operand.vmem [shape: f32[32,128], index: 8, kind: input, shape index: {}]
  %s9 = inlined_call_operand.vmem [shape: f32[1,128], index: 9, kind: input, shape index: {}]
  %s10 = inlined_call_operand.vmem [shape: f32[128,32], index: 10, kind: input, shape index: {}]
  %s11 = inlined_call_operand.vmem [shape: f32[1,32], index: 11, kind: input, shape index: {}]
  %s12 = inlined_call_operand.hbm [shape: f32[2,8,32], index: 12, kind: output, shape index: {}]
  %s13 = sld [smem:[#allocation0]]
  $region88: #{tpu_custom_call.1} parent=0
    _
  %s15 = ssub.s32 1, %s13
  %s16 = scalar_select 0, %s15, %s13
  $region1: #{tpu_custom_call.1} parent=0
    #allocation4 [shape = 'u8[8192]{0}', space=vmem, size = 0x2000, scoped, tag = 'output window, operand 0']
    #allocation5 [shape = 's32[2]{0}', space=sflag, size = 0x8, scoped, tag = 'scoped memory for tpu_custom_call.1']
    %17 = vsyncpa [#allocation5], 0
    %s18 = scalar_lea.sflag [#allocation5], 1
    %19 = vsyncpa %s18, 0
    loop: start=0, step=1, limit=4
    $region2: #{tpu_custom_call.1} parent=1 // loop_pre_header
      _
    $region3: #{tpu_custom_call.1} parent=1 // loop_header
      %s21 = sphi 0, %s25
      %p22 = scmp.ge.s32.totalorder %s21, 4
      %s31 = sphi 0, %s33
      %s34 = sphi 0, %s31
      %s35 = sphi 0, %s34
      %s51 = sphi 0, %s35
      %s57 = sphi 0, %s59
      %s60 = sphi 0, %s57
      %s61 = sphi 0, %s60
      %s77 = sphi 0, %s61
      %s81 = sphi 0, %s81
      %s83 = sphi 0, %s81
      %s84 = sphi 0, %s83
      %s98 = sphi 0, %s84
      %s102 = sphi 0, %s102
      %s104 = sphi 0, %s102
      %s105 = sphi 0, %s104
      %s119 = sphi 0, %s105
      %s123 = sphi 0, %s123
      %s125 = sphi 0, %s123
      %s126 = sphi 0, %s125
      %s140 = sphi 0, %s126
      %s144 = sphi 0, %s144
      %s146 = sphi 0, %s144
      %s147 = sphi 0, %s146
      %s161 = sphi 0, %s147
      %s165 = sphi 0, %s165
      %s167 = sphi 0, %s165
      %s168 = sphi 0, %s167
      %s182 = sphi 0, %s168
      %s186 = sphi 0, %s186
      %s188 = sphi 0, %s186
      %s189 = sphi 0, %s188
      %s203 = sphi 0, %s189
      %s207 = sphi 0, %s207
      %s209 = sphi 0, %s207
      %s210 = sphi 0, %s209
      %s224 = sphi 0, %s210
      %s228 = sphi 0, %s228
      %s230 = sphi 0, %s228
      %s231 = sphi 0, %s230
      %s245 = sphi 0, %s231
      %s249 = sphi 0, %s249
      %s251 = sphi 0, %s249
      %s252 = sphi 0, %s251
      %s266 = sphi 0, %s252
      %s270 = sphi 0, %s270
      %s272 = sphi 0, %s270
      %s273 = sphi 0, %s272
      %s287 = sphi 0, %s273
      %s293 = sphi 0, %s295
      %s296 = sphi 0, %s293
      %s297 = sphi 0, %s296
      %s313 = sphi 0, %s297
    $region4: #{tpu_custom_call.1} parent=1 // loop_header_branch
      %24 = sbr.rel (%p22) target = $region8
    $region5: #{tpu_custom_call.1} parent=1 // loop_body
      %s26 = ssub.s32 %s21, 1
      %s27 = ssub.s32 %s21, 2
      %s28 = sadd.s32 %s21, 1
      %s29 = ssub.s32 %s21, %s28
      %p30 = scmp.eq.s32.totalorder %s29, 0
      %s32 = sadd.s32 %s31, 1
      %s33 = scalar_select %p30, %s31, %s32
      %p36 = pneg %p30
      %p37 = scmp.eq.s32.totalorder %s21, 1
      %p38 = por %p36, %p37
      %p39 = scmp.ne.s32.totalorder %s31, %s34
      %p40 = scmp.eq.s32.totalorder %s21, 0
      %p41 = por %p39, %p40
      %p42 = scmp.ne.s32.totalorder %s31, %s34
      %p43 = scmp.eq.s32.totalorder %s26, 1
      %p44 = por %p42, %p43
      %p45 = scmp.ne.s32.totalorder %s34, %s35
      %p46 = scmp.eq.s32.totalorder %s26, 0
      %p47 = por %p45, %p46
      %p48 = scmp.ne.s32.totalorder %s34, %s35
      %p49 = scmp.eq.s32.totalorder %s27, 1
      %p50 = por %p48, %p49
      %p52 = scmp.ne.s32.totalorder %s35, %s51
      %p53 = scmp.eq.s32.totalorder %s27, 0
      %p54 = por %p52, %p53
      %s55 = ssub.s32 %s21, %s28
      %p56 = scmp.eq.s32.totalorder %s55, 0
      %s58 = sadd.s32 %s57, 1
      %s59 = scalar_select %p56, %s57, %s58
      %p62 = pneg %p56
      %p63 = scmp.eq.s32.totalorder %s21, 1
      %p64 = por %p62, %p63
      %p65 = scmp.ne.s32.totalorder %s57, %s60
      %p66 = scmp.eq.s32.totalorder %s21, 0
      %p67 = por %p65, %p66
      %p68 = scmp.ne.s32.totalorder %s57, %s60
      %p69 = scmp.eq.s32.totalorder %s26, 1
      %p70 = por %p68, %p69
      %p71 = scmp.ne.s32.totalorder %s60, %s61
      %p72 = scmp.eq.s32.totalorder %s26, 0
      %p73 = por %p71, %p72
      %p74 = scmp.ne.s32.totalorder %s60, %s61
      %p75 = scmp.eq.s32.totalorder %s27, 1
      %p76 = por %p74, %p75
      %p78 = scmp.ne.s32.totalorder %s61, %s77
      %p79 = scmp.eq.s32.totalorder %s27, 0
      %p80 = por %p78, %p79
      %s82 = sadd.s32 %s81, 1
      %p85 = scmp.eq.s32.totalorder %s21, 1
      %p86 = scmp.ne.s32.totalorder %s81, %s83
      %p87 = scmp.eq.s32.totalorder %s21, 0
      %p88 = por %p86, %p87
      %p89 = scmp.ne.s32.totalorder %s81, %s83
      %p90 = scmp.eq.s32.totalorder %s26, 1
      %p91 = por %p89, %p90
      %p92 = scmp.ne.s32.totalorder %s83, %s84
      %p93 = scmp.eq.s32.totalorder %s26, 0
      %p94 = por %p92, %p93
      %p95 = scmp.ne.s32.totalorder %s83, %s84
      %p96 = scmp.eq.s32.totalorder %s27, 1
      %p97 = por %p95, %p96
      %p99 = scmp.ne.s32.totalorder %s84, %s98
      %p100 = scmp.eq.s32.totalorder %s27, 0
      %p101 = por %p99, %p100
      %s103 = sadd.s32 %s102, 1
      %p106 = scmp.eq.s32.totalorder %s21, 1
      %p107 = scmp.ne.s32.totalorder %s102, %s104
      %p108 = scmp.eq.s32.totalorder %s21, 0
      %p109 = por %p107, %p108
      %p110 = scmp.ne.s32.totalorder %s102, %s104
      %p111 = scmp.eq.s32.totalorder %s26, 1
      %p112 = por %p110, %p111
      %p113 = scmp.ne.s32.totalorder %s104, %s105
      %p114 = scmp.eq.s32.totalorder %s26, 0
      %p115 = por %p113, %p114
      %p116 = scmp.ne.s32.totalorder %s104, %s105
      %p117 = scmp.eq.s32.totalorder %s27, 1
      %p118 = por %p116, %p117
      %p120 = scmp.ne.s32.totalorder %s105, %s119
      %p121 = scmp.eq.s32.totalorder %s27, 0
      %p122 = por %p120, %p121
      %s124 = sadd.s32 %s123, 1
      %p127 = scmp.eq.s32.totalorder %s21, 1
      %p128 = scmp.ne.s32.totalorder %s123, %s125
      %p129 = scmp.eq.s32.totalorder %s21, 0
      %p130 = por %p128, %p129
      %p131 = scmp.ne.s32.totalorder %s123, %s125
      %p132 = scmp.eq.s32.totalorder %s26, 1
      %p133 = por %p131, %p132
      %p134 = scmp.ne.s32.totalorder %s125, %s126
      %p135 = scmp.eq.s32.totalorder %s26, 0
      %p136 = por %p134, %p135
      %p137 = scmp.ne.s32.totalorder %s125, %s126
      %p138 = scmp.eq.s32.totalorder %s27, 1
      %p139 = por %p137, %p138
      %p141 = scmp.ne.s32.totalorder %s126, %s140
      %p142 = scmp.eq.s32.totalorder %s27, 0
      %p143 = por %p141, %p142
      %s145 = sadd.s32 %s144, 1
      %p148 = scmp.eq.s32.totalorder %s21, 1
      %p149 = scmp.ne.s32.totalorder %s144, %s146
      %p150 = scmp.eq.s32.totalorder %s21, 0
      %p151 = por %p149, %p150
      %p152 = scmp.ne.s32.totalorder %s144, %s146
      %p153 = scmp.eq.s32.totalorder %s26, 1
      %p154 = por %p152, %p153
      %p155 = scmp.ne.s32.totalorder %s146, %s147
      %p156 = scmp.eq.s32.totalorder %s26, 0
      %p157 = por %p155, %p156
      %p158 = scmp.ne.s32.totalorder %s146, %s147
      %p159 = scmp.eq.s32.totalorder %s27, 1
      %p160 = por %p158, %p159
      %p162 = scmp.ne.s32.totalorder %s147, %s161
      %p163 = scmp.eq.s32.totalorder %s27, 0
      %p164 = por %p162, %p163
      %s166 = sadd.s32 %s165, 1
      %p169 = scmp.eq.s32.totalorder %s21, 1
      %p170 = scmp.ne.s32.totalorder %s165, %s167
      %p171 = scmp.eq.s32.totalorder %s21, 0
      %p172 = por %p170, %p171
      %p173 = scmp.ne.s32.totalorder %s165, %s167
      %p174 = scmp.eq.s32.totalorder %s26, 1
      %p175 = por %p173, %p174
      %p176 = scmp.ne.s32.totalorder %s167, %s168
      %p177 = scmp.eq.s32.totalorder %s26, 0
      %p178 = por %p176, %p177
      %p179 = scmp.ne.s32.totalorder %s167, %s168
      %p180 = scmp.eq.s32.totalorder %s27, 1
      %p181 = por %p179, %p180
      %p183 = scmp.ne.s32.totalorder %s168, %s182
      %p184 = scmp.eq.s32.totalorder %s27, 0
      %p185 = por %p183, %p184
      %s187 = sadd.s32 %s186, 1
      %p190 = scmp.eq.s32.totalorder %s21, 1
      %p191 = scmp.ne.s32.totalorder %s186, %s188
      %p192 = scmp.eq.s32.totalorder %s21, 0
      %p193 = por %p191, %p192
      %p194 = scmp.ne.s32.totalorder %s186, %s188
      %p195 = scmp.eq.s32.totalorder %s26, 1
      %p196 = por %p194, %p195
      %p197 = scmp.ne.s32.totalorder %s188, %s189
      %p198 = scmp.eq.s32.totalorder %s26, 0
      %p199 = por %p197, %p198
      %p200 = scmp.ne.s32.totalorder %s188, %s189
      %p201 = scmp.eq.s32.totalorder %s27, 1
      %p202 = por %p200, %p201
      %p204 = scmp.ne.s32.totalorder %s189, %s203
      %p205 = scmp.eq.s32.totalorder %s27, 0
      %p206 = por %p204, %p205
      %s208 = sadd.s32 %s207, 1
      %p211 = scmp.eq.s32.totalorder %s21, 1
      %p212 = scmp.ne.s32.totalorder %s207, %s209
      %p213 = scmp.eq.s32.totalorder %s21, 0
      %p214 = por %p212, %p213
      %p215 = scmp.ne.s32.totalorder %s207, %s209
      %p216 = scmp.eq.s32.totalorder %s26, 1
      %p217 = por %p215, %p216
      %p218 = scmp.ne.s32.totalorder %s209, %s210
      %p219 = scmp.eq.s32.totalorder %s26, 0
      %p220 = por %p218, %p219
      %p221 = scmp.ne.s32.totalorder %s209, %s210
      %p222 = scmp.eq.s32.totalorder %s27, 1
      %p223 = por %p221, %p222
      %p225 = scmp.ne.s32.totalorder %s210, %s224
      %p226 = scmp.eq.s32.totalorder %s27, 0
      %p227 = por %p225, %p226
      %s229 = sadd.s32 %s228, 1
      %p232 = scmp.eq.s32.totalorder %s21, 1
      %p233 = scmp.ne.s32.totalorder %s228, %s230
      %p234 = scmp.eq.s32.totalorder %s21, 0
      %p235 = por %p233, %p234
      %p236 = scmp.ne.s32.totalorder %s228, %s230
      %p237 = scmp.eq.s32.totalorder %s26, 1
      %p238 = por %p236, %p237
      %p239 = scmp.ne.s32.totalorder %s230, %s231
      %p240 = scmp.eq.s32.totalorder %s26, 0
      %p241 = por %p239, %p240
      %p242 = scmp.ne.s32.totalorder %s230, %s231
      %p243 = scmp.eq.s32.totalorder %s27, 1
      %p244 = por %p242, %p243
      %p246 = scmp.ne.s32.totalorder %s231, %s245
      %p247 = scmp.eq.s32.totalorder %s27, 0
      %p248 = por %p246, %p247
      %s250 = sadd.s32 %s249, 1
      %p253 = scmp.eq.s32.totalorder %s21, 1
      %p254 = scmp.ne.s32.totalorder %s249, %s251
      %p255 = scmp.eq.s32.totalorder %s21, 0
      %p256 = por %p254, %p255
      %p257 = scmp.ne.s32.totalorder %s249, %s251
      %p258 = scmp.eq.s32.totalorder %s26, 1
      %p259 = por %p257, %p258
      %p260 = scmp.ne.s32.totalorder %s251, %s252
      %p261 = scmp.eq.s32.totalorder %s26, 0
      %p262 = por %p260, %p261
      %p263 = scmp.ne.s32.totalorder %s251, %s252
      %p264 = scmp.eq.s32.totalorder %s27, 1
      %p265 = por %p263, %p264
      %p267 = scmp.ne.s32.totalorder %s252, %s266
      %p268 = scmp.eq.s32.totalorder %s27, 0
      %p269 = por %p267, %p268
      %s271 = sadd.s32 %s270, 1
      %p274 = scmp.eq.s32.totalorder %s21, 1
      %p275 = scmp.ne.s32.totalorder %s270, %s272
      %p276 = scmp.eq.s32.totalorder %s21, 0
      %p277 = por %p275, %p276
      %p278 = scmp.ne.s32.totalorder %s270, %s272
      %p279 = scmp.eq.s32.totalorder %s26, 1
      %p280 = por %p278, %p279
      %p281 = scmp.ne.s32.totalorder %s272, %s273
      %p282 = scmp.eq.s32.totalorder %s26, 0
      %p283 = por %p281, %p282
      %p284 = scmp.ne.s32.totalorder %s272, %s273
      %p285 = scmp.eq.s32.totalorder %s27, 1
      %p286 = por %p284, %p285
      %p288 = scmp.ne.s32.totalorder %s273, %s287
      %p289 = scmp.eq.s32.totalorder %s27, 0
      %p290 = por %p288, %p289
      %s291 = ssub.s32 %s21, %s28
      %p292 = scmp.eq.s32.totalorder %s291, 0
      %s294 = sadd.s32 %s293, 1
      %s295 = scalar_select %p292, %s293, %s294
      %p298 = pneg %p292
      %p299 = scmp.eq.s32.totalorder %s21, 1
      %p300 = por %p298, %p299
      %p301 = scmp.ne.s32.totalorder %s293, %s296
      %p302 = scmp.eq.s32.totalorder %s21, 0
      %p303 = por %p301, %p302
      %p304 = scmp.ne.s32.totalorder %s293, %s296
      %p305 = scmp.eq.s32.totalorder %s26, 1
      %p306 = por %p304, %p305
      %p307 = scmp.ne.s32.totalorder %s296, %s297
      %p308 = scmp.eq.s32.totalorder %s26, 0
      %p309 = por %p307, %p308
      %p310 = scmp.ne.s32.totalorder %s296, %s297
      %p311 = scmp.eq.s32.totalorder %s27, 1
      %p312 = por %p310, %p311
      %p314 = scmp.ne.s32.totalorder %s297, %s313
      %p315 = scmp.eq.s32.totalorder %s27, 0
      %p316 = por %p314, %p315
      %p317 = scmp.le.s32.totalorder 1, %s21
      %p318 = scmp.lt.s32.totalorder %s21, 3
      %p319 = pnand %p317, %p318
      %p320 = pneg %p319
      // Predicated region
      $region9: #{tpu_custom_call.1} parent=5 // pred_check
        _
      $region10: #{tpu_custom_call.1} parent=5 // pred_check_branch
        %322 = sbr.rel (%p319) target = $region12
      $region11: #{tpu_custom_call.1} parent=5 // pred_region
        %s323 = ssub.s32 %s21, 1
        // Predicated region
        $region13: #{tpu_custom_call.1} parent=11 // pred_check
          %p324 = pneg %p94
        $region14: #{tpu_custom_call.1} parent=11 // pred_check_branch
          %326 = sbr.rel (%p324) target = $region16
        $region15: #{tpu_custom_call.1} parent=11 // pred_region
          _
        $region16: #{tpu_custom_call.1} parent=11 // pred_fallthru
          _
        // Predicated region
        $region17: #{tpu_custom_call.1} parent=11 // pred_check
          %p327 = pneg %p115
        $region18: #{tpu_custom_call.1} parent=11 // pred_check_branch
          %329 = sbr.rel (%p327) target = $region20
        $region19: #{tpu_custom_call.1} parent=11 // pred_region
          _
        $region20: #{tpu_custom_call.1} parent=11 // pred_fallthru
          _
        // Predicated region
        $region21: #{tpu_custom_call.1} parent=11 // pred_check
          %p330 = pneg %p136
        $region22: #{tpu_custom_call.1} parent=11 // pred_check_branch
          %332 = sbr.rel (%p330) target = $region24
        $region23: #{tpu_custom_call.1} parent=11 // pred_region
          _
        $region24: #{tpu_custom_call.1} parent=11 // pred_fallthru
          _
        // Predicated region
        $region25: #{tpu_custom_call.1} parent=11 // pred_check
          %p333 = pneg %p157
        $region26: #{tpu_custom_call.1} parent=11 // pred_check_branch
          %335 = sbr.rel (%p333) target = $region28
        $region27: #{tpu_custom_call.1} parent=11 // pred_region
          _
        $region28: #{tpu_custom_call.1} parent=11 // pred_fallthru
          _
        // Predicated region
        $region29: #{tpu_custom_call.1} parent=11 // pred_check
          %p336 = pneg %p178
        $region30: #{tpu_custom_call.1} parent=11 // pred_check_branch
          %338 = sbr.rel (%p336) target = $region32
        $region31: #{tpu_custom_call.1} parent=11 // pred_region
          _
        $region32: #{tpu_custom_call.1} parent=11 // pred_fallthru
          _
        // Predicated region
        $region33: #{tpu_custom_call.1} parent=11 // pred_check
          %p339 = pneg %p199
        $region34: #{tpu_custom_call.1} parent=11 // pred_check_branch
          %341 = sbr.rel (%p339) target = $region36
        $region35: #{tpu_custom_call.1} parent=11 // pred_region
          _
        $region36: #{tpu_custom_call.1} parent=11 // pred_fallthru
          _
        // Predicated region
        $region37: #{tpu_custom_call.1} parent=11 // pred_check
          %p342 = pneg %p220
        $region38: #{tpu_custom_call.1} parent=11 // pred_check_branch
          %344 = sbr.rel (%p342) target = $region40
        $region39: #{tpu_custom_call.1} parent=11 // pred_region
          _
        $region40: #{tpu_custom_call.1} parent=11 // pred_fallthru
          _
        // Predicated region
        $region41: #{tpu_custom_call.1} parent=11 // pred_check
          %p345 = pneg %p241
        $region42: #{tpu_custom_call.1} parent=11 // pred_check_branch
          %347 = sbr.rel (%p345) target = $region44
        $region43: #{tpu_custom_call.1} parent=11 // pred_region
          _
        $region44: #{tpu_custom_call.1} parent=11 // pred_fallthru
          _
        // Predicated region
        $region45: #{tpu_custom_call.1} parent=11 // pred_check
          %p348 = pneg %p262
        $region46: #{tpu_custom_call.1} parent=11 // pred_check_branch
          %350 = sbr.rel (%p348) target = $region48
        $region47: #{tpu_custom_call.1} parent=11 // pred_region
          _
        $region48: #{tpu_custom_call.1} parent=11 // pred_fallthru
          _
        // Predicated region
        $region49: #{tpu_custom_call.1} parent=11 // pred_check
          %p351 = pneg %p283
        $region50: #{tpu_custom_call.1} parent=11 // pred_check_branch
          %353 = sbr.rel (%p351) target = $region52
        $region51: #{tpu_custom_call.1} parent=11 // pred_region
          _
        $region52: #{tpu_custom_call.1} parent=11 // pred_fallthru
          _
      $region12: #{tpu_custom_call.1} parent=5 // pred_fallthru
        _
      %p354 = scmp.lt.s32.totalorder %s21, 2
      // Predicated region
      $region53: #{tpu_custom_call.1} parent=5 // pred_check
        %p355 = pneg %p354
      $region54: #{tpu_custom_call.1} parent=5 // pred_check_branch
        %357 = sbr.rel (%p355) target = $region56
      $region55: #{tpu_custom_call.1} parent=5 // pred_region
        // Predicated region
        $region57: #{tpu_custom_call.1} parent=55 // pred_check
          %p358 = pneg %p41
        $region58: #{tpu_custom_call.1} parent=55 // pred_check_branch
          %360 = sbr.rel (%p358) target = $region60
        $region59: #{tpu_custom_call.1} parent=55 // pred_region
          %p361 = scmp.lt.s32.totalorder %s21, 1
          %s362 = scalar_select %p361, %s21, 1
          %s363 = smul.addr %s362, 8
          %s364 = scalar_lea.vmem %s0, %s363
        $region60: #{tpu_custom_call.1} parent=55 // pred_fallthru
          _
        // Predicated region
        $region61: #{tpu_custom_call.1} parent=55 // pred_check
          %p365 = pneg %p67
        $region62: #{tpu_custom_call.1} parent=55 // pred_check_branch
          %367 = sbr.rel (%p365) target = $region64
        $region63: #{tpu_custom_call.1} parent=55 // pred_region
          %p368 = scmp.lt.s32.totalorder %s21, 1
          %s369 = scalar_select %p368, %s21, 1
          %s370 = scalar_lea.vmem %s1, %s369
        $region64: #{tpu_custom_call.1} parent=55 // pred_fallthru
          _
      $region56: #{tpu_custom_call.1} parent=5 // pred_fallthru
        _
      %p371 = scmp.le.s32.totalorder 1, %s21
      %p372 = scmp.lt.s32.totalorder %s21, 3
      %p373 = pnand %p371, %p372
      %p374 = pneg %p373
      // Predicated region
      $region65: #{tpu_custom_call.1} parent=5 // pred_check
        _
      $region66: #{tpu_custom_call.1} parent=5 // pred_check_branch
        %376 = sbr.rel (%p373) target = $region68
      $region67: #{tpu_custom_call.1} parent=5 // pred_region
        %s377 = ssub.s32 %s21, 1
        %p378 = scmp.lt.s32.totalorder %s26, 1
        %s379 = scalar_select %p378, %s26, 1
        %s380 = smul.addr %s379, 8
        %s381 = scalar_lea.vmem %s0, %s380
        %p382 = pneg %p47
        %p383 = pneg %p44
        %p384 = scmp.lt.s32.totalorder %s26, 1
        %s385 = scalar_select %p384, %s26, 1
        %s386 = scalar_lea.vmem %s1, %s385
        %p387 = pneg %p73
        %p388 = pneg %p70
        %p389 = pneg %p94
        %p390 = pneg %p91
        %p391 = pneg %p115
        %p392 = pneg %p112
        %p393 = pneg %p136
        %p394 = pneg %p133
        %p395 = pneg %p157
        %p396 = pneg %p154
        %p397 = pneg %p178
        %p398 = pneg %p175
        %p399 = pneg %p199
        %p400 = pneg %p196
        %p401 = pneg %p220
        %p402 = pneg %p217
        %p403 = pneg %p241
        %p404 = pneg %p238
        %p405 = pneg %p262
        %p406 = pneg %p259
        %p407 = pneg %p283
        %p408 = pneg %p280
        %p409 = pneg %p309
        %p410 = pneg %p306
        %s411 = sand.u32 %s296, 1
        %s412 = scalar_lea.sflag [#allocation5], %s411
        %s413 = sand.u32 %s296, 1
        %s414 = smul.addr %s413, 8
        %s415 = scalar_lea.vmem [#allocation4], %s414
        %p416 = scmp.lt.s32.totalorder %s26, 1
        %s417 = scalar_select %p416, %s26, 1
        %s418 = smul.addr %s417, 8
        %s419 = scalar_lea.vmem %s0, %s418
        %p420 = scmp.lt.s32.totalorder %s26, 1
        %s421 = scalar_select %p420, %s26, 1
        %s422 = scalar_lea.vmem %s1, %s421
        %v423 = vld [vmem:[%s419] sm:$0xff]
        %v424 = vld [vmem:[%s422] sm:$0x1]
        %vm425 = vcmp.gt.s32.totalorder %v424, 0
        %v426 = vsel %vm425, -1e+30, 0.0
        %vm427 = vcmask 261120
        %v428 = vsel %vm427, %v423, 0.0
        %429 = vadd.xlane.f32.xlu0 %v428
        %v430 = vpop.xlane.xlu0 %429
        %v431 = vrcp.pop 32.0
        %v432 = vmul.f32 %v430, %v431
        %v433 = vsub.f32 %v423, %v432
        %v434 = vmul.f32 %v433, %v433
        %v435 = vsel %vm427, %v434, 0.0
        %436 = vadd.xlane.f32.xlu0 %v435
        %v437 = vpop.xlane.xlu0 %436
        %v438 = vmul.f32 %v437, %v431
        %v439 = vadd.f32 %v438, 1e-05
        %v440 = vrsqrt.pop %v439
        %v441 = vmul.f32 %v433, %v440
        %v442 = vld [vmem:[%s4] sm:$0x1]
        %v444 = vlaneseq
        %v445 = vshrl.u32 %v444, 7
        %v446 = vsub.s32 0, %v445
        %v447 = vrot.slane %v442, %v446
        %v449 = vmul.f32 %v441, %v447
        %v450 = vld [vmem:[%s5] sm:$0x1]
        %v452 = vlaneseq
        %v453 = vshrl.u32 %v452, 7
        %v454 = vsub.s32 0, %v453
        %v455 = vrot.slane %v450, %v454
        %v457 = vadd.f32 %v449, %v455
        %v458 = vld [vmem:[%s2] sm:$0xff]
        %v459 = vld [vmem:[%s2 + $0x8] sm:$0xff]
        %v460 = vld [vmem:[%s2 + $0x10] sm:$0xff]
        %v461 = vld [vmem:[%s2 + $0x18] sm:$0xff]
        %v463 = vsel %vm427, %v457, 0
        %465 = vmatprep.subr.mxu0 0.0
        %466 = vmatpush1.msra.mxu0 %v458
        %467 = vmatprep.subr.mxu0 0.0
        %468 = vmatpush1.msra.mxu0 %v459
        %469 = vmatprep.subr.mxu0 0.0
        %470 = vmatpush1.msra.mxu0 %v460
        %471 = vmatprep.subr.mxu0 0.0
        %472 = vmatpush1.msra.mxu0 %v461
        %473 = vmatprep.subr.mxu0 0.0
        %474 = vmatpush1.msra.mxu0 0.0
        %475 = vmatprep.subr.mxu0 0.0
        %476 = vmatpush1.msra.mxu0 0.0
        %477 = vmatprep.subr.mxu0 0.0
        %478 = vmatpush1.msra.mxu0 0.0
        %479 = vmatprep.subr.mxu0 0.0
        %480 = vmatpush1.msra.mxu0 0.0
        %481 = vmatprep.subr.mxu0 0.0
        %482 = vmatpush1.msra.mxu0 0.0
        %483 = vmatprep.subr.mxu0 0.0
        %484 = vmatpush1.msra.mxu0 0.0
        %485 = vmatprep.subr.mxu0 0.0
        %486 = vmatpush1.msra.mxu0 0.0
        %487 = vmatprep.subr.mxu0 0.0
        %488 = vmatpush1.msra.mxu0 0.0
        %489 = vmatprep.subr.mxu0 0.0
        %490 = vmatpush1.msra.mxu0 0.0
        %491 = vmatprep.subr.mxu0 0.0
        %492 = vmatpush1.msra.mxu0 0.0
        %493 = vmatprep.subr.mxu0 0.0
        %494 = vmatpush1.msra.mxu0 0.0
        %495 = vmatprep.subr.mxu0 0.0
        %496 = vmatpush1.msra.mxu0 0.0
        %497 = vmatprep.subr.mxu0 0.0
        %498 = vmatpush1.msra.mxu0 0.0
        %499 = vmatprep.subr.mxu0 0.0
        %500 = vmatpush1.msra.mxu0 0.0
        %501 = vmatprep.subr.mxu0 0.0
        %502 = vmatpush1.msra.mxu0 0.0
        %503 = vmatprep.subr.mxu0 0.0
        %504 = vmatpush1.msra.mxu0 0.0
        %505 = vmatprep.subr.mxu0 0.0
        %506 = vmatpush1.msra.mxu0 0.0
        %507 = vmatprep.subr.mxu0 0.0
        %508 = vmatpush1.msra.mxu0 0.0
        %509 = vmatprep.subr.mxu0 0.0
        %510 = vmatpush1.msra.mxu0 0.0
        %511 = vmatprep.subr.mxu0 0.0
        %512 = vmatpush1.msra.mxu0 0.0
        %513 = vmatprep.subr.mxu0 0.0
        %514 = vmatpush1.msra.mxu0 0.0
        %515 = vmatprep.subr.mxu0 0.0
        %516 = vmatpush1.msra.mxu0 0.0
        %517 = vmatprep.subr.mxu0 0.0
        %518 = vmatpush1.msra.mxu0 0.0
        %519 = vmatprep.subr.mxu0 0.0
        %520 = vmatpush1.msra.mxu0 0.0
        %521 = vmatprep.subr.mxu0 0.0
        %522 = vmatpush1.msra.mxu0 0.0
        %523 = vmatprep.subr.mxu0 0.0
        %524 = vmatpush1.msra.mxu0 0.0
        %525 = vmatprep.subr.mxu0 0.0
        %526 = vmatpush1.msra.mxu0 0.0
        %527 = vmatprep.subr.mxu0 0.0
        %528 = vmatpush1.msra.mxu0 0.0
        %529 = vmatprep.mubr.f32.mxu0 0.0
        %530 = vmatmul.mubr.f32.gmra.mrb[0].mxu0 %v463
        %v531 = vpop.f32.mrb[0].mxu0
        %v532 = vadd.f32 0.0, %v531
        %v533 = vpop.f32.mrb[0].mxu0
        %534 = vdwg.mxu0
        %vm535 = vcmask 64512
        %536 = vst.msk [vmem:[#allocation2] sm:$0xff] %vm535, %v532
        %538 = vrot.lane.b32.xlu0 %v532, 120
        %v539 = vpop.permute.xlu0 %538
        %s541 = scalar_lea.vmem [#allocation2], 8
        %542 = vst.msk [vmem:[%s541] sm:$0xff] %vm535, %v539
        %543 = vrot.lane.b32.xlu0 %v532, 112
        %v544 = vpop.permute.xlu0 %543
        %s546 = scalar_lea.vmem [#allocation2], 16
        %547 = vst.msk [vmem:[%s546] sm:$0xff] %vm535, %v544
        %548 = vrot.lane.b32.xlu0 %v532, 104
        %v549 = vpop.permute.xlu0 %548
        %s551 = scalar_lea.vmem [#allocation2], 24
        %552 = vst.msk [vmem:[%s551] sm:$0xff] %vm535, %v549
        %553 = vrot.lane.b32.xlu0 %v532, 96
        %v554 = vpop.permute.xlu0 %553
        %s556 = scalar_lea.vmem [#allocation2], 32
        %557 = vst.msk [vmem:[%s556] sm:$0xff] %vm535, %v554
        %558 = vrot.lane.b32.xlu0 %v532, 88
        %v559 = vpop.permute.xlu0 %558
        %s561 = scalar_lea.vmem [#allocation2], 40
        %562 = vst.msk [vmem:[%s561] sm:$0xff] %vm535, %v559
        %563 = vrot.lane.b32.xlu0 %v532, 80
        %v564 = vpop.permute.xlu0 %563
        %s566 = scalar_lea.vmem [#allocation2], 48
        %567 = vst.msk [vmem:[%s566] sm:$0xff] %vm535, %v564
        %568 = vrot.lane.b32.xlu0 %v532, 72
        %v569 = vpop.permute.xlu0 %568
        %s571 = scalar_lea.vmem [#allocation2], 56
        %572 = vst.msk [vmem:[%s571] sm:$0xff] %vm535, %v569
        %573 = vrot.lane.b32.xlu0 %v532, 64
        %v574 = vpop.permute.xlu0 %573
        %s576 = scalar_lea.vmem [#allocation2], 64
        %577 = vst.msk [vmem:[%s576] sm:$0xff] %vm535, %v574
        %578 = vrot.lane.b32.xlu0 %v532, 56
        %v579 = vpop.permute.xlu0 %578
        %s581 = scalar_lea.vmem [#allocation2], 72
        %582 = vst.msk [vmem:[%s581] sm:$0xff] %vm535, %v579
        %583 = vrot.lane.b32.xlu0 %v532, 48
        %v584 = vpop.permute.xlu0 %583
        %s586 = scalar_lea.vmem [#allocation2], 80
        %587 = vst.msk [vmem:[%s586] sm:$0xff] %vm535, %v584
        %588 = vrot.lane.b32.xlu0 %v532, 40
        %v589 = vpop.permute.xlu0 %588
        %s591 = scalar_lea.vmem [#allocation2], 88
        %592 = vst.msk [vmem:[%s591] sm:$0xff] %vm535, %v589
        loop: start=0, step=1, limit=4
        $region69: #{tpu_custom_call.1} parent=67 // loop_pre_header
          _
        $region70: #{tpu_custom_call.1} parent=67 // loop_header
          %s594 = sphi 0, %s598
          %p595 = scmp.ge.s32.totalorder %s594, 4
        $region71: #{tpu_custom_call.1} parent=67 // loop_header_branch
          %597 = sbr.rel (%p595) target = $region75
        $region72: #{tpu_custom_call.1} parent=67 // loop_body
          %s599 = smul.u32 %s594, 8
          %s600 = scalar_lea.vmem [#allocation2], %s599
          %v601 = vld [vmem:[%s600] sm:$0xff]
          %s602 = sadd.s32 %s594, 4
          %s603 = smul.u32 %s602, 8
          %s604 = scalar_lea.vmem [#allocation2], %s603
          %v605 = vld [vmem:[%s604] sm:$0xff]
          %s606 = sadd.s32 %s594, 8
          %s607 = smul.u32 %s606, 8
          %s608 = scalar_lea.vmem [#allocation2], %s607
          %v609 = vld [vmem:[%s608] sm:$0xff]
          %v611 = vlaneseq
          %v612 = vshrl.u32 %v611, 7
          %v613 = vsub.s32 0, %v612
          %v614 = vrot.slane %v426, %v613
          %v617 = vsel %vm535, %v601, 0
          %v620 = vsel %vm535, %v605, 0
          %622 = vmatprep.subr.mxu0 0.0
          %623 = vmatpush1.xpose.msra.mxu0 %v620
          %624 = vmatprep.subr.mxu0 0.0
          %625 = vmatpush1.xpose.msra.mxu0 0.0
          %626 = vmatprep.subr.mxu0 0.0
          %627 = vmatpush1.xpose.msra.mxu0 0.0
          %628 = vmatprep.subr.mxu0 0.0
          %629 = vmatpush1.xpose.msra.mxu0 0.0
          %630 = vmatprep.subr.mxu0 0.0
          %631 = vmatpush1.xpose.msra.mxu0 0.0
          %632 = vmatprep.subr.mxu0 0.0
          %633 = vmatpush1.xpose.msra.mxu0 0.0
          %634 = vmatprep.subr.mxu0 0.0
          %635 = vmatpush1.xpose.msra.mxu0 0.0
          %636 = vmatprep.subr.mxu0 0.0
          %637 = vmatpush1.xpose.msra.mxu0 0.0
          %638 = vmatprep.subr.mxu0 0.0
          %639 = vmatpush1.xpose.msra.mxu0 0.0
          %640 = vmatprep.subr.mxu0 0.0
          %641 = vmatpush1.xpose.msra.mxu0 0.0
          %642 = vmatprep.subr.mxu0 0.0
          %643 = vmatpush1.xpose.msra.mxu0 0.0
          %644 = vmatprep.subr.mxu0 0.0
          %645 = vmatpush1.xpose.msra.mxu0 0.0
          %646 = vmatprep.subr.mxu0 0.0
          %647 = vmatpush1.xpose.msra.mxu0 0.0
          %648 = vmatprep.subr.mxu0 0.0
          %649 = vmatpush1.xpose.msra.mxu0 0.0
          %650 = vmatprep.subr.mxu0 0.0
          %651 = vmatpush1.xpose.msra.mxu0 0.0
          %652 = vmatprep.subr.mxu0 0.0
          %653 = vmatpush1.xpose.msra.mxu0 0.0
          %654 = vmatprep.subr.mxu0 0.0
          %655 = vmatpush1.xpose.msra.mxu0 0.0
          %656 = vmatprep.subr.mxu0 0.0
          %657 = vmatpush1.xpose.msra.mxu0 0.0
          %658 = vmatprep.subr.mxu0 0.0
          %659 = vmatpush1.xpose.msra.mxu0 0.0
          %660 = vmatprep.subr.mxu0 0.0
          %661 = vmatpush1.xpose.msra.mxu0 0.0
          %662 = vmatprep.subr.mxu0 0.0
          %663 = vmatpush1.xpose.msra.mxu0 0.0
          %664 = vmatprep.subr.mxu0 0.0
          %665 = vmatpush1.xpose.msra.mxu0 0.0
          %666 = vmatprep.subr.mxu0 0.0
          %667 = vmatpush1.xpose.msra.mxu0 0.0
          %668 = vmatprep.subr.mxu0 0.0
          %669 = vmatpush1.xpose.msra.mxu0 0.0
          %670 = vmatprep.subr.mxu0 0.0
          %671 = vmatpush1.xpose.msra.mxu0 0.0
          %672 = vmatprep.subr.mxu0 0.0
          %673 = vmatpush1.xpose.msra.mxu0 0.0
          %674 = vmatprep.subr.mxu0 0.0
          %675 = vmatpush1.xpose.msra.mxu0 0.0
          %676 = vmatprep.subr.mxu0 0.0
          %677 = vmatpush1.xpose.msra.mxu0 0.0
          %678 = vmatprep.subr.mxu0 0.0
          %679 = vmatpush1.xpose.msra.mxu0 0.0
          %680 = vmatprep.subr.mxu0 0.0
          %681 = vmatpush1.xpose.msra.mxu0 0.0
          %682 = vmatprep.subr.mxu0 0.0
          %683 = vmatpush1.xpose.msra.mxu0 0.0
          %684 = vmatprep.subr.mxu0 0.0
          %685 = vmatpush1.xpose.msra.mxu0 0.0
          %686 = vmatprep.mubr.f32.mxu0 0.0
          %687 = vmatmul.mubr.f32.gmra.mrb[0].mxu0 %v617
          %v688 = vpop.f32.mrb[0].mxu0
          %v689 = vadd.f32 %v614, %v688
          %v690 = vpop.f32.mrb[0].mxu0
          %691 = vdwg.mxu0
          %v692 = vsel %vm535, %v689, -inf
          %693 = vmax.xlane.f32.xlu0 %v692
          %v694 = vpop.xlane.xlu0 %693
          %v695 = vsub.f32 %v689, %v694
          %v696 = vmul.f32 %v695, 1.442695
          %v697 = vpow.pop %v696
          %v698 = vsel %vm535, %v697, 0.0
          %699 = vadd.xlane.f32.xlu0 %v698
          %v700 = vpop.xlane.xlu0 %699
          %v701 = vrcp.pop %v700
          %v702 = vmul.f32 %v697, %v701
          %v704 = vsel %vm535, %v702, 0
          %706 = vmatprep.subr.mxu0 0.0
          %707 = vmatpush1.msra.mxu0 %v609
          %708 = vmatprep.subr.mxu0 0.0
          %709 = vmatpush1.msra.mxu0 0.0
          %710 = vmatprep.subr.mxu0 0.0
          %711 = vmatpush1.msra.mxu0 0.0
          %712 = vmatprep.subr.mxu0 0.0
          %713 = vmatpush1.msra.mxu0 0.0
          %714 = vmatprep.subr.mxu0 0.0
          %715 = vmatpush1.msra.mxu0 0.0
          %716 = vmatprep.subr.mxu0 0.0
          %717 = vmatpush1.msra.mxu0 0.0
          %718 = vmatprep.subr.mxu0 0.0
          %719 = vmatpush1.msra.mxu0 0.0
          %720 = vmatprep.subr.mxu0 0.0
          %721 = vmatpush1.msra.mxu0 0.0
          %722 = vmatprep.subr.mxu0 0.0
          %723 = vmatpush1.msra.mxu0 0.0
          %724 = vmatprep.subr.mxu0 0.0
          %725 = vmatpush1.msra.mxu0 0.0
          %726 = vmatprep.subr.mxu0 0.0
          %727 = vmatpush1.msra.mxu0 0.0
          %728 = vmatprep.subr.mxu0 0.0
          %729 = vmatpush1.msra.mxu0 0.0
          %730 = vmatprep.subr.mxu0 0.0
          %731 = vmatpush1.msra.mxu0 0.0
          %732 = vmatprep.subr.mxu0 0.0
          %733 = vmatpush1.msra.mxu0 0.0
          %734 = vmatprep.subr.mxu0 0.0
          %735 = vmatpush1.msra.mxu0 0.0
          %736 = vmatprep.subr.mxu0 0.0
          %737 = vmatpush1.msra.mxu0 0.0
          %738 = vmatprep.subr.mxu0 0.0
          %739 = vmatpush1.msra.mxu0 0.0
          %740 = vmatprep.subr.mxu0 0.0
          %741 = vmatpush1.msra.mxu0 0.0
          %742 = vmatprep.subr.mxu0 0.0
          %743 = vmatpush1.msra.mxu0 0.0
          %744 = vmatprep.subr.mxu0 0.0
          %745 = vmatpush1.msra.mxu0 0.0
          %746 = vmatprep.subr.mxu0 0.0
          %747 = vmatpush1.msra.mxu0 0.0
          %748 = vmatprep.subr.mxu0 0.0
          %749 = vmatpush1.msra.mxu0 0.0
          %750 = vmatprep.subr.mxu0 0.0
          %751 = vmatpush1.msra.mxu0 0.0
          %752 = vmatprep.subr.mxu0 0.0
          %753 = vmatpush1.msra.mxu0 0.0
          %754 = vmatprep.subr.mxu0 0.0
          %755 = vmatpush1.msra.mxu0 0.0
          %756 = vmatprep.subr.mxu0 0.0
          %757 = vmatpush1.msra.mxu0 0.0
          %758 = vmatprep.subr.mxu0 0.0
          %759 = vmatpush1.msra.mxu0 0.0
          %760 = vmatprep.subr.mxu0 0.0
          %761 = vmatpush1.msra.mxu0 0.0
          %762 = vmatprep.subr.mxu0 0.0
          %763 = vmatpush1.msra.mxu0 0.0
          %764 = vmatprep.subr.mxu0 0.0
          %765 = vmatpush1.msra.mxu0 0.0
          %766 = vmatprep.subr.mxu0 0.0
          %767 = vmatpush1.msra.mxu0 0.0
          %768 = vmatprep.subr.mxu0 0.0
          %769 = vmatpush1.msra.mxu0 0.0
          %770 = vmatprep.mubr.f32.mxu0 0.0
          %771 = vmatmul.mubr.f32.gmra.mrb[0].mxu0 %v704
          %v772 = vpop.f32.mrb[0].mxu0
          %v773 = vadd.f32 0.0, %v772
          %v774 = vpop.f32.mrb[0].mxu0
          %775 = vdwg.mxu0
          %s776 = scalar_lea.vmem [#allocation3], %s599
          %777 = vst.msk [vmem:[%s776] sm:$0xff] %vm535, %v773
        $region73: #{tpu_custom_call.1} parent=67 // loop_footer
          %s598 = sadd.s32 1, %s594
        $region74: #{tpu_custom_call.1} parent=67 // loop_footer_branch
          %593 = sbr.rel target = $region70
        $region75: #{tpu_custom_call.1} parent=67 // loop_exit
          _
        %v778 = vld [vmem:[#allocation3] sm:$0xff]
        %s779 = scalar_lea.vmem [#allocation3], 8
        %v780 = vld [vmem:[%s779] sm:$0xff]
        %s781 = scalar_lea.vmem [#allocation3], 16
        %v782 = vld [vmem:[%s781] sm:$0xff]
        %s783 = scalar_lea.vmem [#allocation3], 24
        %v784 = vld [vmem:[%s783] sm:$0xff]
        %786 = vrot.lane.b32.xlu0 %v780, 8
        %v787 = vpop.permute.xlu0 %786
        %790 = vrot.lane.b32.xlu0 %v782, 16
        %v791 = vpop.permute.xlu0 %790
        %794 = vrot.lane.b32.xlu0 %v784, 24
        %v795 = vpop.permute.xlu0 %794
        %v797 = vsel %vm535, %v778, %v787
        %vm798 = vcmask 130048
        %v799 = vsel %vm798, %v797, %v791
        %vm800 = vcmask 195584
        %v801 = vsel %vm800, %v799, %v795
        %v802 = vld [vmem:[%s3] sm:$0xff]
        %v803 = vld [vmem:[%s3 + $0x8] sm:$0xff]
        %v804 = vld [vmem:[%s3 + $0x10] sm:$0xff]
        %v805 = vld [vmem:[%s3 + $0x18] sm:$0xff]
        %v807 = vsel %vm427, %v801, 0
        %809 = vmatprep.subr.mxu0 0.0
        %810 = vmatpush1.msra.mxu0 %v802
        %811 = vmatprep.subr.mxu0 0.0
        %812 = vmatpush1.msra.mxu0 %v803
        %813 = vmatprep.subr.mxu0 0.0
        %814 = vmatpush1.msra.mxu0 %v804
        %815 = vmatprep.subr.mxu0 0.0
        %816 = vmatpush1.msra.mxu0 %v805
        %817 = vmatprep.subr.mxu0 0.0
        %818 = vmatpush1.msra.mxu0 0.0
        %819 = vmatprep.subr.mxu0 0.0
        %820 = vmatpush1.msra.mxu0 0.0
        %821 = vmatprep.subr.mxu0 0.0
        %822 = vmatpush1.msra.mxu0 0.0
        %823 = vmatprep.subr.mxu0 0.0
        %824 = vmatpush1.msra.mxu0 0.0
        %825 = vmatprep.subr.mxu0 0.0
        %826 = vmatpush1.msra.mxu0 0.0
        %827 = vmatprep.subr.mxu0 0.0
        %828 = vmatpush1.msra.mxu0 0.0
        %829 = vmatprep.subr.mxu0 0.0
        %830 = vmatpush1.msra.mxu0 0.0
        %831 = vmatprep.subr.mxu0 0.0
        %832 = vmatpush1.msra.mxu0 0.0
        %833 = vmatprep.subr.mxu0 0.0
        %834 = vmatpush1.msra.mxu0 0.0
        %835 = vmatprep.subr.mxu0 0.0
        %836 = vmatpush1.msra.mxu0 0.0
        %837 = vmatprep.subr.mxu0 0.0
        %838 = vmatpush1.msra.mxu0 0.0
        %839 = vmatprep.subr.mxu0 0.0
        %840 = vmatpush1.msra.mxu0 0.0
        %841 = vmatprep.subr.mxu0 0.0
        %842 = vmatpush1.msra.mxu0 0.0
        %843 = vmatprep.subr.mxu0 0.0
        %844 = vmatpush1.msra.mxu0 0.0
        %845 = vmatprep.subr.mxu0 0.0
        %846 = vmatpush1.msra.mxu0 0.0
        %847 = vmatprep.subr.mxu0 0.0
        %848 = vmatpush1.msra.mxu0 0.0
        %849 = vmatprep.subr.mxu0 0.0
        %850 = vmatpush1.msra.mxu0 0.0
        %851 = vmatprep.subr.mxu0 0.0
        %852 = vmatpush1.msra.mxu0 0.0
        %853 = vmatprep.subr.mxu0 0.0
        %854 = vmatpush1.msra.mxu0 0.0
        %855 = vmatprep.subr.mxu0 0.0
        %856 = vmatpush1.msra.mxu0 0.0
        %857 = vmatprep.subr.mxu0 0.0
        %858 = vmatpush1.msra.mxu0 0.0
        %859 = vmatprep.subr.mxu0 0.0
        %860 = vmatpush1.msra.mxu0 0.0
        %861 = vmatprep.subr.mxu0 0.0
        %862 = vmatpush1.msra.mxu0 0.0
        %863 = vmatprep.subr.mxu0 0.0
        %864 = vmatpush1.msra.mxu0 0.0
        %865 = vmatprep.subr.mxu0 0.0
        %866 = vmatpush1.msra.mxu0 0.0
        %867 = vmatprep.subr.mxu0 0.0
        %868 = vmatpush1.msra.mxu0 0.0
        %869 = vmatprep.subr.mxu0 0.0
        %870 = vmatpush1.msra.mxu0 0.0
        %871 = vmatprep.subr.mxu0 0.0
        %872 = vmatpush1.msra.mxu0 0.0
        %873 = vmatprep.mubr.f32.mxu0 0.0
        %874 = vmatmul.mubr.f32.gmra.mrb[0].mxu0 %v807
        %v875 = vpop.f32.mrb[0].mxu0
        %v876 = vadd.f32 0.0, %v875
        %v877 = vpop.f32.mrb[0].mxu0
        %878 = vdwg.mxu0
        %v879 = vadd.f32 %v423, %v876
        %v880 = vsel %vm427, %v879, 0.0
        %881 = vadd.xlane.f32.xlu0 %v880
        %v882 = vpop.xlane.xlu0 %881
        %v883 = vmul.f32 %v882, %v431
        %v884 = vsub.f32 %v879, %v883
        %v885 = vmul.f32 %v884, %v884
        %v886 = vsel %vm427, %v885, 0.0
        %887 = vadd.xlane.f32.xlu0 %v886
        %v888 = vpop.xlane.xlu0 %887
        %v889 = vmul.f32 %v888, %v431
        %v890 = vadd.f32 %v889, 1e-05
        %v891 = vrsqrt.pop %v890
        %v892 = vmul.f32 %v884, %v891
        %v893 = vld [vmem:[%s6] sm:$0x1]
        %v895 = vlaneseq
        %v896 = vshrl.u32 %v895, 7
        %v897 = vsub.s32 0, %v896
        %v898 = vrot.slane %v893, %v897
        %v900 = vmul.f32 %v892, %v898
        %v901 = vld [vmem:[%s7] sm:$0x1]
        %v903 = vlaneseq
        %v904 = vshrl.u32 %v903, 7
        %v905 = vsub.s32 0, %v904
        %v906 = vrot.slane %v901, %v905
        %v908 = vadd.f32 %v900, %v906
        %v909 = vld [vmem:[%s8] sm:$0xff]
        %v910 = vld [vmem:[%s8 + $0x8] sm:$0xff]
        %v911 = vld [vmem:[%s8 + $0x10] sm:$0xff]
        %v912 = vld [vmem:[%s8 + $0x18] sm:$0xff]
        %v913 = vld [vmem:[%s9] sm:$0x1]
        %v915 = vlaneseq
        %v916 = vshrl.u32 %v915, 7
        %v917 = vsub.s32 0, %v916
        %v918 = vrot.slane %v913, %v917
        %v921 = vsel %vm427, %v908, 0
        %923 = vmatprep.subr.mxu0 0.0
        %924 = vmatpush1.msra.mxu0 %v909
        %925 = vmatprep.subr.mxu0 0.0
        %926 = vmatpush1.msra.mxu0 %v910
        %927 = vmatprep.subr.mxu0 0.0
        %928 = vmatpush1.msra.mxu0 %v911
        %929 = vmatprep.subr.mxu0 0.0
        %930 = vmatpush1.msra.mxu0 %v912
        %931 = vmatprep.subr.mxu0 0.0
        %932 = vmatpush1.msra.mxu0 0.0
        %933 = vmatprep.subr.mxu0 0.0
        %934 = vmatpush1.msra.mxu0 0.0
        %935 = vmatprep.subr.mxu0 0.0
        %936 = vmatpush1.msra.mxu0 0.0
        %937 = vmatprep.subr.mxu0 0.0
        %938 = vmatpush1.msra.mxu0 0.0
        %939 = vmatprep.subr.mxu0 0.0
        %940 = vmatpush1.msra.mxu0 0.0
        %941 = vmatprep.subr.mxu0 0.0
        %942 = vmatpush1.msra.mxu0 0.0
        %943 = vmatprep.subr.mxu0 0.0
        %944 = vmatpush1.msra.mxu0 0.0
        %945 = vmatprep.subr.mxu0 0.0
        %946 = vmatpush1.msra.mxu0 0.0
        %947 = vmatprep.subr.mxu0 0.0
        %948 = vmatpush1.msra.mxu0 0.0
        %949 = vmatprep.subr.mxu0 0.0
        %950 = vmatpush1.msra.mxu0 0.0
        %951 = vmatprep.subr.mxu0 0.0
        %952 = vmatpush1.msra.mxu0 0.0
        %953 = vmatprep.subr.mxu0 0.0
        %954 = vmatpush1.msra.mxu0 0.0
        %955 = vmatprep.subr.mxu0 0.0
        %956 = vmatpush1.msra.mxu0 0.0
        %957 = vmatprep.subr.mxu0 0.0
        %958 = vmatpush1.msra.mxu0 0.0
        %959 = vmatprep.subr.mxu0 0.0
        %960 = vmatpush1.msra.mxu0 0.0
        %961 = vmatprep.subr.mxu0 0.0
        %962 = vmatpush1.msra.mxu0 0.0
        %963 = vmatprep.subr.mxu0 0.0
        %964 = vmatpush1.msra.mxu0 0.0
        %965 = vmatprep.subr.mxu0 0.0
        %966 = vmatpush1.msra.mxu0 0.0
        %967 = vmatprep.subr.mxu0 0.0
        %968 = vmatpush1.msra.mxu0 0.0
        %969 = vmatprep.subr.mxu0 0.0
        %970 = vmatpush1.msra.mxu0 0.0
        %971 = vmatprep.subr.mxu0 0.0
        %972 = vmatpush1.msra.mxu0 0.0
        %973 = vmatprep.subr.mxu0 0.0
        %974 = vmatpush1.msra.mxu0 0.0
        %975 = vmatprep.subr.mxu0 0.0
        %976 = vmatpush1.msra.mxu0 0.0
        %977 = vmatprep.subr.mxu0 0.0
        %978 = vmatpush1.msra.mxu0 0.0
        %979 = vmatprep.subr.mxu0 0.0
        %980 = vmatpush1.msra.mxu0 0.0
        %981 = vmatprep.subr.mxu0 0.0
        %982 = vmatpush1.msra.mxu0 0.0
        %983 = vmatprep.subr.mxu0 0.0
        %984 = vmatpush1.msra.mxu0 0.0
        %985 = vmatprep.subr.mxu0 0.0
        %986 = vmatpush1.msra.mxu0 0.0
        %987 = vmatprep.mubr.f32.mxu0 0.0
        %988 = vmatmul.mubr.f32.gmra.mrb[0].mxu0 %v921
        %v989 = vpop.f32.mrb[0].mxu0
        %v990 = vadd.f32 %v918, %v989
        %v991 = vpop.f32.mrb[0].mxu0
        %992 = vdwg.mxu0
        %v993 = vmax.f32 %v990, 0.0
        %v994 = vld [vmem:[%s10] sm:$0xff]
        %v995 = vld [vmem:[%s10 + $0x8] sm:$0xff]
        %v996 = vld [vmem:[%s10 + $0x10] sm:$0xff]
        %v997 = vld [vmem:[%s10 + $0x18] sm:$0xff]
        %v998 = vld [vmem:[%s10 + $0x20] sm:$0xff]
        %v999 = vld [vmem:[%s10 + $0x28] sm:$0xff]
        %v1000 = vld [vmem:[%s10 + $0x30] sm:$0xff]
        %v1001 = vld [vmem:[%s10 + $0x38] sm:$0xff]
        %v1002 = vld [vmem:[%s10 + $0x40] sm:$0xff]
        %v1003 = vld [vmem:[%s10 + $0x48] sm:$0xff]
        %v1004 = vld [vmem:[%s10 + $0x50] sm:$0xff]
        %v1005 = vld [vmem:[%s10 + $0x58] sm:$0xff]
        %v1006 = vld [vmem:[%s10 + $0x60] sm:$0xff]
        %v1007 = vld [vmem:[%s10 + $0x68] sm:$0xff]
        %v1008 = vld [vmem:[%s10 + $0x70] sm:$0xff]
        %v1009 = vld [vmem:[%s10 + $0x78] sm:$0xff]
        %v1010 = vld [vmem:[%s11] sm:$0x1]
        %v1012 = vlaneseq
        %v1013 = vshrl.u32 %v1012, 7
        %v1014 = vsub.s32 0, %v1013
        %v1015 = vrot.slane %v1010, %v1014
        %1017 = vmatprep.subr.mxu0 0.0
        %1018 = vmatpush1.msra.mxu0 %v994
        %1019 = vmatprep.subr.mxu0 0.0
        %1020 = vmatpush1.msra.mxu0 %v995
        %1021 = vmatprep.subr.mxu0 0.0
        %1022 = vmatpush1.msra.mxu0 %v996
        %1023 = vmatprep.subr.mxu0 0.0
        %1024 = vmatpush1.msra.mxu0 %v997
        %1025 = vmatprep.subr.mxu0 0.0
        %1026 = vmatpush1.msra.mxu0 %v998
        %1027 = vmatprep.subr.mxu0 0.0
        %1028 = vmatpush1.msra.mxu0 %v999
        %1029 = vmatprep.subr.mxu0 0.0
        %1030 = vmatpush1.msra.mxu0 %v1000
        %1031 = vmatprep.subr.mxu0 0.0
        %1032 = vmatpush1.msra.mxu0 %v1001
        %1033 = vmatprep.subr.mxu0 0.0
        %1034 = vmatpush1.msra.mxu0 %v1002
        %1035 = vmatprep.subr.mxu0 0.0
        %1036 = vmatpush1.msra.mxu0 %v1003
        %1037 = vmatprep.subr.mxu0 0.0
        %1038 = vmatpush1.msra.mxu0 %v1004
        %1039 = vmatprep.subr.mxu0 0.0
        %1040 = vmatpush1.msra.mxu0 %v1005
        %1041 = vmatprep.subr.mxu0 0.0
        %1042 = vmatpush1.msra.mxu0 %v1006
        %1043 = vmatprep.subr.mxu0 0.0
        %1044 = vmatpush1.msra.mxu0 %v1007
        %1045 = vmatprep.subr.mxu0 0.0
        %1046 = vmatpush1.msra.mxu0 %v1008
        %1047 = vmatprep.subr.mxu0 0.0
        %1048 = vmatpush1.msra.mxu0 %v1009
        %1049 = vmatprep.subr.mxu0 0.0
        %1050 = vmatpush1.msra.mxu0 0.0
        %1051 = vmatprep.subr.mxu0 0.0
        %1052 = vmatpush1.msra.mxu0 0.0
        %1053 = vmatprep.subr.mxu0 0.0
        %1054 = vmatpush1.msra.mxu0 0.0
        %1055 = vmatprep.subr.mxu0 0.0
        %1056 = vmatpush1.msra.mxu0 0.0
        %1057 = vmatprep.subr.mxu0 0.0
        %1058 = vmatpush1.msra.mxu0 0.0
        %1059 = vmatprep.subr.mxu0 0.0
        %1060 = vmatpush1.msra.mxu0 0.0
        %1061 = vmatprep.subr.mxu0 0.0
        %1062 = vmatpush1.msra.mxu0 0.0
        %1063 = vmatprep.subr.mxu0 0.0
        %1064 = vmatpush1.msra.mxu0 0.0
        %1065 = vmatprep.subr.mxu0 0.0
        %1066 = vmatpush1.msra.mxu0 0.0
        %1067 = vmatprep.subr.mxu0 0.0
        %1068 = vmatpush1.msra.mxu0 0.0
        %1069 = vmatprep.subr.mxu0 0.0
        %1070 = vmatpush1.msra.mxu0 0.0
        %1071 = vmatprep.subr.mxu0 0.0
        %1072 = vmatpush1.msra.mxu0 0.0
        %1073 = vmatprep.subr.mxu0 0.0
        %1074 = vmatpush1.msra.mxu0 0.0
        %1075 = vmatprep.subr.mxu0 0.0
        %1076 = vmatpush1.msra.mxu0 0.0
        %1077 = vmatprep.subr.mxu0 0.0
        %1078 = vmatpush1.msra.mxu0 0.0
        %1079 = vmatprep.subr.mxu0 0.0
        %1080 = vmatpush1.msra.mxu0 0.0
        %1081 = vmatprep.mubr.f32.mxu0 0.0
        %1082 = vmatmul.mubr.f32.gmra.mrb[0].mxu0 %v993
        %v1083 = vpop.f32.mrb[0].mxu0
        %v1084 = vadd.f32 %v1015, %v1083
        %v1085 = vpop.f32.mrb[0].mxu0
        %1086 = vdwg.mxu0
        %v1087 = vadd.f32 %v879, %v1084
        %1088 = vst.msk [vmem:[%s415] sm:$0xff] %vm427, %v1087
        %s1089 = sand.u32 %s296, 1
        %s1090 = scalar_lea.sflag [#allocation5], %s1089
        %s1091 = sand.u32 %s296, 1
        %s1092 = smul.addr %s1091, 8
        %s1093 = scalar_lea.vmem [#allocation4], %s1092
        // Predicated region
        $region76: #{tpu_custom_call.1} parent=67 // pred_check
          %p1094 = pneg %p306
        $region77: #{tpu_custom_call.1} parent=67 // pred_check_branch
          %1096 = sbr.rel (%p1094) target = $region79
        $region78: #{tpu_custom_call.1} parent=67 // pred_region
          %s1098 = ssub.s32 128, 128
          %1099 = vsyncadd %s1090, %s1098
          %s1100 = smul.addr %s26, 128
          %s1101 = scalar_lea.hbm %s12, %s1100
          %s1103 = sshll.u32 %s1093, 4
          %s1104 = int_to_ptr.vmem [resolvable:$true] %s1103
          %1106 = dma.vmem_to_hbm [thread:$0]  %s1104, 128, %s1101, %s1090
        $region79: #{tpu_custom_call.1} parent=67 // pred_fallthru
          _
      $region68: #{tpu_custom_call.1} parent=5 // pred_fallthru
        _
      %p1107 = scmp.le.s32.totalorder 2, %s21
      // Predicated region
      $region80: #{tpu_custom_call.1} parent=5 // pred_check
        %p1108 = pneg %p1107
      $region81: #{tpu_custom_call.1} parent=5 // pred_check_branch
        %1110 = sbr.rel (%p1108) target = $region83
      $region82: #{tpu_custom_call.1} parent=5 // pred_region
        %s1111 = ssub.s32 %s21, 2
        // Predicated region
        $region84: #{tpu_custom_call.1} parent=82 // pred_check
          %p1112 = pneg %p312
        $region85: #{tpu_custom_call.1} parent=82 // pred_check_branch
          %1114 = sbr.rel (%p1112) target = $region87
        $region86: #{tpu_custom_call.1} parent=82 // pred_region
          %s1115 = sand.u32 %s297, 1
          %s1116 = scalar_lea.sflag [#allocation5], %s1115
          %s1117 = sand.u32 %s297, 1
          %s1118 = smul.addr %s1117, 8
          %s1119 = scalar_lea.vmem [#allocation4], %s1118
          %1120 = dma.done %s1116, 128
        $region87: #{tpu_custom_call.1} parent=82 // pred_fallthru
          _
      $region83: #{tpu_custom_call.1} parent=5 // pred_fallthru
        _
    $region6: #{tpu_custom_call.1} parent=1 // loop_footer
      %s25 = sadd.s32 1, %s21
    $region7: #{tpu_custom_call.1} parent=1 // loop_footer_branch
      %20 = sbr.rel target = $region3
    $region8: #{tpu_custom_call.1} parent=1 // loop_exit
      _
    %1121 = vsyncpa [#allocation5], 1
    %s1122 = scalar_lea.sflag [#allocation5], 1
    %1123 = vsyncpa %s1122, 1

</llo_original>
